<compile_context>
chip_gen: v5e
topology: v5e:2x2
jax: 0.10.0
libtpu: 0.0.40
codegen_flags: <defaults>
</compile_context>

<pallas_src>
import functools
import math

import jax
import jax.numpy as jnp
from jax.experimental import pallas as pl
from jax.experimental.pallas import tpu as pltpu


# ---------------------------------------------------------------------------
# In-kernel building blocks (flattened (Bt*H*W, C) NHWC-row activations).
# ---------------------------------------------------------------------------
def _conv3x3_relu(a, w_ref, b_ref, W):
    """3x3 SAME conv + bias + ReLU via roll-based im2col and ONE MXU matmul.

    a:     (N, Cin) f32, N = Bt*W*W, row i = b*W*W + h*W + w.
    w_ref: (9*Cin, Cout) bf16 ref; K index = (3*dy + dx)*Cin + cin.
    b_ref: (1, Cout) f32 ref.
    """
    N, _ = a.shape
    log2w = W.bit_length() - 1                       # W is a power of two
    idx = jax.lax.broadcasted_iota(jnp.int32, (N, 1), 0)
    w_pos = idx & (W - 1)                            # column within image
    h_pos = (idx >> log2w) & (W - 1)                 # row within image
    # hoisted lane/row-wrap masks (dx/dy = 0, 1, 2)
    col_m = (w_pos >= 1, None, w_pos <= W - 2)
    row_m = (h_pos >= 1, None, h_pos <= W - 2)

    taps = []
    for dy in range(3):
        for dx in range(3):
            s = (dy - 1) * W + (dx - 1)              # flat row shift of tap
            tap = a if s == 0 else pltpu.roll(a, (-s) % N, axis=0)
            mask = row_m[dy]
            if col_m[dx] is not None:
                mask = col_m[dx] if mask is None else (mask & col_m[dx])
            if mask is not None:
                # wrapped rows (SAME zero padding / cross-image) -> 0
                tap = jnp.where(mask, tap, 0.0)
            taps.append(tap)
    im = jnp.concatenate(taps, axis=1).astype(jnp.bfloat16)     # (N, 9*Cin)
    acc = jnp.dot(im, w_ref[...], preferred_element_type=jnp.float32)
    return jnp.maximum(acc + b_ref[...], 0.0)


def _maxpool2(r, sel_ref, W, Bt):
    """2x2 / stride-2 max pool on a flattened (Bt*W*W, C) activation.

    sel_ref: (Wo*Wo, W*W) bf16 one-hot picking the top-left row of each 2x2
             window (stride-2 gather done on the MXU, exact in bf16).
    Neighbours come from pltpu.roll; wrapped values only reach rows with odd
    h or w, which the selection matmul discards.
    """
    N, _ = r.shape
    HW = W * W
    m = jnp.maximum(jnp.maximum(r, pltpu.roll(r, N - 1, axis=0)),
                    jnp.maximum(pltpu.roll(r, N - W, axis=0),
                                pltpu.roll(r, N - W - 1, axis=0)))
    mb = m.astype(jnp.bfloat16)
    sel = sel_ref[...]
    outs = [jnp.dot(sel, mb[b * HW:(b + 1) * HW, :],
                    preferred_element_type=jnp.float32)
            for b in range(Bt)]
    return outs[0] if Bt == 1 else jnp.concatenate(outs, axis=0)


# ---------------------------------------------------------------------------
# Fused forward kernel (Bt images per grid step).
# ---------------------------------------------------------------------------
def _simplecnn_kernel(dims,
                      x_ref, w1_ref, b1_ref, s1_ref,
                      w2_ref, b2_ref, s2_ref,
                      w3_ref, b3_ref,
                      f1w_ref, f1b_ref, f2w_ref, f2b_ref,
                      o_ref):
    W1, W2, W3, Bt = dims                                     # 16, 8, 4, Bt

    x = x_ref[0].astype(jnp.float32)                          # (Bt*256, Cin)
    a1 = _conv3x3_relu(x, w1_ref, b1_ref, W1)                 # (Bt*256, 32)
    p1 = _maxpool2(a1, s1_ref, W1, Bt)                        # (Bt*64, 32)
    a2 = _conv3x3_relu(p1, w2_ref, b2_ref, W2)                # (Bt*64, 64)
    p2 = _maxpool2(a2, s2_ref, W2, Bt)                        # (Bt*16, 64)
    a3 = _conv3x3_relu(p2, w3_ref, b3_ref, W3)                # (Bt*16, 128)
    C3 = a3.shape[-1]
    p3 = jnp.max(a3.reshape(Bt, W3 * W3, C3), axis=1)         # 4x4 pool -> (Bt,128)

    # classifier head (Dropout(0.5) is identity in eval mode).
    h = jnp.dot(p3.astype(jnp.bfloat16), f1w_ref[...],
                preferred_element_type=jnp.float32) + f1b_ref[...]
    h = jnp.maximum(h, 0.0)
    o_ref[0] = jnp.dot(h.astype(jnp.bfloat16), f2w_ref[...],
                       preferred_element_type=jnp.float32) + f2b_ref[...]


# ---------------------------------------------------------------------------
# Host-side wrapper.
# ---------------------------------------------------------------------------
def _pool_select(W, k):
    """bf16 one-hot (Wo*Wo, W*W) matrix selecting the top-left pixel of each window."""
    Wo = W // k
    idx = jnp.arange(Wo * Wo, dtype=jnp.int32)
    src = (k * (idx // Wo)) * W + k * (idx % Wo)
    return jax.nn.one_hot(src, W * W, dtype=jnp.bfloat16)


def _pick_bt(B):
    """Largest per-step batch Bt <= 8 dividing B with an even grid (>=2) for v7x."""
    for bt in (8, 4, 2, 1):
        if B % bt == 0 and (B // bt) >= 2 and (B // bt) % 2 == 0:
            return bt
    for bt in (8, 4, 2, 1):
        if B % bt == 0:
            return bt
    return 1


@jax.jit
def simplecnn_forward(x_nchw, params):
    B, Cin, H, W = x_nchw.shape
    assert H == W == 16, "synthesized feature stack expects 16x16 input"
    W1, W2, W3 = W, W // 2, W // 4
    num_classes = params["fc2b"].shape[0]
    nc_pad = ((num_classes + 127) // 128) * 128               # lane-dense logits
    bf16 = jnp.bfloat16

    Bt = _pick_bt(B)
    G = B // Bt

    # Pure layout glue: NCHW -> flattened NHWC rows grouped per grid step,
    # HWIO conv weights -> (9*Cin, Cout) im2col weights, bf16 matmul operands,
    # top layer zero-padded to 128 output lanes.
    x = jnp.transpose(x_nchw, (0, 2, 3, 1)).reshape(G, Bt * H * W, Cin).astype(bf16)
    w1 = params["c1w"].reshape(9 * Cin, 32).astype(bf16)
    w2 = params["c2w"].reshape(9 * 32, 64).astype(bf16)
    w3 = params["c3w"].reshape(9 * 64, 128).astype(bf16)
    b1 = params["c1b"].reshape(1, 32)
    b2 = params["c2b"].reshape(1, 64)
    b3 = params["c3b"].reshape(1, 128)
    f1w = params["fc1w"].astype(bf16)
    f1b = params["fc1b"].reshape(1, 64)
    f2w = jnp.pad(params["fc2w"], ((0, 0), (0, nc_pad - num_classes))).astype(bf16)
    f2b = jnp.pad(params["fc2b"], (0, nc_pad - num_classes)).reshape(1, nc_pad)
    s1 = _pool_select(W1, 2)                                  # (64, 256) bf16
    s2 = _pool_select(W2, 2)                                  # (16, 64)  bf16

    full = lambda nd: (lambda n: (0,) * nd)
    kernel = functools.partial(_simplecnn_kernel, (W1, W2, W3, Bt))

    out = pl.pallas_call(
        kernel,
        out_shape=jax.ShapeDtypeStruct((G, Bt, nc_pad), jnp.float32),
        grid=(G,),
        in_specs=[
            pl.BlockSpec((1, Bt * H * W, Cin), lambda n: (n, 0, 0)),  # per-step images
            pl.BlockSpec(w1.shape, full(2)),
            pl.BlockSpec(b1.shape, full(2)),
            pl.BlockSpec(s1.shape, full(2)),
            pl.BlockSpec(w2.shape, full(2)),
            pl.BlockSpec(b2.shape, full(2)),
            pl.BlockSpec(s2.shape, full(2)),
            pl.BlockSpec(w3.shape, full(2)),
            pl.BlockSpec(b3.shape, full(2)),
            pl.BlockSpec(f1w.shape, full(2)),
            pl.BlockSpec(f1b.shape, full(2)),
            pl.BlockSpec(f2w.shape, full(2)),
            pl.BlockSpec(f2b.shape, full(2)),
        ],
        out_specs=pl.BlockSpec((1, Bt, nc_pad), lambda n: (n, 0, 0)),
        compiler_params=pltpu.CompilerParams(
            dimension_semantics=("parallel",)),   # batch grid shards across TCs
    )(x, w1, b1, s1, w2, b2, s2, w3, b3, f1w, f1b, f2w, f2b)
    return out.reshape(B, nc_pad)[:, :num_classes]


# ---------------------------------------------------------------------------
# Parameter init (matches PyTorch _initialize_weights):
#   Conv2d: kaiming_normal_ fan_out/relu -> N(0, sqrt(2/(Cout*3*3))), bias 0
#   Linear: N(0, 0.01), bias 0
# ---------------------------------------------------------------------------
def init_params(key, cin=4, num_classes=10):
    ks = jax.random.split(key, 5)

    def conv_init(k, ci, co):
        std = math.sqrt(2.0 / (co * 3 * 3))
        w = jax.random.normal(k, (3, 3, ci, co), jnp.float32) * std  # HWIO
        return w, jnp.zeros((co,), jnp.float32)

    c1w, c1b = conv_init(ks[0], cin, 32)
    c2w, c2b = conv_init(ks[1], 32, 64)
    c3w, c3b = conv_init(ks[2], 64, 128)
    fc1w = jax.random.normal(ks[3], (128, 64), jnp.float32) * 0.01
    fc1b = jnp.zeros((64,), jnp.float32)
    fc2w = jax.random.normal(ks[4], (64, num_classes), jnp.float32) * 0.01
    fc2b = jnp.zeros((num_classes,), jnp.float32)
    return dict(c1w=c1w, c1b=c1b, c2w=c2w, c2b=c2b, c3w=c3w, c3b=c3b,
                fc1w=fc1w, fc1b=fc1b, fc2w=fc2w, fc2b=fc2b)


# ---------------------------------------------------------------------------
# Pure-JAX/XLA reference with the same bf16 rounding of matmul operands
# (f32 accumulation), used only for a numerics self-check.
# ---------------------------------------------------------------------------
def _bf16_round(x):
    return x.astype(jnp.bfloat16).astype(jnp.float32)


def _reference_forward(x_nchw, params):
    x = jnp.transpose(x_nchw, (0, 2, 3, 1))                    # NHWC

    def conv(x, w, b):
        y = jax.lax.conv_general_dilated(
            _bf16_round(x), _bf16_round(w), window_strides=(1, 1),
            padding="SAME", dimension_numbers=("NHWC", "HWIO", "NHWC"),
            preferred_element_type=jnp.float32)
        return jax.nn.relu(y + b)

    def pool(x, k):
        B, H, W, C = x.shape
        return jnp.max(x.reshape(B, H // k, k, W // k, k, C), axis=(2, 4))

    x = pool(conv(x, params["c1w"], params["c1b"]), 2)
    x = pool(conv(x, params["c2w"], params["c2b"]), 2)
    x = pool(conv(x, params["c3w"], params["c3b"]), 4)
    x = x.reshape(x.shape[0], -1)                              # (B, 128)
    # TODO(synk): Dropout(0.5) train-mode stochastic masking not implemented;
    # eval-mode identity is used (standard inference semantics).
    h = jax.nn.relu(_bf16_round(x) @ _bf16_round(params["fc1w"]) + params["fc1b"])
    return _bf16_round(h) @ _bf16_round(params["fc2w"]) + params["fc2b"]


if __name__ == "__main__":
    key = jax.random.PRNGKey(0)
    pkey, xkey = jax.random.split(key)
    num_classes = 10
    params = init_params(pkey, cin=4, num_classes=num_classes)
    x = jax.random.normal(xkey, (2, 4, 16, 16), jnp.float32)   # NCHW, like PyTorch

    out = jax.block_until_ready(simplecnn_forward(x, params))
    assert out.shape == (2, num_classes), out.shape
    assert out.dtype == jnp.float32

    ref = jax.block_until_ready(_reference_forward(x, params))
    err = float(jnp.max(jnp.abs(out - ref)))
    assert err < 1e-4, f"kernel/reference mismatch: max abs err = {err}"
    print("KERNEL_OK")
</pallas_src>

<mosaic_0001>
module attributes {stable_mosaic.version = 11 : i64} {
  func.func @_simplecnn_kernel(%arg0: i32, %arg1: memref<1x256x4xbf16, #tpu.memory_space<vmem>>, %arg2: memref<36x32xbf16, #tpu.memory_space<vmem>>, %arg3: memref<1x32xf32, #tpu.memory_space<vmem>>, %arg4: memref<64x256xbf16, #tpu.memory_space<vmem>>, %arg5: memref<288x64xbf16, #tpu.memory_space<vmem>>, %arg6: memref<1x64xf32, #tpu.memory_space<vmem>>, %arg7: memref<16x64xbf16, #tpu.memory_space<vmem>>, %arg8: memref<576x128xbf16, #tpu.memory_space<vmem>>, %arg9: memref<1x128xf32, #tpu.memory_space<vmem>>, %arg10: memref<128x64xbf16, #tpu.memory_space<vmem>>, %arg11: memref<1x64xf32, #tpu.memory_space<vmem>>, %arg12: memref<64x128xbf16, #tpu.memory_space<vmem>>, %arg13: memref<1x128xf32, #tpu.memory_space<vmem>>, %arg14: memref<1x1x128xf32, #tpu.memory_space<vmem>>) attributes {dimension_semantics = [#tpu.dimension_semantics<parallel>], iteration_bounds = array<i64: 2>, scalar_prefetch = 0 : i64, scratch_operands = 0 : i64, tpu.core_type = #tpu.core_type<tc>, window_params = [{transform_indices = @transform_0, window_bounds = array<i64: 1, 256, 4>}, {pipeline_mode = #tpu.pipeline_mode<synchronous>, transform_indices = @transform_1, window_bounds = array<i64: 36, 32>}, {pipeline_mode = #tpu.pipeline_mode<synchronous>, transform_indices = @transform_2, window_bounds = array<i64: 1, 32>}, {pipeline_mode = #tpu.pipeline_mode<synchronous>, transform_indices = @transform_3, window_bounds = array<i64: 64, 256>}, {pipeline_mode = #tpu.pipeline_mode<synchronous>, transform_indices = @transform_4, window_bounds = array<i64: 288, 64>}, {pipeline_mode = #tpu.pipeline_mode<synchronous>, transform_indices = @transform_5, window_bounds = array<i64: 1, 64>}, {pipeline_mode = #tpu.pipeline_mode<synchronous>, transform_indices = @transform_6, window_bounds = array<i64: 16, 64>}, {pipeline_mode = #tpu.pipeline_mode<synchronous>, transform_indices = @transform_7, window_bounds = array<i64: 576, 128>}, {pipeline_mode = #tpu.pipeline_mode<synchronous>, transform_indices = @transform_8, window_bounds = array<i64: 1, 128>}, {pipeline_mode = #tpu.pipeline_mode<synchronous>, transform_indices = @transform_9, window_bounds = array<i64: 128, 64>}, {pipeline_mode = #tpu.pipeline_mode<synchronous>, transform_indices = @transform_10, window_bounds = array<i64: 1, 64>}, {pipeline_mode = #tpu.pipeline_mode<synchronous>, transform_indices = @transform_11, window_bounds = array<i64: 64, 128>}, {pipeline_mode = #tpu.pipeline_mode<synchronous>, transform_indices = @transform_12, window_bounds = array<i64: 1, 128>}, {transform_indices = @transform_13, window_bounds = array<i64: 1, 1, 128>}]} {
    %c0 = arith.constant 0 : index
    %c0_0 = arith.constant 0 : index
    %c0_1 = arith.constant 0 : index
    %0 = vector.load %arg1[%c0, %c0_0, %c0_1] : memref<1x256x4xbf16, #tpu.memory_space<vmem>>, vector<1x256x4xbf16>
    %1 = vector.shape_cast %0 : vector<1x256x4xbf16> to vector<256x4xbf16>
    %2 = arith.extf %1 : vector<256x4xbf16> to vector<256x4xf32>
    %3 = tpu.iota {dimensions = array<i32: 0>} : vector<256x1xi32>
    %c15_i32 = arith.constant 15 : i32
    %4 = vector.broadcast %c15_i32 : i32 to vector<256x1xi32>
    %5 = arith.andi %3, %4 : vector<256x1xi32>
    %c4_i32 = arith.constant 4 : i32
    %6 = vector.broadcast %c4_i32 : i32 to vector<256x1xi32>
    %7 = arith.shrsi %3, %6 : vector<256x1xi32>
    %c15_i32_2 = arith.constant 15 : i32
    %8 = vector.broadcast %c15_i32_2 : i32 to vector<256x1xi32>
    %9 = arith.andi %7, %8 : vector<256x1xi32>
    %c1_i32 = arith.constant 1 : i32
    %10 = vector.broadcast %c1_i32 : i32 to vector<256x1xi32>
    %11 = arith.cmpi sge, %5, %10 : vector<256x1xi32>
    %c14_i32 = arith.constant 14 : i32
    %12 = vector.broadcast %c14_i32 : i32 to vector<256x1xi32>
    %13 = arith.cmpi sle, %5, %12 : vector<256x1xi32>
    %c1_i32_3 = arith.constant 1 : i32
    %14 = vector.broadcast %c1_i32_3 : i32 to vector<256x1xi32>
    %15 = arith.cmpi sge, %9, %14 : vector<256x1xi32>
    %c14_i32_4 = arith.constant 14 : i32
    %16 = vector.broadcast %c14_i32_4 : i32 to vector<256x1xi32>
    %17 = arith.cmpi sle, %9, %16 : vector<256x1xi32>
    %c17_i32 = arith.constant 17 : i32
    %18 = tpu.dynamic_rotate %2 by %c17_i32 dim 0 : vector<256x4xf32>, i32 -> vector<256x4xf32>
    %19 = arith.andi %15, %11 : vector<256x1xi1>
    %cst = arith.constant 0.000000e+00 : f32
    %20 = vector.shape_cast %19 : vector<256x1xi1> to vector<256x1xi1>
    %21 = vector.broadcast %20 : vector<256x1xi1> to vector<256x4xi1>
    %22 = vector.broadcast %cst : f32 to vector<256x4xf32>
    %23 = arith.select %21, %18, %22 : vector<256x4xi1>, vector<256x4xf32>
    %c16_i32 = arith.constant 16 : i32
    %24 = tpu.dynamic_rotate %2 by %c16_i32 dim 0 : vector<256x4xf32>, i32 -> vector<256x4xf32>
    %cst_5 = arith.constant 0.000000e+00 : f32
    %25 = vector.shape_cast %15 : vector<256x1xi1> to vector<256x1xi1>
    %26 = vector.broadcast %25 : vector<256x1xi1> to vector<256x4xi1>
    %27 = vector.broadcast %cst_5 : f32 to vector<256x4xf32>
    %28 = arith.select %26, %24, %27 : vector<256x4xi1>, vector<256x4xf32>
    %c15_i32_6 = arith.constant 15 : i32
    %29 = tpu.dynamic_rotate %2 by %c15_i32_6 dim 0 : vector<256x4xf32>, i32 -> vector<256x4xf32>
    %30 = arith.andi %15, %13 : vector<256x1xi1>
    %cst_7 = arith.constant 0.000000e+00 : f32
    %31 = vector.shape_cast %30 : vector<256x1xi1> to vector<256x1xi1>
    %32 = vector.broadcast %31 : vector<256x1xi1> to vector<256x4xi1>
    %33 = vector.broadcast %cst_7 : f32 to vector<256x4xf32>
    %34 = arith.select %32, %29, %33 : vector<256x4xi1>, vector<256x4xf32>
    %c1_i32_8 = arith.constant 1 : i32
    %35 = tpu.dynamic_rotate %2 by %c1_i32_8 dim 0 : vector<256x4xf32>, i32 -> vector<256x4xf32>
    %cst_9 = arith.constant 0.000000e+00 : f32
    %36 = vector.shape_cast %11 : vector<256x1xi1> to vector<256x1xi1>
    %37 = vector.broadcast %36 : vector<256x1xi1> to vector<256x4xi1>
    %38 = vector.broadcast %cst_9 : f32 to vector<256x4xf32>
    %39 = arith.select %37, %35, %38 : vector<256x4xi1>, vector<256x4xf32>
    %c255_i32 = arith.constant 255 : i32
    %40 = tpu.dynamic_rotate %2 by %c255_i32 dim 0 : vector<256x4xf32>, i32 -> vector<256x4xf32>
    %cst_10 = arith.constant 0.000000e+00 : f32
    %41 = vector.shape_cast %13 : vector<256x1xi1> to vector<256x1xi1>
    %42 = vector.broadcast %41 : vector<256x1xi1> to vector<256x4xi1>
    %43 = vector.broadcast %cst_10 : f32 to vector<256x4xf32>
    %44 = arith.select %42, %40, %43 : vector<256x4xi1>, vector<256x4xf32>
    %c241_i32 = arith.constant 241 : i32
    %45 = tpu.dynamic_rotate %2 by %c241_i32 dim 0 : vector<256x4xf32>, i32 -> vector<256x4xf32>
    %46 = arith.andi %17, %11 : vector<256x1xi1>
    %cst_11 = arith.constant 0.000000e+00 : f32
    %47 = vector.shape_cast %46 : vector<256x1xi1> to vector<256x1xi1>
    %48 = vector.broadcast %47 : vector<256x1xi1> to vector<256x4xi1>
    %49 = vector.broadcast %cst_11 : f32 to vector<256x4xf32>
    %50 = arith.select %48, %45, %49 : vector<256x4xi1>, vector<256x4xf32>
    %c240_i32 = arith.constant 240 : i32
    %51 = tpu.dynamic_rotate %2 by %c240_i32 dim 0 : vector<256x4xf32>, i32 -> vector<256x4xf32>
    %cst_12 = arith.constant 0.000000e+00 : f32
    %52 = vector.shape_cast %17 : vector<256x1xi1> to vector<256x1xi1>
    %53 = vector.broadcast %52 : vector<256x1xi1> to vector<256x4xi1>
    %54 = vector.broadcast %cst_12 : f32 to vector<256x4xf32>
    %55 = arith.select %53, %51, %54 : vector<256x4xi1>, vector<256x4xf32>
    %c239_i32 = arith.constant 239 : i32
    %56 = tpu.dynamic_rotate %2 by %c239_i32 dim 0 : vector<256x4xf32>, i32 -> vector<256x4xf32>
    %57 = arith.andi %17, %13 : vector<256x1xi1>
    %cst_13 = arith.constant 0.000000e+00 : f32
    %58 = vector.shape_cast %57 : vector<256x1xi1> to vector<256x1xi1>
    %59 = vector.broadcast %58 : vector<256x1xi1> to vector<256x4xi1>
    %60 = vector.broadcast %cst_13 : f32 to vector<256x4xf32>
    %61 = arith.select %59, %56, %60 : vector<256x4xi1>, vector<256x4xf32>
    %62 = tpu.concatenate %23, %28, %34, %39, %2, %44, %50, %55, %61 in 1 : vector<256x4xf32>, vector<256x4xf32>, vector<256x4xf32>, vector<256x4xf32>, vector<256x4xf32>, vector<256x4xf32>, vector<256x4xf32>, vector<256x4xf32>, vector<256x4xf32> -> vector<256x36xf32>
    %63 = arith.truncf %62 : vector<256x36xf32> to vector<256x36xbf16>
    %c0_14 = arith.constant 0 : index
    %c0_15 = arith.constant 0 : index
    %64 = vector.load %arg2[%c0_14, %c0_15] : memref<36x32xbf16, #tpu.memory_space<vmem>>, vector<36x32xbf16>
    %cst_16 = arith.constant dense<0.000000e+00> : vector<256x32xf32>
    %65 = tpu.matmul %63, %64, %cst_16 {dimension_numbers = #tpu.dot_dimension_numbers<[1], [0], [0], [1], [0, 0, 1, 1], [], []>} : vector<256x36xbf16>, vector<36x32xbf16>, vector<256x32xf32> -> vector<256x32xf32>
    %c0_17 = arith.constant 0 : index
    %c0_18 = arith.constant 0 : index
    %66 = vector.load %arg3[%c0_17, %c0_18] : memref<1x32xf32, #tpu.memory_space<vmem>>, vector<1x32xf32>
    %67 = vector.broadcast %66 : vector<1x32xf32> to vector<256x32xf32>
    %68 = arith.addf %65, %67 : vector<256x32xf32>
    %cst_19 = arith.constant 0.000000e+00 : f32
    %69 = vector.broadcast %cst_19 : f32 to vector<256x32xf32>
    %70 = arith.maximumf %68, %69 : vector<256x32xf32>
    %c255_i32_20 = arith.constant 255 : i32
    %71 = tpu.dynamic_rotate %70 by %c255_i32_20 dim 0 : vector<256x32xf32>, i32 -> vector<256x32xf32>
    %72 = arith.maximumf %70, %71 : vector<256x32xf32>
    %c240_i32_21 = arith.constant 240 : i32
    %73 = tpu.dynamic_rotate %70 by %c240_i32_21 dim 0 : vector<256x32xf32>, i32 -> vector<256x32xf32>
    %c239_i32_22 = arith.constant 239 : i32
    %74 = tpu.dynamic_rotate %70 by %c239_i32_22 dim 0 : vector<256x32xf32>, i32 -> vector<256x32xf32>
    %75 = arith.maximumf %73, %74 : vector<256x32xf32>
    %76 = arith.maximumf %72, %75 : vector<256x32xf32>
    %77 = arith.truncf %76 : vector<256x32xf32> to vector<256x32xbf16>
    %c0_23 = arith.constant 0 : index
    %c0_24 = arith.constant 0 : index
    %78 = vector.load %arg4[%c0_23, %c0_24] : memref<64x256xbf16, #tpu.memory_space<vmem>>, vector<64x256xbf16>
    %cst_25 = arith.constant dense<0.000000e+00> : vector<64x32xf32>
    %79 = tpu.matmul %78, %77, %cst_25 {dimension_numbers = #tpu.dot_dimension_numbers<[1], [0], [0], [1], [0, 0, 1, 1], [], []>} : vector<64x256xbf16>, vector<256x32xbf16>, vector<64x32xf32> -> vector<64x32xf32>
    %80 = tpu.iota {dimensions = array<i32: 0>} : vector<64x1xi32>
    %c7_i32 = arith.constant 7 : i32
    %81 = vector.broadcast %c7_i32 : i32 to vector<64x1xi32>
    %82 = arith.andi %80, %81 : vector<64x1xi32>
    %c3_i32 = arith.constant 3 : i32
    %83 = vector.broadcast %c3_i32 : i32 to vector<64x1xi32>
    %84 = arith.shrsi %80, %83 : vector<64x1xi32>
    %c7_i32_26 = arith.constant 7 : i32
    %85 = vector.broadcast %c7_i32_26 : i32 to vector<64x1xi32>
    %86 = arith.andi %84, %85 : vector<64x1xi32>
    %c1_i32_27 = arith.constant 1 : i32
    %87 = vector.broadcast %c1_i32_27 : i32 to vector<64x1xi32>
    %88 = arith.cmpi sge, %82, %87 : vector<64x1xi32>
    %c6_i32 = arith.constant 6 : i32
    %89 = vector.broadcast %c6_i32 : i32 to vector<64x1xi32>
    %90 = arith.cmpi sle, %82, %89 : vector<64x1xi32>
    %c1_i32_28 = arith.constant 1 : i32
    %91 = vector.broadcast %c1_i32_28 : i32 to vector<64x1xi32>
    %92 = arith.cmpi sge, %86, %91 : vector<64x1xi32>
    %c6_i32_29 = arith.constant 6 : i32
    %93 = vector.broadcast %c6_i32_29 : i32 to vector<64x1xi32>
    %94 = arith.cmpi sle, %86, %93 : vector<64x1xi32>
    %c9_i32 = arith.constant 9 : i32
    %95 = tpu.dynamic_rotate %79 by %c9_i32 dim 0 : vector<64x32xf32>, i32 -> vector<64x32xf32>
    %96 = arith.andi %92, %88 : vector<64x1xi1>
    %cst_30 = arith.constant 0.000000e+00 : f32
    %97 = vector.shape_cast %96 : vector<64x1xi1> to vector<64x1xi1>
    %98 = vector.broadcast %97 : vector<64x1xi1> to vector<64x32xi1>
    %99 = vector.broadcast %cst_30 : f32 to vector<64x32xf32>
    %100 = arith.select %98, %95, %99 : vector<64x32xi1>, vector<64x32xf32>
    %c8_i32 = arith.constant 8 : i32
    %101 = tpu.dynamic_rotate %79 by %c8_i32 dim 0 : vector<64x32xf32>, i32 -> vector<64x32xf32>
    %cst_31 = arith.constant 0.000000e+00 : f32
    %102 = vector.shape_cast %92 : vector<64x1xi1> to vector<64x1xi1>
    %103 = vector.broadcast %102 : vector<64x1xi1> to vector<64x32xi1>
    %104 = vector.broadcast %cst_31 : f32 to vector<64x32xf32>
    %105 = arith.select %103, %101, %104 : vector<64x32xi1>, vector<64x32xf32>
    %c7_i32_32 = arith.constant 7 : i32
    %106 = tpu.dynamic_rotate %79 by %c7_i32_32 dim 0 : vector<64x32xf32>, i32 -> vector<64x32xf32>
    %107 = arith.andi %92, %90 : vector<64x1xi1>
    %cst_33 = arith.constant 0.000000e+00 : f32
    %108 = vector.shape_cast %107 : vector<64x1xi1> to vector<64x1xi1>
    %109 = vector.broadcast %108 : vector<64x1xi1> to vector<64x32xi1>
    %110 = vector.broadcast %cst_33 : f32 to vector<64x32xf32>
    %111 = arith.select %109, %106, %110 : vector<64x32xi1>, vector<64x32xf32>
    %c1_i32_34 = arith.constant 1 : i32
    %112 = tpu.dynamic_rotate %79 by %c1_i32_34 dim 0 : vector<64x32xf32>, i32 -> vector<64x32xf32>
    %cst_35 = arith.constant 0.000000e+00 : f32
    %113 = vector.shape_cast %88 : vector<64x1xi1> to vector<64x1xi1>
    %114 = vector.broadcast %113 : vector<64x1xi1> to vector<64x32xi1>
    %115 = vector.broadcast %cst_35 : f32 to vector<64x32xf32>
    %116 = arith.select %114, %112, %115 : vector<64x32xi1>, vector<64x32xf32>
    %c63_i32 = arith.constant 63 : i32
    %117 = tpu.dynamic_rotate %79 by %c63_i32 dim 0 : vector<64x32xf32>, i32 -> vector<64x32xf32>
    %cst_36 = arith.constant 0.000000e+00 : f32
    %118 = vector.shape_cast %90 : vector<64x1xi1> to vector<64x1xi1>
    %119 = vector.broadcast %118 : vector<64x1xi1> to vector<64x32xi1>
    %120 = vector.broadcast %cst_36 : f32 to vector<64x32xf32>
    %121 = arith.select %119, %117, %120 : vector<64x32xi1>, vector<64x32xf32>
    %c57_i32 = arith.constant 57 : i32
    %122 = tpu.dynamic_rotate %79 by %c57_i32 dim 0 : vector<64x32xf32>, i32 -> vector<64x32xf32>
    %123 = arith.andi %94, %88 : vector<64x1xi1>
    %cst_37 = arith.constant 0.000000e+00 : f32
    %124 = vector.shape_cast %123 : vector<64x1xi1> to vector<64x1xi1>
    %125 = vector.broadcast %124 : vector<64x1xi1> to vector<64x32xi1>
    %126 = vector.broadcast %cst_37 : f32 to vector<64x32xf32>
    %127 = arith.select %125, %122, %126 : vector<64x32xi1>, vector<64x32xf32>
    %c56_i32 = arith.constant 56 : i32
    %128 = tpu.dynamic_rotate %79 by %c56_i32 dim 0 : vector<64x32xf32>, i32 -> vector<64x32xf32>
    %cst_38 = arith.constant 0.000000e+00 : f32
    %129 = vector.shape_cast %94 : vector<64x1xi1> to vector<64x1xi1>
    %130 = vector.broadcast %129 : vector<64x1xi1> to vector<64x32xi1>
    %131 = vector.broadcast %cst_38 : f32 to vector<64x32xf32>
    %132 = arith.select %130, %128, %131 : vector<64x32xi1>, vector<64x32xf32>
    %c55_i32 = arith.constant 55 : i32
    %133 = tpu.dynamic_rotate %79 by %c55_i32 dim 0 : vector<64x32xf32>, i32 -> vector<64x32xf32>
    %134 = arith.andi %94, %90 : vector<64x1xi1>
    %cst_39 = arith.constant 0.000000e+00 : f32
    %135 = vector.shape_cast %134 : vector<64x1xi1> to vector<64x1xi1>
    %136 = vector.broadcast %135 : vector<64x1xi1> to vector<64x32xi1>
    %137 = vector.broadcast %cst_39 : f32 to vector<64x32xf32>
    %138 = arith.select %136, %133, %137 : vector<64x32xi1>, vector<64x32xf32>
    %139 = tpu.concatenate %100, %105, %111, %116, %79, %121, %127, %132, %138 in 1 : vector<64x32xf32>, vector<64x32xf32>, vector<64x32xf32>, vector<64x32xf32>, vector<64x32xf32>, vector<64x32xf32>, vector<64x32xf32>, vector<64x32xf32>, vector<64x32xf32> -> vector<64x288xf32>
    %140 = arith.truncf %139 : vector<64x288xf32> to vector<64x288xbf16>
    %c0_40 = arith.constant 0 : index
    %c0_41 = arith.constant 0 : index
    %141 = vector.load %arg5[%c0_40, %c0_41] : memref<288x64xbf16, #tpu.memory_space<vmem>>, vector<288x64xbf16>
    %cst_42 = arith.constant dense<0.000000e+00> : vector<64x64xf32>
    %142 = tpu.matmul %140, %141, %cst_42 {dimension_numbers = #tpu.dot_dimension_numbers<[1], [0], [0], [1], [0, 0, 1, 1], [], []>} : vector<64x288xbf16>, vector<288x64xbf16>, vector<64x64xf32> -> vector<64x64xf32>
    %c0_43 = arith.constant 0 : index
    %c0_44 = arith.constant 0 : index
    %143 = vector.load %arg6[%c0_43, %c0_44] : memref<1x64xf32, #tpu.memory_space<vmem>>, vector<1x64xf32>
    %144 = vector.broadcast %143 : vector<1x64xf32> to vector<64x64xf32>
    %145 = arith.addf %142, %144 : vector<64x64xf32>
    %cst_45 = arith.constant 0.000000e+00 : f32
    %146 = vector.broadcast %cst_45 : f32 to vector<64x64xf32>
    %147 = arith.maximumf %145, %146 : vector<64x64xf32>
    %c63_i32_46 = arith.constant 63 : i32
    %148 = tpu.dynamic_rotate %147 by %c63_i32_46 dim 0 : vector<64x64xf32>, i32 -> vector<64x64xf32>
    %149 = arith.maximumf %147, %148 : vector<64x64xf32>
    %c56_i32_47 = arith.constant 56 : i32
    %150 = tpu.dynamic_rotate %147 by %c56_i32_47 dim 0 : vector<64x64xf32>, i32 -> vector<64x64xf32>
    %c55_i32_48 = arith.constant 55 : i32
    %151 = tpu.dynamic_rotate %147 by %c55_i32_48 dim 0 : vector<64x64xf32>, i32 -> vector<64x64xf32>
    %152 = arith.maximumf %150, %151 : vector<64x64xf32>
    %153 = arith.maximumf %149, %152 : vector<64x64xf32>
    %154 = arith.truncf %153 : vector<64x64xf32> to vector<64x64xbf16>
    %c0_49 = arith.constant 0 : index
    %c0_50 = arith.constant 0 : index
    %155 = vector.load %arg7[%c0_49, %c0_50] : memref<16x64xbf16, #tpu.memory_space<vmem>>, vector<16x64xbf16>
    %cst_51 = arith.constant dense<0.000000e+00> : vector<16x64xf32>
    %156 = tpu.matmul %155, %154, %cst_51 {dimension_numbers = #tpu.dot_dimension_numbers<[1], [0], [0], [1], [0, 0, 1, 1], [], []>} : vector<16x64xbf16>, vector<64x64xbf16>, vector<16x64xf32> -> vector<16x64xf32>
    %157 = tpu.iota {dimensions = array<i32: 0>} : vector<16x1xi32>
    %c3_i32_52 = arith.constant 3 : i32
    %158 = vector.broadcast %c3_i32_52 : i32 to vector<16x1xi32>
    %159 = arith.andi %157, %158 : vector<16x1xi32>
    %c2_i32 = arith.constant 2 : i32
    %160 = vector.broadcast %c2_i32 : i32 to vector<16x1xi32>
    %161 = arith.shrsi %157, %160 : vector<16x1xi32>
    %c3_i32_53 = arith.constant 3 : i32
    %162 = vector.broadcast %c3_i32_53 : i32 to vector<16x1xi32>
    %163 = arith.andi %161, %162 : vector<16x1xi32>
    %c1_i32_54 = arith.constant 1 : i32
    %164 = vector.broadcast %c1_i32_54 : i32 to vector<16x1xi32>
    %165 = arith.cmpi sge, %159, %164 : vector<16x1xi32>
    %c2_i32_55 = arith.constant 2 : i32
    %166 = vector.broadcast %c2_i32_55 : i32 to vector<16x1xi32>
    %167 = arith.cmpi sle, %159, %166 : vector<16x1xi32>
    %c1_i32_56 = arith.constant 1 : i32
    %168 = vector.broadcast %c1_i32_56 : i32 to vector<16x1xi32>
    %169 = arith.cmpi sge, %163, %168 : vector<16x1xi32>
    %c2_i32_57 = arith.constant 2 : i32
    %170 = vector.broadcast %c2_i32_57 : i32 to vector<16x1xi32>
    %171 = arith.cmpi sle, %163, %170 : vector<16x1xi32>
    %c5_i32 = arith.constant 5 : i32
    %172 = tpu.dynamic_rotate %156 by %c5_i32 dim 0 : vector<16x64xf32>, i32 -> vector<16x64xf32>
    %173 = arith.andi %169, %165 : vector<16x1xi1>
    %cst_58 = arith.constant 0.000000e+00 : f32
    %174 = vector.shape_cast %173 : vector<16x1xi1> to vector<16x1xi1>
    %175 = vector.broadcast %174 : vector<16x1xi1> to vector<16x64xi1>
    %176 = vector.broadcast %cst_58 : f32 to vector<16x64xf32>
    %177 = arith.select %175, %172, %176 : vector<16x64xi1>, vector<16x64xf32>
    %c4_i32_59 = arith.constant 4 : i32
    %178 = tpu.dynamic_rotate %156 by %c4_i32_59 dim 0 : vector<16x64xf32>, i32 -> vector<16x64xf32>
    %cst_60 = arith.constant 0.000000e+00 : f32
    %179 = vector.shape_cast %169 : vector<16x1xi1> to vector<16x1xi1>
    %180 = vector.broadcast %179 : vector<16x1xi1> to vector<16x64xi1>
    %181 = vector.broadcast %cst_60 : f32 to vector<16x64xf32>
    %182 = arith.select %180, %178, %181 : vector<16x64xi1>, vector<16x64xf32>
    %c3_i32_61 = arith.constant 3 : i32
    %183 = tpu.dynamic_rotate %156 by %c3_i32_61 dim 0 : vector<16x64xf32>, i32 -> vector<16x64xf32>
    %184 = arith.andi %169, %167 : vector<16x1xi1>
    %cst_62 = arith.constant 0.000000e+00 : f32
    %185 = vector.shape_cast %184 : vector<16x1xi1> to vector<16x1xi1>
    %186 = vector.broadcast %185 : vector<16x1xi1> to vector<16x64xi1>
    %187 = vector.broadcast %cst_62 : f32 to vector<16x64xf32>
    %188 = arith.select %186, %183, %187 : vector<16x64xi1>, vector<16x64xf32>
    %c1_i32_63 = arith.constant 1 : i32
    %189 = tpu.dynamic_rotate %156 by %c1_i32_63 dim 0 : vector<16x64xf32>, i32 -> vector<16x64xf32>
    %cst_64 = arith.constant 0.000000e+00 : f32
    %190 = vector.shape_cast %165 : vector<16x1xi1> to vector<16x1xi1>
    %191 = vector.broadcast %190 : vector<16x1xi1> to vector<16x64xi1>
    %192 = vector.broadcast %cst_64 : f32 to vector<16x64xf32>
    %193 = arith.select %191, %189, %192 : vector<16x64xi1>, vector<16x64xf32>
    %c15_i32_65 = arith.constant 15 : i32
    %194 = tpu.dynamic_rotate %156 by %c15_i32_65 dim 0 : vector<16x64xf32>, i32 -> vector<16x64xf32>
    %cst_66 = arith.constant 0.000000e+00 : f32
    %195 = vector.shape_cast %167 : vector<16x1xi1> to vector<16x1xi1>
    %196 = vector.broadcast %195 : vector<16x1xi1> to vector<16x64xi1>
    %197 = vector.broadcast %cst_66 : f32 to vector<16x64xf32>
    %198 = arith.select %196, %194, %197 : vector<16x64xi1>, vector<16x64xf32>
    %c13_i32 = arith.constant 13 : i32
    %199 = tpu.dynamic_rotate %156 by %c13_i32 dim 0 : vector<16x64xf32>, i32 -> vector<16x64xf32>
    %200 = arith.andi %171, %165 : vector<16x1xi1>
    %cst_67 = arith.constant 0.000000e+00 : f32
    %201 = vector.shape_cast %200 : vector<16x1xi1> to vector<16x1xi1>
    %202 = vector.broadcast %201 : vector<16x1xi1> to vector<16x64xi1>
    %203 = vector.broadcast %cst_67 : f32 to vector<16x64xf32>
    %204 = arith.select %202, %199, %203 : vector<16x64xi1>, vector<16x64xf32>
    %c12_i32 = arith.constant 12 : i32
    %205 = tpu.dynamic_rotate %156 by %c12_i32 dim 0 : vector<16x64xf32>, i32 -> vector<16x64xf32>
    %cst_68 = arith.constant 0.000000e+00 : f32
    %206 = vector.shape_cast %171 : vector<16x1xi1> to vector<16x1xi1>
    %207 = vector.broadcast %206 : vector<16x1xi1> to vector<16x64xi1>
    %208 = vector.broadcast %cst_68 : f32 to vector<16x64xf32>
    %209 = arith.select %207, %205, %208 : vector<16x64xi1>, vector<16x64xf32>
    %c11_i32 = arith.constant 11 : i32
    %210 = tpu.dynamic_rotate %156 by %c11_i32 dim 0 : vector<16x64xf32>, i32 -> vector<16x64xf32>
    %211 = arith.andi %171, %167 : vector<16x1xi1>
    %cst_69 = arith.constant 0.000000e+00 : f32
    %212 = vector.shape_cast %211 : vector<16x1xi1> to vector<16x1xi1>
    %213 = vector.broadcast %212 : vector<16x1xi1> to vector<16x64xi1>
    %214 = vector.broadcast %cst_69 : f32 to vector<16x64xf32>
    %215 = arith.select %213, %210, %214 : vector<16x64xi1>, vector<16x64xf32>
    %216 = tpu.concatenate %177, %182, %188, %193, %156, %198, %204, %209, %215 in 1 : vector<16x64xf32>, vector<16x64xf32>, vector<16x64xf32>, vector<16x64xf32>, vector<16x64xf32>, vector<16x64xf32>, vector<16x64xf32>, vector<16x64xf32>, vector<16x64xf32> -> vector<16x576xf32>
    %217 = arith.truncf %216 : vector<16x576xf32> to vector<16x576xbf16>
    %c0_70 = arith.constant 0 : index
    %c0_71 = arith.constant 0 : index
    %218 = vector.load %arg8[%c0_70, %c0_71] : memref<576x128xbf16, #tpu.memory_space<vmem>>, vector<576x128xbf16>
    %cst_72 = arith.constant dense<0.000000e+00> : vector<16x128xf32>
    %219 = tpu.matmul %217, %218, %cst_72 {dimension_numbers = #tpu.dot_dimension_numbers<[1], [0], [0], [1], [0, 0, 1, 1], [], []>} : vector<16x576xbf16>, vector<576x128xbf16>, vector<16x128xf32> -> vector<16x128xf32>
    %c0_73 = arith.constant 0 : index
    %c0_74 = arith.constant 0 : index
    %220 = vector.load %arg9[%c0_73, %c0_74] : memref<1x128xf32, #tpu.memory_space<vmem>>, vector<1x128xf32>
    %221 = vector.broadcast %220 : vector<1x128xf32> to vector<16x128xf32>
    %222 = arith.addf %219, %221 : vector<16x128xf32>
    %cst_75 = arith.constant 0.000000e+00 : f32
    %223 = vector.broadcast %cst_75 : f32 to vector<16x128xf32>
    %224 = arith.maximumf %222, %223 : vector<16x128xf32>
    %225 = vector.shape_cast %224 : vector<16x128xf32> to vector<1x16x128xf32>
    %cst_76 = arith.constant dense<0xFF800000> : vector<1x128xf32>
    %226 = vector.multi_reduction <maximumf>, %225, %cst_76 [1] : vector<1x16x128xf32> to vector<1x128xf32>
    %227 = arith.truncf %226 : vector<1x128xf32> to vector<1x128xbf16>
    %c0_77 = arith.constant 0 : index
    %c0_78 = arith.constant 0 : index
    %228 = vector.load %arg10[%c0_77, %c0_78] : memref<128x64xbf16, #tpu.memory_space<vmem>>, vector<128x64xbf16>
    %cst_79 = arith.constant dense<0.000000e+00> : vector<1x64xf32>
    %229 = tpu.matmul %227, %228, %cst_79 {dimension_numbers = #tpu.dot_dimension_numbers<[1], [0], [0], [1], [0, 0, 1, 1], [], []>} : vector<1x128xbf16>, vector<128x64xbf16>, vector<1x64xf32> -> vector<1x64xf32>
    %c0_80 = arith.constant 0 : index
    %c0_81 = arith.constant 0 : index
    %230 = vector.load %arg11[%c0_80, %c0_81] : memref<1x64xf32, #tpu.memory_space<vmem>>, vector<1x64xf32>
    %231 = arith.addf %229, %230 : vector<1x64xf32>
    %cst_82 = arith.constant 0.000000e+00 : f32
    %232 = vector.broadcast %cst_82 : f32 to vector<1x64xf32>
    %233 = arith.maximumf %231, %232 : vector<1x64xf32>
    %234 = arith.truncf %233 : vector<1x64xf32> to vector<1x64xbf16>
    %c0_83 = arith.constant 0 : index
    %c0_84 = arith.constant 0 : index
    %235 = vector.load %arg12[%c0_83, %c0_84] : memref<64x128xbf16, #tpu.memory_space<vmem>>, vector<64x128xbf16>
    %cst_85 = arith.constant dense<0.000000e+00> : vector<1x128xf32>
    %236 = tpu.matmul %234, %235, %cst_85 {dimension_numbers = #tpu.dot_dimension_numbers<[1], [0], [0], [1], [0, 0, 1, 1], [], []>} : vector<1x64xbf16>, vector<64x128xbf16>, vector<1x128xf32> -> vector<1x128xf32>
    %c0_86 = arith.constant 0 : index
    %c0_87 = arith.constant 0 : index
    %237 = vector.load %arg13[%c0_86, %c0_87] : memref<1x128xf32, #tpu.memory_space<vmem>>, vector<1x128xf32>
    %238 = arith.addf %236, %237 : vector<1x128xf32>
    %c0_88 = arith.constant 0 : index
    %c0_89 = arith.constant 0 : index
    %c0_90 = arith.constant 0 : index
    %239 = vector.load %arg14[%c0_88, %c0_89, %c0_90] : memref<1x1x128xf32, #tpu.memory_space<vmem>>, vector<1x1x128xf32>
    %240 = vector.shape_cast %239 : vector<1x1x128xf32> to vector<1x128xf32>
    %241 = vector.shape_cast %238 : vector<1x128xf32> to vector<1x1x128xf32>
    tpu.vector_store %arg14[%c0_88, %c0_89, %c0_90], %241 {strides = array<i32>} : memref<1x1x128xf32, #tpu.memory_space<vmem>>, vector<1x1x128xf32>,
    return
  }
  func.func @transform_0(%arg0: i32) -> (i32, i32, i32) {
    %c0_i32 = arith.constant 0 : i32
    %c0_i32_0 = arith.constant 0 : i32
    %c0_i32_1 = arith.constant 0 : i32
    return %arg0, %c0_i32, %c0_i32_0 : i32, i32, i32
  }
  func.func @transform_1(%arg0: i32) -> (i32, i32) {
    %c0_i32 = arith.constant 0 : i32
    %c0_i32_0 = arith.constant 0 : i32
    %c0_i32_1 = arith.constant 0 : i32
    return %c0_i32, %c0_i32_0 : i32, i32
  }
  func.func @transform_2(%arg0: i32) -> (i32, i32) {
    %c0_i32 = arith.constant 0 : i32
    %c0_i32_0 = arith.constant 0 : i32
    %c0_i32_1 = arith.constant 0 : i32
    return %c0_i32, %c0_i32_0 : i32, i32
  }
  func.func @transform_3(%arg0: i32) -> (i32, i32) {
    %c0_i32 = arith.constant 0 : i32
    %c0_i32_0 = arith.constant 0 : i32
    %c0_i32_1 = arith.constant 0 : i32
    return %c0_i32, %c0_i32_0 : i32, i32
  }
  func.func @transform_4(%arg0: i32) -> (i32, i32) {
    %c0_i32 = arith.constant 0 : i32
    %c0_i32_0 = arith.constant 0 : i32
    %c0_i32_1 = arith.constant 0 : i32
    return %c0_i32, %c0_i32_0 : i32, i32
  }
  func.func @transform_5(%arg0: i32) -> (i32, i32) {
    %c0_i32 = arith.constant 0 : i32
    %c0_i32_0 = arith.constant 0 : i32
    %c0_i32_1 = arith.constant 0 : i32
    return %c0_i32, %c0_i32_0 : i32, i32
  }
  func.func @transform_6(%arg0: i32) -> (i32, i32) {
    %c0_i32 = arith.constant 0 : i32
    %c0_i32_0 = arith.constant 0 : i32
    %c0_i32_1 = arith.constant 0 : i32
    return %c0_i32, %c0_i32_0 : i32, i32
  }
  func.func @transform_7(%arg0: i32) -> (i32, i32) {
    %c0_i32 = arith.constant 0 : i32
    %c0_i32_0 = arith.constant 0 : i32
    %c0_i32_1 = arith.constant 0 : i32
    return %c0_i32, %c0_i32_0 : i32, i32
  }
  func.func @transform_8(%arg0: i32) -> (i32, i32) {
    %c0_i32 = arith.constant 0 : i32
    %c0_i32_0 = arith.constant 0 : i32
    %c0_i32_1 = arith.constant 0 : i32
    return %c0_i32, %c0_i32_0 : i32, i32
  }
  func.func @transform_9(%arg0: i32) -> (i32, i32) {
    %c0_i32 = arith.constant 0 : i32
    %c0_i32_0 = arith.constant 0 : i32
    %c0_i32_1 = arith.constant 0 : i32
    return %c0_i32, %c0_i32_0 : i32, i32
  }
  func.func @transform_10(%arg0: i32) -> (i32, i32) {
    %c0_i32 = arith.constant 0 : i32
    %c0_i32_0 = arith.constant 0 : i32
    %c0_i32_1 = arith.constant 0 : i32
    return %c0_i32, %c0_i32_0 : i32, i32
  }
  func.func @transform_11(%arg0: i32) -> (i32, i32) {
    %c0_i32 = arith.constant 0 : i32
    %c0_i32_0 = arith.constant 0 : i32
    %c0_i32_1 = arith.constant 0 : i32
    return %c0_i32, %c0_i32_0 : i32, i32
  }
  func.func @transform_12(%arg0: i32) -> (i32, i32) {
    %c0_i32 = arith.constant 0 : i32
    %c0_i32_0 = arith.constant 0 : i32
    %c0_i32_1 = arith.constant 0 : i32
    return %c0_i32, %c0_i32_0 : i32, i32
  }
  func.func @transform_13(%arg0: i32) -> (i32, i32, i32) {
    %c0_i32 = arith.constant 0 : i32
    %c0_i32_0 = arith.constant 0 : i32
    %c0_i32_1 = arith.constant 0 : i32
    return %arg0, %c0_i32, %c0_i32_0 : i32, i32, i32
  }
}

</mosaic_0001>

<llo_original>
// kernel: simplecnn_forward.1
$region0: #{simplecnn_forward.1}
  #allocation0 [shape = 'u32[]', space=smem, size = 0x4, offset = 0x4, fixed_abs, tag = 'smem constant byte address 0x4 - core index']
  #allocation1 [shape = 'u32[72,128]{1,0:T(1,128)}', space=vmem, size = 0x9000, scoped, tag = 'internal scratch']
  %s0 = inlined_call_operand.vmem [shape: bf16[2,256,4], index: 0, kind: input, shape index: {}]
  %s1 = inlined_call_operand.vmem [shape: bf16[36,32], index: 1, kind: input, shape index: {}]
  %s2 = inlined_call_operand.vmem [shape: f32[1,32], index: 2, kind: input, shape index: {}]
  %s3 = inlined_call_operand.vmem [shape: bf16[64,256], index: 3, kind: input, shape index: {}]
  %s4 = inlined_call_operand.vmem [shape: bf16[288,64], index: 4, kind: input, shape index: {}]
  %s5 = inlined_call_operand.vmem [shape: f32[1,64], index: 5, kind: input, shape index: {}]
  %s6 = inlined_call_operand.vmem [shape: bf16[16,64], index: 6, kind: input, shape index: {}]
  %s7 = inlined_call_operand.vmem [shape: bf16[576,128], index: 7, kind: input, shape index: {}]
  %s8 = inlined_call_operand.vmem [shape: f32[1,128], index: 8, kind: input, shape index: {}]
  %s9 = inlined_call_operand.vmem [shape: bf16[128,64], index: 9, kind: input, shape index: {}]
  %s10 = inlined_call_operand.vmem [shape: f32[1,64], index: 10, kind: input, shape index: {}]
  %s11 = inlined_call_operand.vmem [shape: bf16[64,128], index: 11, kind: input, shape index: {}]
  %s12 = inlined_call_operand.vmem [shape: f32[1,128], index: 12, kind: input, shape index: {}]
  %s13 = inlined_call_operand.hbm [shape: f32[2,1,128], index: 13, kind: output, shape index: {}]
  %s14 = sld [smem:[#allocation0]]
  $region85: #{simplecnn_forward.1} parent=0
    _
  %s16 = ssub.s32 1, %s14
  %s17 = scalar_select 0, %s16, %s14
  $region1: #{simplecnn_forward.1} parent=0
    #allocation2 [shape = 'u8[1024]{0}', space=vmem, size = 0x400, scoped, tag = 'output window, operand 0']
    #allocation3 [shape = 's32[2]{0}', space=sflag, size = 0x8, scoped, tag = 'scoped memory for simplecnn_forward.1']
    %18 = vsyncpa [#allocation3], 0
    %s19 = scalar_lea.sflag [#allocation3], 1
    %20 = vsyncpa %s19, 0
    loop: start=0, step=1, limit=4
    $region2: #{simplecnn_forward.1} parent=1 // loop_pre_header
      _
    $region3: #{simplecnn_forward.1} parent=1 // loop_header
      %s22 = sphi 0, %s26
      %p23 = scmp.ge.s32.totalorder %s22, 4
      %s32 = sphi 0, %s34
      %s35 = sphi 0, %s32
      %s36 = sphi 0, %s35
      %s52 = sphi 0, %s36
      %s56 = sphi 0, %s56
      %s58 = sphi 0, %s56
      %s59 = sphi 0, %s58
      %s73 = sphi 0, %s59
      %s77 = sphi 0, %s77
      %s79 = sphi 0, %s77
      %s80 = sphi 0, %s79
      %s94 = sphi 0, %s80
      %s98 = sphi 0, %s98
      %s100 = sphi 0, %s98
      %s101 = sphi 0, %s100
      %s115 = sphi 0, %s101
      %s119 = sphi 0, %s119
      %s121 = sphi 0, %s119
      %s122 = sphi 0, %s121
      %s136 = sphi 0, %s122
      %s140 = sphi 0, %s140
      %s142 = sphi 0, %s140
      %s143 = sphi 0, %s142
      %s157 = sphi 0, %s143
      %s161 = sphi 0, %s161
      %s163 = sphi 0, %s161
      %s164 = sphi 0, %s163
      %s178 = sphi 0, %s164
      %s182 = sphi 0, %s182
      %s184 = sphi 0, %s182
      %s185 = sphi 0, %s184
      %s199 = sphi 0, %s185
      %s203 = sphi 0, %s203
      %s205 = sphi 0, %s203
      %s206 = sphi 0, %s205
      %s220 = sphi 0, %s206
      %s224 = sphi 0, %s224
      %s226 = sphi 0, %s224
      %s227 = sphi 0, %s226
      %s241 = sphi 0, %s227
      %s245 = sphi 0, %s245
      %s247 = sphi 0, %s245
      %s248 = sphi 0, %s247
      %s262 = sphi 0, %s248
      %s266 = sphi 0, %s266
      %s268 = sphi 0, %s266
      %s269 = sphi 0, %s268
      %s283 = sphi 0, %s269
      %s287 = sphi 0, %s287
      %s289 = sphi 0, %s287
      %s290 = sphi 0, %s289
      %s304 = sphi 0, %s290
      %s310 = sphi 0, %s312
      %s313 = sphi 0, %s310
      %s314 = sphi 0, %s313
      %s330 = sphi 0, %s314
    $region4: #{simplecnn_forward.1} parent=1 // loop_header_branch
      %25 = sbr.rel (%p23) target = $region8
    $region5: #{simplecnn_forward.1} parent=1 // loop_body
      %s27 = ssub.s32 %s22, 1
      %s28 = ssub.s32 %s22, 2
      %s29 = sadd.s32 %s22, 1
      %s30 = ssub.s32 %s22, %s29
      %p31 = scmp.eq.s32.totalorder %s30, 0
      %s33 = sadd.s32 %s32, 1
      %s34 = scalar_select %p31, %s32, %s33
      %p37 = pneg %p31
      %p38 = scmp.eq.s32.totalorder %s22, 1
      %p39 = por %p37, %p38
      %p40 = scmp.ne.s32.totalorder %s32, %s35
      %p41 = scmp.eq.s32.totalorder %s22, 0
      %p42 = por %p40, %p41
      %p43 = scmp.ne.s32.totalorder %s32, %s35
      %p44 = scmp.eq.s32.totalorder %s27, 1
      %p45 = por %p43, %p44
      %p46 = scmp.ne.s32.totalorder %s35, %s36
      %p47 = scmp.eq.s32.totalorder %s27, 0
      %p48 = por %p46, %p47
      %p49 = scmp.ne.s32.totalorder %s35, %s36
      %p50 = scmp.eq.s32.totalorder %s28, 1
      %p51 = por %p49, %p50
      %p53 = scmp.ne.s32.totalorder %s36, %s52
      %p54 = scmp.eq.s32.totalorder %s28, 0
      %p55 = por %p53, %p54
      %s57 = sadd.s32 %s56, 1
      %p60 = scmp.eq.s32.totalorder %s22, 1
      %p61 = scmp.ne.s32.totalorder %s56, %s58
      %p62 = scmp.eq.s32.totalorder %s22, 0
      %p63 = por %p61, %p62
      %p64 = scmp.ne.s32.totalorder %s56, %s58
      %p65 = scmp.eq.s32.totalorder %s27, 1
      %p66 = por %p64, %p65
      %p67 = scmp.ne.s32.totalorder %s58, %s59
      %p68 = scmp.eq.s32.totalorder %s27, 0
      %p69 = por %p67, %p68
      %p70 = scmp.ne.s32.totalorder %s58, %s59
      %p71 = scmp.eq.s32.totalorder %s28, 1
      %p72 = por %p70, %p71
      %p74 = scmp.ne.s32.totalorder %s59, %s73
      %p75 = scmp.eq.s32.totalorder %s28, 0
      %p76 = por %p74, %p75
      %s78 = sadd.s32 %s77, 1
      %p81 = scmp.eq.s32.totalorder %s22, 1
      %p82 = scmp.ne.s32.totalorder %s77, %s79
      %p83 = scmp.eq.s32.totalorder %s22, 0
      %p84 = por %p82, %p83
      %p85 = scmp.ne.s32.totalorder %s77, %s79
      %p86 = scmp.eq.s32.totalorder %s27, 1
      %p87 = por %p85, %p86
      %p88 = scmp.ne.s32.totalorder %s79, %s80
      %p89 = scmp.eq.s32.totalorder %s27, 0
      %p90 = por %p88, %p89
      %p91 = scmp.ne.s32.totalorder %s79, %s80
      %p92 = scmp.eq.s32.totalorder %s28, 1
      %p93 = por %p91, %p92
      %p95 = scmp.ne.s32.totalorder %s80, %s94
      %p96 = scmp.eq.s32.totalorder %s28, 0
      %p97 = por %p95, %p96
      %s99 = sadd.s32 %s98, 1
      %p102 = scmp.eq.s32.totalorder %s22, 1
      %p103 = scmp.ne.s32.totalorder %s98, %s100
      %p104 = scmp.eq.s32.totalorder %s22, 0
      %p105 = por %p103, %p104
      %p106 = scmp.ne.s32.totalorder %s98, %s100
      %p107 = scmp.eq.s32.totalorder %s27, 1
      %p108 = por %p106, %p107
      %p109 = scmp.ne.s32.totalorder %s100, %s101
      %p110 = scmp.eq.s32.totalorder %s27, 0
      %p111 = por %p109, %p110
      %p112 = scmp.ne.s32.totalorder %s100, %s101
      %p113 = scmp.eq.s32.totalorder %s28, 1
      %p114 = por %p112, %p113
      %p116 = scmp.ne.s32.totalorder %s101, %s115
      %p117 = scmp.eq.s32.totalorder %s28, 0
      %p118 = por %p116, %p117
      %s120 = sadd.s32 %s119, 1
      %p123 = scmp.eq.s32.totalorder %s22, 1
      %p124 = scmp.ne.s32.totalorder %s119, %s121
      %p125 = scmp.eq.s32.totalorder %s22, 0
      %p126 = por %p124, %p125
      %p127 = scmp.ne.s32.totalorder %s119, %s121
      %p128 = scmp.eq.s32.totalorder %s27, 1
      %p129 = por %p127, %p128
      %p130 = scmp.ne.s32.totalorder %s121, %s122
      %p131 = scmp.eq.s32.totalorder %s27, 0
      %p132 = por %p130, %p131
      %p133 = scmp.ne.s32.totalorder %s121, %s122
      %p134 = scmp.eq.s32.totalorder %s28, 1
      %p135 = por %p133, %p134
      %p137 = scmp.ne.s32.totalorder %s122, %s136
      %p138 = scmp.eq.s32.totalorder %s28, 0
      %p139 = por %p137, %p138
      %s141 = sadd.s32 %s140, 1
      %p144 = scmp.eq.s32.totalorder %s22, 1
      %p145 = scmp.ne.s32.totalorder %s140, %s142
      %p146 = scmp.eq.s32.totalorder %s22, 0
      %p147 = por %p145, %p146
      %p148 = scmp.ne.s32.totalorder %s140, %s142
      %p149 = scmp.eq.s32.totalorder %s27, 1
      %p150 = por %p148, %p149
      %p151 = scmp.ne.s32.totalorder %s142, %s143
      %p152 = scmp.eq.s32.totalorder %s27, 0
      %p153 = por %p151, %p152
      %p154 = scmp.ne.s32.totalorder %s142, %s143
      %p155 = scmp.eq.s32.totalorder %s28, 1
      %p156 = por %p154, %p155
      %p158 = scmp.ne.s32.totalorder %s143, %s157
      %p159 = scmp.eq.s32.totalorder %s28, 0
      %p160 = por %p158, %p159
      %s162 = sadd.s32 %s161, 1
      %p165 = scmp.eq.s32.totalorder %s22, 1
      %p166 = scmp.ne.s32.totalorder %s161, %s163
      %p167 = scmp.eq.s32.totalorder %s22, 0
      %p168 = por %p166, %p167
      %p169 = scmp.ne.s32.totalorder %s161, %s163
      %p170 = scmp.eq.s32.totalorder %s27, 1
      %p171 = por %p169, %p170
      %p172 = scmp.ne.s32.totalorder %s163, %s164
      %p173 = scmp.eq.s32.totalorder %s27, 0
      %p174 = por %p172, %p173
      %p175 = scmp.ne.s32.totalorder %s163, %s164
      %p176 = scmp.eq.s32.totalorder %s28, 1
      %p177 = por %p175, %p176
      %p179 = scmp.ne.s32.totalorder %s164, %s178
      %p180 = scmp.eq.s32.totalorder %s28, 0
      %p181 = por %p179, %p180
      %s183 = sadd.s32 %s182, 1
      %p186 = scmp.eq.s32.totalorder %s22, 1
      %p187 = scmp.ne.s32.totalorder %s182, %s184
      %p188 = scmp.eq.s32.totalorder %s22, 0
      %p189 = por %p187, %p188
      %p190 = scmp.ne.s32.totalorder %s182, %s184
      %p191 = scmp.eq.s32.totalorder %s27, 1
      %p192 = por %p190, %p191
      %p193 = scmp.ne.s32.totalorder %s184, %s185
      %p194 = scmp.eq.s32.totalorder %s27, 0
      %p195 = por %p193, %p194
      %p196 = scmp.ne.s32.totalorder %s184, %s185
      %p197 = scmp.eq.s32.totalorder %s28, 1
      %p198 = por %p196, %p197
      %p200 = scmp.ne.s32.totalorder %s185, %s199
      %p201 = scmp.eq.s32.totalorder %s28, 0
      %p202 = por %p200, %p201
      %s204 = sadd.s32 %s203, 1
      %p207 = scmp.eq.s32.totalorder %s22, 1
      %p208 = scmp.ne.s32.totalorder %s203, %s205
      %p209 = scmp.eq.s32.totalorder %s22, 0
      %p210 = por %p208, %p209
      %p211 = scmp.ne.s32.totalorder %s203, %s205
      %p212 = scmp.eq.s32.totalorder %s27, 1
      %p213 = por %p211, %p212
      %p214 = scmp.ne.s32.totalorder %s205, %s206
      %p215 = scmp.eq.s32.totalorder %s27, 0
      %p216 = por %p214, %p215
      %p217 = scmp.ne.s32.totalorder %s205, %s206
      %p218 = scmp.eq.s32.totalorder %s28, 1
      %p219 = por %p217, %p218
      %p221 = scmp.ne.s32.totalorder %s206, %s220
      %p222 = scmp.eq.s32.totalorder %s28, 0
      %p223 = por %p221, %p222
      %s225 = sadd.s32 %s224, 1
      %p228 = scmp.eq.s32.totalorder %s22, 1
      %p229 = scmp.ne.s32.totalorder %s224, %s226
      %p230 = scmp.eq.s32.totalorder %s22, 0
      %p231 = por %p229, %p230
      %p232 = scmp.ne.s32.totalorder %s224, %s226
      %p233 = scmp.eq.s32.totalorder %s27, 1
      %p234 = por %p232, %p233
      %p235 = scmp.ne.s32.totalorder %s226, %s227
      %p236 = scmp.eq.s32.totalorder %s27, 0
      %p237 = por %p235, %p236
      %p238 = scmp.ne.s32.totalorder %s226, %s227
      %p239 = scmp.eq.s32.totalorder %s28, 1
      %p240 = por %p238, %p239
      %p242 = scmp.ne.s32.totalorder %s227, %s241
      %p243 = scmp.eq.s32.totalorder %s28, 0
      %p244 = por %p242, %p243
      %s246 = sadd.s32 %s245, 1
      %p249 = scmp.eq.s32.totalorder %s22, 1
      %p250 = scmp.ne.s32.totalorder %s245, %s247
      %p251 = scmp.eq.s32.totalorder %s22, 0
      %p252 = por %p250, %p251
      %p253 = scmp.ne.s32.totalorder %s245, %s247
      %p254 = scmp.eq.s32.totalorder %s27, 1
      %p255 = por %p253, %p254
      %p256 = scmp.ne.s32.totalorder %s247, %s248
      %p257 = scmp.eq.s32.totalorder %s27, 0
      %p258 = por %p256, %p257
      %p259 = scmp.ne.s32.totalorder %s247, %s248
      %p260 = scmp.eq.s32.totalorder %s28, 1
      %p261 = por %p259, %p260
      %p263 = scmp.ne.s32.totalorder %s248, %s262
      %p264 = scmp.eq.s32.totalorder %s28, 0
      %p265 = por %p263, %p264
      %s267 = sadd.s32 %s266, 1
      %p270 = scmp.eq.s32.totalorder %s22, 1
      %p271 = scmp.ne.s32.totalorder %s266, %s268
      %p272 = scmp.eq.s32.totalorder %s22, 0
      %p273 = por %p271, %p272
      %p274 = scmp.ne.s32.totalorder %s266, %s268
      %p275 = scmp.eq.s32.totalorder %s27, 1
      %p276 = por %p274, %p275
      %p277 = scmp.ne.s32.totalorder %s268, %s269
      %p278 = scmp.eq.s32.totalorder %s27, 0
      %p279 = por %p277, %p278
      %p280 = scmp.ne.s32.totalorder %s268, %s269
      %p281 = scmp.eq.s32.totalorder %s28, 1
      %p282 = por %p280, %p281
      %p284 = scmp.ne.s32.totalorder %s269, %s283
      %p285 = scmp.eq.s32.totalorder %s28, 0
      %p286 = por %p284, %p285
      %s288 = sadd.s32 %s287, 1
      %p291 = scmp.eq.s32.totalorder %s22, 1
      %p292 = scmp.ne.s32.totalorder %s287, %s289
      %p293 = scmp.eq.s32.totalorder %s22, 0
      %p294 = por %p292, %p293
      %p295 = scmp.ne.s32.totalorder %s287, %s289
      %p296 = scmp.eq.s32.totalorder %s27, 1
      %p297 = por %p295, %p296
      %p298 = scmp.ne.s32.totalorder %s289, %s290
      %p299 = scmp.eq.s32.totalorder %s27, 0
      %p300 = por %p298, %p299
      %p301 = scmp.ne.s32.totalorder %s289, %s290
      %p302 = scmp.eq.s32.totalorder %s28, 1
      %p303 = por %p301, %p302
      %p305 = scmp.ne.s32.totalorder %s290, %s304
      %p306 = scmp.eq.s32.totalorder %s28, 0
      %p307 = por %p305, %p306
      %s308 = ssub.s32 %s22, %s29
      %p309 = scmp.eq.s32.totalorder %s308, 0
      %s311 = sadd.s32 %s310, 1
      %s312 = scalar_select %p309, %s310, %s311
      %p315 = pneg %p309
      %p316 = scmp.eq.s32.totalorder %s22, 1
      %p317 = por %p315, %p316
      %p318 = scmp.ne.s32.totalorder %s310, %s313
      %p319 = scmp.eq.s32.totalorder %s22, 0
      %p320 = por %p318, %p319
      %p321 = scmp.ne.s32.totalorder %s310, %s313
      %p322 = scmp.eq.s32.totalorder %s27, 1
      %p323 = por %p321, %p322
      %p324 = scmp.ne.s32.totalorder %s313, %s314
      %p325 = scmp.eq.s32.totalorder %s27, 0
      %p326 = por %p324, %p325
      %p327 = scmp.ne.s32.totalorder %s313, %s314
      %p328 = scmp.eq.s32.totalorder %s28, 1
      %p329 = por %p327, %p328
      %p331 = scmp.ne.s32.totalorder %s314, %s330
      %p332 = scmp.eq.s32.totalorder %s28, 0
      %p333 = por %p331, %p332
      %p334 = scmp.le.s32.totalorder 1, %s22
      %p335 = scmp.lt.s32.totalorder %s22, 3
      %p336 = pnand %p334, %p335
      %p337 = pneg %p336
      // Predicated region
      $region9: #{simplecnn_forward.1} parent=5 // pred_check
        _
      $region10: #{simplecnn_forward.1} parent=5 // pred_check_branch
        %339 = sbr.rel (%p336) target = $region12
      $region11: #{simplecnn_forward.1} parent=5 // pred_region
        %s340 = ssub.s32 %s22, 1
        // Predicated region
        $region13: #{simplecnn_forward.1} parent=11 // pred_check
          %p341 = pneg %p69
        $region14: #{simplecnn_forward.1} parent=11 // pred_check_branch
          %343 = sbr.rel (%p341) target = $region16
        $region15: #{simplecnn_forward.1} parent=11 // pred_region
          _
        $region16: #{simplecnn_forward.1} parent=11 // pred_fallthru
          _
        // Predicated region
        $region17: #{simplecnn_forward.1} parent=11 // pred_check
          %p344 = pneg %p90
        $region18: #{simplecnn_forward.1} parent=11 // pred_check_branch
          %346 = sbr.rel (%p344) target = $region20
        $region19: #{simplecnn_forward.1} parent=11 // pred_region
          _
        $region20: #{simplecnn_forward.1} parent=11 // pred_fallthru
          _
        // Predicated region
        $region21: #{simplecnn_forward.1} parent=11 // pred_check
          %p347 = pneg %p111
        $region22: #{simplecnn_forward.1} parent=11 // pred_check_branch
          %349 = sbr.rel (%p347) target = $region24
        $region23: #{simplecnn_forward.1} parent=11 // pred_region
          _
        $region24: #{simplecnn_forward.1} parent=11 // pred_fallthru
          _
        // Predicated region
        $region25: #{simplecnn_forward.1} parent=11 // pred_check
          %p350 = pneg %p132
        $region26: #{simplecnn_forward.1} parent=11 // pred_check_branch
          %352 = sbr.rel (%p350) target = $region28
        $region27: #{simplecnn_forward.1} parent=11 // pred_region
          _
        $region28: #{simplecnn_forward.1} parent=11 // pred_fallthru
          _
        // Predicated region
        $region29: #{simplecnn_forward.1} parent=11 // pred_check
          %p353 = pneg %p153
        $region30: #{simplecnn_forward.1} parent=11 // pred_check_branch
          %355 = sbr.rel (%p353) target = $region32
        $region31: #{simplecnn_forward.1} parent=11 // pred_region
          _
        $region32: #{simplecnn_forward.1} parent=11 // pred_fallthru
          _
        // Predicated region
        $region33: #{simplecnn_forward.1} parent=11 // pred_check
          %p356 = pneg %p174
        $region34: #{simplecnn_forward.1} parent=11 // pred_check_branch
          %358 = sbr.rel (%p356) target = $region36
        $region35: #{simplecnn_forward.1} parent=11 // pred_region
          _
        $region36: #{simplecnn_forward.1} parent=11 // pred_fallthru
          _
        // Predicated region
        $region37: #{simplecnn_forward.1} parent=11 // pred_check
          %p359 = pneg %p195
        $region38: #{simplecnn_forward.1} parent=11 // pred_check_branch
          %361 = sbr.rel (%p359) target = $region40
        $region39: #{simplecnn_forward.1} parent=11 // pred_region
          _
        $region40: #{simplecnn_forward.1} parent=11 // pred_fallthru
          _
        // Predicated region
        $region41: #{simplecnn_forward.1} parent=11 // pred_check
          %p362 = pneg %p216
        $region42: #{simplecnn_forward.1} parent=11 // pred_check_branch
          %364 = sbr.rel (%p362) target = $region44
        $region43: #{simplecnn_forward.1} parent=11 // pred_region
          _
        $region44: #{simplecnn_forward.1} parent=11 // pred_fallthru
          _
        // Predicated region
        $region45: #{simplecnn_forward.1} parent=11 // pred_check
          %p365 = pneg %p237
        $region46: #{simplecnn_forward.1} parent=11 // pred_check_branch
          %367 = sbr.rel (%p365) target = $region48
        $region47: #{simplecnn_forward.1} parent=11 // pred_region
          _
        $region48: #{simplecnn_forward.1} parent=11 // pred_fallthru
          _
        // Predicated region
        $region49: #{simplecnn_forward.1} parent=11 // pred_check
          %p368 = pneg %p258
        $region50: #{simplecnn_forward.1} parent=11 // pred_check_branch
          %370 = sbr.rel (%p368) target = $region52
        $region51: #{simplecnn_forward.1} parent=11 // pred_region
          _
        $region52: #{simplecnn_forward.1} parent=11 // pred_fallthru
          _
        // Predicated region
        $region53: #{simplecnn_forward.1} parent=11 // pred_check
          %p371 = pneg %p279
        $region54: #{simplecnn_forward.1} parent=11 // pred_check_branch
          %373 = sbr.rel (%p371) target = $region56
        $region55: #{simplecnn_forward.1} parent=11 // pred_region
          _
        $region56: #{simplecnn_forward.1} parent=11 // pred_fallthru
          _
        // Predicated region
        $region57: #{simplecnn_forward.1} parent=11 // pred_check
          %p374 = pneg %p300
        $region58: #{simplecnn_forward.1} parent=11 // pred_check_branch
          %376 = sbr.rel (%p374) target = $region60
        $region59: #{simplecnn_forward.1} parent=11 // pred_region
          _
        $region60: #{simplecnn_forward.1} parent=11 // pred_fallthru
          _
      $region12: #{simplecnn_forward.1} parent=5 // pred_fallthru
        _
      %p377 = scmp.lt.s32.totalorder %s22, 2
      // Predicated region
      $region61: #{simplecnn_forward.1} parent=5 // pred_check
        %p378 = pneg %p377
      $region62: #{simplecnn_forward.1} parent=5 // pred_check_branch
        %380 = sbr.rel (%p378) target = $region64
      $region63: #{simplecnn_forward.1} parent=5 // pred_region
        // Predicated region
        $region65: #{simplecnn_forward.1} parent=63 // pred_check
          %p381 = pneg %p42
        $region66: #{simplecnn_forward.1} parent=63 // pred_check_branch
          %383 = sbr.rel (%p381) target = $region68
        $region67: #{simplecnn_forward.1} parent=63 // pred_region
          %p384 = scmp.lt.s32.totalorder %s22, 1
          %s385 = scalar_select %p384, %s22, 1
          %s386 = smul.addr %s385, 32
          %s387 = smul.addr %s386, 4
          %s388 = scalar_lea.vmem %s0, %s387
        $region68: #{simplecnn_forward.1} parent=63 // pred_fallthru
          _
      $region64: #{simplecnn_forward.1} parent=5 // pred_fallthru
        _
      %p389 = scmp.le.s32.totalorder 1, %s22
      %p390 = scmp.lt.s32.totalorder %s22, 3
      %p391 = pnand %p389, %p390
      %p392 = pneg %p391
      // Predicated region
      $region69: #{simplecnn_forward.1} parent=5 // pred_check
        _
      $region70: #{simplecnn_forward.1} parent=5 // pred_check_branch
        %394 = sbr.rel (%p391) target = $region72
      $region71: #{simplecnn_forward.1} parent=5 // pred_region
        %s395 = ssub.s32 %s22, 1
        %p396 = scmp.lt.s32.totalorder %s27, 1
        %s397 = scalar_select %p396, %s27, 1
        %s398 = smul.addr %s397, 32
        %s399 = smul.addr %s398, 4
        %s400 = scalar_lea.vmem %s0, %s399
        %p401 = pneg %p48
        %p402 = pneg %p45
        %p403 = pneg %p69
        %p404 = pneg %p66
        %p405 = pneg %p90
        %p406 = pneg %p87
        %p407 = pneg %p111
        %p408 = pneg %p108
        %p409 = pneg %p132
        %p410 = pneg %p129
        %p411 = pneg %p153
        %p412 = pneg %p150
        %p413 = pneg %p174
        %p414 = pneg %p171
        %p415 = pneg %p195
        %p416 = pneg %p192
        %p417 = pneg %p216
        %p418 = pneg %p213
        %p419 = pneg %p237
        %p420 = pneg %p234
        %p421 = pneg %p258
        %p422 = pneg %p255
        %p423 = pneg %p279
        %p424 = pneg %p276
        %p425 = pneg %p300
        %p426 = pneg %p297
        %p427 = pneg %p326
        %p428 = pneg %p323
        %s429 = sand.u32 %s313, 1
        %s430 = scalar_lea.sflag [#allocation3], %s429
        %s431 = sand.u32 %s313, 1
        %s432 = scalar_lea.vmem [#allocation2], %s431
        %p433 = scmp.lt.s32.totalorder %s27, 1
        %s434 = scalar_select %p433, %s27, 1
        %s435 = smul.addr %s434, 32
        %s436 = smul.addr %s435, 4
        %s437 = scalar_lea.vmem %s0, %s436
        %v439 = vld [vmem:[%s437] sm:$0xf]
        %v440 = vld [vmem:[%s437 + $0x4] sm:$0xf]
        %v441 = vld [vmem:[%s437 + $0x8] sm:$0xf]
        %v442 = vld [vmem:[%s437 + $0xc] sm:$0xf]
        %v443 = vld [vmem:[%s437 + $0x10] sm:$0xf]
        %v444 = vld [vmem:[%s437 + $0x14] sm:$0xf]
        %v445 = vld [vmem:[%s437 + $0x18] sm:$0xf]
        %v446 = vld [vmem:[%s437 + $0x1c] sm:$0xf]
        %v447 = vld [vmem:[%s437 + $0x20] sm:$0xf]
        %v448 = vld [vmem:[%s437 + $0x24] sm:$0xf]
        %v449 = vld [vmem:[%s437 + $0x28] sm:$0xf]
        %v450 = vld [vmem:[%s437 + $0x2c] sm:$0xf]
        %v451 = vld [vmem:[%s437 + $0x30] sm:$0xf]
        %v452 = vld [vmem:[%s437 + $0x34] sm:$0xf]
        %v453 = vld [vmem:[%s437 + $0x38] sm:$0xf]
        %v454 = vld [vmem:[%s437 + $0x3c] sm:$0xf]
        %v455 = vld [vmem:[%s437 + $0x40] sm:$0xf]
        %v456 = vld [vmem:[%s437 + $0x44] sm:$0xf]
        %v457 = vld [vmem:[%s437 + $0x48] sm:$0xf]
        %v458 = vld [vmem:[%s437 + $0x4c] sm:$0xf]
        %v459 = vld [vmem:[%s437 + $0x50] sm:$0xf]
        %v460 = vld [vmem:[%s437 + $0x54] sm:$0xf]
        %v461 = vld [vmem:[%s437 + $0x58] sm:$0xf]
        %v462 = vld [vmem:[%s437 + $0x5c] sm:$0xf]
        %v463 = vld [vmem:[%s437 + $0x60] sm:$0xf]
        %v464 = vld [vmem:[%s437 + $0x64] sm:$0xf]
        %v465 = vld [vmem:[%s437 + $0x68] sm:$0xf]
        %v466 = vld [vmem:[%s437 + $0x6c] sm:$0xf]
        %v467 = vld [vmem:[%s437 + $0x70] sm:$0xf]
        %v468 = vld [vmem:[%s437 + $0x74] sm:$0xf]
        %v469 = vld [vmem:[%s437 + $0x78] sm:$0xf]
        %v470 = vld [vmem:[%s437 + $0x7c] sm:$0xf]
        %v471 = vunpack.c.l.bf16 %v439
        %v472 = vunpack.c.l.bf16 %v440
        %v473 = vunpack.c.l.bf16 %v441
        %v474 = vunpack.c.l.bf16 %v442
        %v475 = vunpack.c.l.bf16 %v443
        %v476 = vunpack.c.l.bf16 %v444
        %v477 = vunpack.c.l.bf16 %v445
        %v478 = vunpack.c.l.bf16 %v446
        %v479 = vunpack.c.l.bf16 %v447
        %v480 = vunpack.c.l.bf16 %v448
        %v481 = vunpack.c.l.bf16 %v449
        %v482 = vunpack.c.l.bf16 %v450
        %v483 = vunpack.c.l.bf16 %v451
        %v484 = vunpack.c.l.bf16 %v452
        %v485 = vunpack.c.l.bf16 %v453
        %v486 = vunpack.c.l.bf16 %v454
        %v487 = vunpack.c.l.bf16 %v455
        %v488 = vunpack.c.l.bf16 %v456
        %v489 = vunpack.c.l.bf16 %v457
        %v490 = vunpack.c.l.bf16 %v458
        %v491 = vunpack.c.l.bf16 %v459
        %v492 = vunpack.c.l.bf16 %v460
        %v493 = vunpack.c.l.bf16 %v461
        %v494 = vunpack.c.l.bf16 %v462
        %v495 = vunpack.c.l.bf16 %v463
        %v496 = vunpack.c.l.bf16 %v464
        %v497 = vunpack.c.l.bf16 %v465
        %v498 = vunpack.c.l.bf16 %v466
        %v499 = vunpack.c.l.bf16 %v467
        %v500 = vunpack.c.l.bf16 %v468
        %v501 = vunpack.c.l.bf16 %v469
        %v502 = vunpack.c.l.bf16 %v470
        %v503 = vlaneseq
        %v504 = vshrl.u32 %v503, 7
        %v505 = vadd.s32 %v504, 8
        %v506 = vadd.s32 %v504, 16
        %v507 = vadd.s32 %v504, 24
        %v508 = vadd.s32 %v504, 32
        %v509 = vadd.s32 %v504, 40
        %v510 = vadd.s32 %v504, 48
        %v511 = vadd.s32 %v504, 56
        %v512 = vadd.s32 %v504, 64
        %v513 = vadd.s32 %v504, 72
        %v514 = vadd.s32 %v504, 80
        %v515 = vadd.s32 %v504, 88
        %v516 = vadd.s32 %v504, 96
        %v517 = vadd.s32 %v504, 104
        %v518 = vadd.s32 %v504, 112
        %v519 = vadd.s32 %v504, 120
        %v520 = vadd.s32 %v504, 128
        %v521 = vadd.s32 %v504, 136
        %v522 = vadd.s32 %v504, 144
        %v523 = vadd.s32 %v504, 152
        %v524 = vadd.s32 %v504, 160
        %v525 = vadd.s32 %v504, 168
        %v526 = vadd.s32 %v504, 176
        %v527 = vadd.s32 %v504, 184
        %v528 = vadd.s32 %v504, 192
        %v529 = vadd.s32 %v504, 200
        %v530 = vadd.s32 %v504, 208
        %v531 = vadd.s32 %v504, 216
        %v532 = vadd.s32 %v504, 224
        %v533 = vadd.s32 %v504, 232
        %v534 = vadd.s32 %v504, 240
        %v535 = vadd.s32 %v504, 248
        %v536 = vand.u32 %v504, 15
        %v537 = vand.u32 %v505, 15
        %v538 = vand.u32 %v506, 15
        %v539 = vand.u32 %v507, 15
        %v540 = vand.u32 %v508, 15
        %v541 = vand.u32 %v509, 15
        %v542 = vand.u32 %v510, 15
        %v543 = vand.u32 %v511, 15
        %v544 = vand.u32 %v512, 15
        %v545 = vand.u32 %v513, 15
        %v546 = vand.u32 %v514, 15
        %v547 = vand.u32 %v515, 15
        %v548 = vand.u32 %v516, 15
        %v549 = vand.u32 %v517, 15
        %v550 = vand.u32 %v518, 15
        %v551 = vand.u32 %v519, 15
        %v552 = vand.u32 %v520, 15
        %v553 = vand.u32 %v521, 15
        %v554 = vand.u32 %v522, 15
        %v555 = vand.u32 %v523, 15
        %v556 = vand.u32 %v524, 15
        %v557 = vand.u32 %v525, 15
        %v558 = vand.u32 %v526, 15
        %v559 = vand.u32 %v527, 15
        %v560 = vand.u32 %v528, 15
        %v561 = vand.u32 %v529, 15
        %v562 = vand.u32 %v530, 15
        %v563 = vand.u32 %v531, 15
        %v564 = vand.u32 %v532, 15
        %v565 = vand.u32 %v533, 15
        %v566 = vand.u32 %v534, 15
        %v567 = vand.u32 %v535, 15
        %v568 = vshra.s32 %v504, 4
        %v569 = vshra.s32 %v505, 4
        %v570 = vshra.s32 %v506, 4
        %v571 = vshra.s32 %v507, 4
        %v572 = vshra.s32 %v508, 4
        %v573 = vshra.s32 %v509, 4
        %v574 = vshra.s32 %v510, 4
        %v575 = vshra.s32 %v511, 4
        %v576 = vshra.s32 %v512, 4
        %v577 = vshra.s32 %v513, 4
        %v578 = vshra.s32 %v514, 4
        %v579 = vshra.s32 %v515, 4
        %v580 = vshra.s32 %v516, 4
        %v581 = vshra.s32 %v517, 4
        %v582 = vshra.s32 %v518, 4
        %v583 = vshra.s32 %v519, 4
        %v584 = vshra.s32 %v520, 4
        %v585 = vshra.s32 %v521, 4
        %v586 = vshra.s32 %v522, 4
        %v587 = vshra.s32 %v523, 4
        %v588 = vshra.s32 %v524, 4
        %v589 = vshra.s32 %v525, 4
        %v590 = vshra.s32 %v526, 4
        %v591 = vshra.s32 %v527, 4
        %v592 = vshra.s32 %v528, 4
        %v593 = vshra.s32 %v529, 4
        %v594 = vshra.s32 %v530, 4
        %v595 = vshra.s32 %v531, 4
        %v596 = vshra.s32 %v532, 4
        %v597 = vshra.s32 %v533, 4
        %v598 = vshra.s32 %v534, 4
        %v599 = vshra.s32 %v535, 4
        %v600 = vand.u32 %v568, 15
        %v601 = vand.u32 %v569, 15
        %v602 = vand.u32 %v570, 15
        %v603 = vand.u32 %v571, 15
        %v604 = vand.u32 %v572, 15
        %v605 = vand.u32 %v573, 15
        %v606 = vand.u32 %v574, 15
        %v607 = vand.u32 %v575, 15
        %v608 = vand.u32 %v576, 15
        %v609 = vand.u32 %v577, 15
        %v610 = vand.u32 %v578, 15
        %v611 = vand.u32 %v579, 15
        %v612 = vand.u32 %v580, 15
        %v613 = vand.u32 %v581, 15
        %v614 = vand.u32 %v582, 15
        %v615 = vand.u32 %v583, 15
        %v616 = vand.u32 %v584, 15
        %v617 = vand.u32 %v585, 15
        %v618 = vand.u32 %v586, 15
        %v619 = vand.u32 %v587, 15
        %v620 = vand.u32 %v588, 15
        %v621 = vand.u32 %v589, 15
        %v622 = vand.u32 %v590, 15
        %v623 = vand.u32 %v591, 15
        %v624 = vand.u32 %v592, 15
        %v625 = vand.u32 %v593, 15
        %v626 = vand.u32 %v594, 15
        %v627 = vand.u32 %v595, 15
        %v628 = vand.u32 %v596, 15
        %v629 = vand.u32 %v597, 15
        %v630 = vand.u32 %v598, 15
        %v631 = vand.u32 %v599, 15
        %vm632 = vcmp.ge.s32.totalorder %v536, 1
        %vm633 = vcmp.ge.s32.totalorder %v537, 1
        %vm634 = vcmp.ge.s32.totalorder %v538, 1
        %vm635 = vcmp.ge.s32.totalorder %v539, 1
        %vm636 = vcmp.ge.s32.totalorder %v540, 1
        %vm637 = vcmp.ge.s32.totalorder %v541, 1
        %vm638 = vcmp.ge.s32.totalorder %v542, 1
        %vm639 = vcmp.ge.s32.totalorder %v543, 1
        %vm640 = vcmp.ge.s32.totalorder %v544, 1
        %vm641 = vcmp.ge.s32.totalorder %v545, 1
        %vm642 = vcmp.ge.s32.totalorder %v546, 1
        %vm643 = vcmp.ge.s32.totalorder %v547, 1
        %vm644 = vcmp.ge.s32.totalorder %v548, 1
        %vm645 = vcmp.ge.s32.totalorder %v549, 1
        %vm646 = vcmp.ge.s32.totalorder %v550, 1
        %vm647 = vcmp.ge.s32.totalorder %v551, 1
        %vm648 = vcmp.ge.s32.totalorder %v552, 1
        %vm649 = vcmp.ge.s32.totalorder %v553, 1
        %vm650 = vcmp.ge.s32.totalorder %v554, 1
        %vm651 = vcmp.ge.s32.totalorder %v555, 1
        %vm652 = vcmp.ge.s32.totalorder %v556, 1
        %vm653 = vcmp.ge.s32.totalorder %v557, 1
        %vm654 = vcmp.ge.s32.totalorder %v558, 1
        %vm655 = vcmp.ge.s32.totalorder %v559, 1
        %vm656 = vcmp.ge.s32.totalorder %v560, 1
        %vm657 = vcmp.ge.s32.totalorder %v561, 1
        %vm658 = vcmp.ge.s32.totalorder %v562, 1
        %vm659 = vcmp.ge.s32.totalorder %v563, 1
        %vm660 = vcmp.ge.s32.totalorder %v564, 1
        %vm661 = vcmp.ge.s32.totalorder %v565, 1
        %vm662 = vcmp.ge.s32.totalorder %v566, 1
        %vm663 = vcmp.ge.s32.totalorder %v567, 1
        %vm664 = vcmp.le.s32.totalorder %v536, 14
        %vm665 = vcmp.le.s32.totalorder %v537, 14
        %vm666 = vcmp.le.s32.totalorder %v538, 14
        %vm667 = vcmp.le.s32.totalorder %v539, 14
        %vm668 = vcmp.le.s32.totalorder %v540, 14
        %vm669 = vcmp.le.s32.totalorder %v541, 14
        %vm670 = vcmp.le.s32.totalorder %v542, 14
        %vm671 = vcmp.le.s32.totalorder %v543, 14
        %vm672 = vcmp.le.s32.totalorder %v544, 14
        %vm673 = vcmp.le.s32.totalorder %v545, 14
        %vm674 = vcmp.le.s32.totalorder %v546, 14
        %vm675 = vcmp.le.s32.totalorder %v547, 14
        %vm676 = vcmp.le.s32.totalorder %v548, 14
        %vm677 = vcmp.le.s32.totalorder %v549, 14
        %vm678 = vcmp.le.s32.totalorder %v550, 14
        %vm679 = vcmp.le.s32.totalorder %v551, 14
        %vm680 = vcmp.le.s32.totalorder %v552, 14
        %vm681 = vcmp.le.s32.totalorder %v553, 14
        %vm682 = vcmp.le.s32.totalorder %v554, 14
        %vm683 = vcmp.le.s32.totalorder %v555, 14
        %vm684 = vcmp.le.s32.totalorder %v556, 14
        %vm685 = vcmp.le.s32.totalorder %v557, 14
        %vm686 = vcmp.le.s32.totalorder %v558, 14
        %vm687 = vcmp.le.s32.totalorder %v559, 14
        %vm688 = vcmp.le.s32.totalorder %v560, 14
        %vm689 = vcmp.le.s32.totalorder %v561, 14
        %vm690 = vcmp.le.s32.totalorder %v562, 14
        %vm691 = vcmp.le.s32.totalorder %v563, 14
        %vm692 = vcmp.le.s32.totalorder %v564, 14
        %vm693 = vcmp.le.s32.totalorder %v565, 14
        %vm694 = vcmp.le.s32.totalorder %v566, 14
        %vm695 = vcmp.le.s32.totalorder %v567, 14
        %vm696 = vcmp.ge.s32.totalorder %v600, 1
        %vm697 = vcmp.ge.s32.totalorder %v601, 1
        %vm698 = vcmp.ge.s32.totalorder %v602, 1
        %vm699 = vcmp.ge.s32.totalorder %v603, 1
        %vm700 = vcmp.ge.s32.totalorder %v604, 1
        %vm701 = vcmp.ge.s32.totalorder %v605, 1
        %vm702 = vcmp.ge.s32.totalorder %v606, 1
        %vm703 = vcmp.ge.s32.totalorder %v607, 1
        %vm704 = vcmp.ge.s32.totalorder %v608, 1
        %vm705 = vcmp.ge.s32.totalorder %v609, 1
        %vm706 = vcmp.ge.s32.totalorder %v610, 1
        %vm707 = vcmp.ge.s32.totalorder %v611, 1
        %vm708 = vcmp.ge.s32.totalorder %v612, 1
        %vm709 = vcmp.ge.s32.totalorder %v613, 1
        %vm710 = vcmp.ge.s32.totalorder %v614, 1
        %vm711 = vcmp.ge.s32.totalorder %v615, 1
        %vm712 = vcmp.ge.s32.totalorder %v616, 1
        %vm713 = vcmp.ge.s32.totalorder %v617, 1
        %vm714 = vcmp.ge.s32.totalorder %v618, 1
        %vm715 = vcmp.ge.s32.totalorder %v619, 1
        %vm716 = vcmp.ge.s32.totalorder %v620, 1
        %vm717 = vcmp.ge.s32.totalorder %v621, 1
        %vm718 = vcmp.ge.s32.totalorder %v622, 1
        %vm719 = vcmp.ge.s32.totalorder %v623, 1
        %vm720 = vcmp.ge.s32.totalorder %v624, 1
        %vm721 = vcmp.ge.s32.totalorder %v625, 1
        %vm722 = vcmp.ge.s32.totalorder %v626, 1
        %vm723 = vcmp.ge.s32.totalorder %v627, 1
        %vm724 = vcmp.ge.s32.totalorder %v628, 1
        %vm725 = vcmp.ge.s32.totalorder %v629, 1
        %vm726 = vcmp.ge.s32.totalorder %v630, 1
        %vm727 = vcmp.ge.s32.totalorder %v631, 1
        %vm728 = vcmp.le.s32.totalorder %v600, 14
        %vm729 = vcmp.le.s32.totalorder %v601, 14
        %vm730 = vcmp.le.s32.totalorder %v602, 14
        %vm731 = vcmp.le.s32.totalorder %v603, 14
        %vm732 = vcmp.le.s32.totalorder %v604, 14
        %vm733 = vcmp.le.s32.totalorder %v605, 14
        %vm734 = vcmp.le.s32.totalorder %v606, 14
        %vm735 = vcmp.le.s32.totalorder %v607, 14
        %vm736 = vcmp.le.s32.totalorder %v608, 14
        %vm737 = vcmp.le.s32.totalorder %v609, 14
        %vm738 = vcmp.le.s32.totalorder %v610, 14
        %vm739 = vcmp.le.s32.totalorder %v611, 14
        %vm740 = vcmp.le.s32.totalorder %v612, 14
        %vm741 = vcmp.le.s32.totalorder %v613, 14
        %vm742 = vcmp.le.s32.totalorder %v614, 14
        %vm743 = vcmp.le.s32.totalorder %v615, 14
        %vm744 = vcmp.le.s32.totalorder %v616, 14
        %vm745 = vcmp.le.s32.totalorder %v617, 14
        %vm746 = vcmp.le.s32.totalorder %v618, 14
        %vm747 = vcmp.le.s32.totalorder %v619, 14
        %vm748 = vcmp.le.s32.totalorder %v620, 14
        %vm749 = vcmp.le.s32.totalorder %v621, 14
        %vm750 = vcmp.le.s32.totalorder %v622, 14
        %vm751 = vcmp.le.s32.totalorder %v623, 14
        %vm752 = vcmp.le.s32.totalorder %v624, 14
        %vm753 = vcmp.le.s32.totalorder %v625, 14
        %vm754 = vcmp.le.s32.totalorder %v626, 14
        %vm755 = vcmp.le.s32.totalorder %v627, 14
        %vm756 = vcmp.le.s32.totalorder %v628, 14
        %vm757 = vcmp.le.s32.totalorder %v629, 14
        %vm758 = vcmp.le.s32.totalorder %v630, 14
        %vm759 = vcmp.le.s32.totalorder %v631, 14
        %v760 = vrot.slane %v471, 7
        %v761 = vrot.slane %v472, 7
        %v762 = vrot.slane %v473, 7
        %v763 = vrot.slane %v474, 7
        %v764 = vrot.slane %v475, 7
        %v765 = vrot.slane %v476, 7
        %v766 = vrot.slane %v477, 7
        %v767 = vrot.slane %v478, 7
        %v768 = vrot.slane %v479, 7
        %v769 = vrot.slane %v480, 7
        %v770 = vrot.slane %v481, 7
        %v771 = vrot.slane %v482, 7
        %v772 = vrot.slane %v483, 7
        %v773 = vrot.slane %v484, 7
        %v774 = vrot.slane %v485, 7
        %v775 = vrot.slane %v486, 7
        %v776 = vrot.slane %v487, 7
        %v777 = vrot.slane %v488, 7
        %v778 = vrot.slane %v489, 7
        %v779 = vrot.slane %v490, 7
        %v780 = vrot.slane %v491, 7
        %v781 = vrot.slane %v492, 7
        %v782 = vrot.slane %v493, 7
        %v783 = vrot.slane %v494, 7
        %v784 = vrot.slane %v495, 7
        %v785 = vrot.slane %v496, 7
        %v786 = vrot.slane %v497, 7
        %v787 = vrot.slane %v498, 7
        %v788 = vrot.slane %v499, 7
        %v789 = vrot.slane %v500, 7
        %v790 = vrot.slane %v501, 7
        %v791 = vrot.slane %v502, 7
        %vm792 = vcmp.lt.s32.totalorder %v504, 1
        %v793 = vsel %vm792, %v790, %v791
        %v794 = vsel %vm792, %v789, %v790
        %v795 = vsel %vm792, %v788, %v789
        %v796 = vsel %vm792, %v787, %v788
        %v797 = vsel %vm792, %v786, %v787
        %v798 = vsel %vm792, %v785, %v786
        %v799 = vsel %vm792, %v784, %v785
        %v800 = vsel %vm792, %v783, %v784
        %v801 = vsel %vm792, %v782, %v783
        %v802 = vsel %vm792, %v781, %v782
        %v803 = vsel %vm792, %v780, %v781
        %v804 = vsel %vm792, %v779, %v780
        %v805 = vsel %vm792, %v778, %v779
        %v806 = vsel %vm792, %v777, %v778
        %v807 = vsel %vm792, %v776, %v777
        %v808 = vsel %vm792, %v775, %v776
        %v809 = vsel %vm792, %v774, %v775
        %v810 = vsel %vm792, %v773, %v774
        %v811 = vsel %vm792, %v772, %v773
        %v812 = vsel %vm792, %v771, %v772
        %v813 = vsel %vm792, %v770, %v771
        %v814 = vsel %vm792, %v769, %v770
        %v815 = vsel %vm792, %v768, %v769
        %v816 = vsel %vm792, %v767, %v768
        %v817 = vsel %vm792, %v766, %v767
        %v818 = vsel %vm792, %v765, %v766
        %v819 = vsel %vm792, %v764, %v765
        %v820 = vsel %vm792, %v763, %v764
        %v821 = vsel %vm792, %v762, %v763
        %v822 = vsel %vm792, %v761, %v762
        %v823 = vsel %vm792, %v760, %v761
        %v824 = vsel %vm792, %v791, %v760
        %vm825 = vmand %vm696, %vm632
        %vm826 = vmand %vm697, %vm633
        %vm827 = vmand %vm698, %vm634
        %vm828 = vmand %vm699, %vm635
        %vm829 = vmand %vm700, %vm636
        %vm830 = vmand %vm701, %vm637
        %vm831 = vmand %vm702, %vm638
        %vm832 = vmand %vm703, %vm639
        %vm833 = vmand %vm704, %vm640
        %vm834 = vmand %vm705, %vm641
        %vm835 = vmand %vm706, %vm642
        %vm836 = vmand %vm707, %vm643
        %vm837 = vmand %vm708, %vm644
        %vm838 = vmand %vm709, %vm645
        %vm839 = vmand %vm710, %vm646
        %vm840 = vmand %vm711, %vm647
        %vm841 = vmand %vm712, %vm648
        %vm842 = vmand %vm713, %vm649
        %vm843 = vmand %vm714, %vm650
        %vm844 = vmand %vm715, %vm651
        %vm845 = vmand %vm716, %vm652
        %vm846 = vmand %vm717, %vm653
        %vm847 = vmand %vm718, %vm654
        %vm848 = vmand %vm719, %vm655
        %vm849 = vmand %vm720, %vm656
        %vm850 = vmand %vm721, %vm657
        %vm851 = vmand %vm722, %vm658
        %vm852 = vmand %vm723, %vm659
        %vm853 = vmand %vm724, %vm660
        %vm854 = vmand %vm725, %vm661
        %vm855 = vmand %vm726, %vm662
        %vm856 = vmand %vm727, %vm663
        %v857 = vsel %vm825, 1, 0
        %v858 = vsel %vm826, 1, 0
        %v859 = vsel %vm827, 1, 0
        %v860 = vsel %vm828, 1, 0
        %v861 = vsel %vm829, 1, 0
        %v862 = vsel %vm830, 1, 0
        %v863 = vsel %vm831, 1, 0
        %v864 = vsel %vm832, 1, 0
        %v865 = vsel %vm833, 1, 0
        %v866 = vsel %vm834, 1, 0
        %v867 = vsel %vm835, 1, 0
        %v868 = vsel %vm836, 1, 0
        %v869 = vsel %vm837, 1, 0
        %v870 = vsel %vm838, 1, 0
        %v871 = vsel %vm839, 1, 0
        %v872 = vsel %vm840, 1, 0
        %v873 = vsel %vm841, 1, 0
        %v874 = vsel %vm842, 1, 0
        %v875 = vsel %vm843, 1, 0
        %v876 = vsel %vm844, 1, 0
        %v877 = vsel %vm845, 1, 0
        %v878 = vsel %vm846, 1, 0
        %v879 = vsel %vm847, 1, 0
        %v880 = vsel %vm848, 1, 0
        %v881 = vsel %vm849, 1, 0
        %v882 = vsel %vm850, 1, 0
        %v883 = vsel %vm851, 1, 0
        %v884 = vsel %vm852, 1, 0
        %v885 = vsel %vm853, 1, 0
        %v886 = vsel %vm854, 1, 0
        %v887 = vsel %vm855, 1, 0
        %v888 = vsel %vm856, 1, 0
        %vm889 = vcmp.eq.s32.totalorder %v857, 1
        %vm890 = vcmp.eq.s32.totalorder %v858, 1
        %vm891 = vcmp.eq.s32.totalorder %v859, 1
        %vm892 = vcmp.eq.s32.totalorder %v860, 1
        %vm893 = vcmp.eq.s32.totalorder %v861, 1
        %vm894 = vcmp.eq.s32.totalorder %v862, 1
        %vm895 = vcmp.eq.s32.totalorder %v863, 1
        %vm896 = vcmp.eq.s32.totalorder %v864, 1
        %vm897 = vcmp.eq.s32.totalorder %v865, 1
        %vm898 = vcmp.eq.s32.totalorder %v866, 1
        %vm899 = vcmp.eq.s32.totalorder %v867, 1
        %vm900 = vcmp.eq.s32.totalorder %v868, 1
        %vm901 = vcmp.eq.s32.totalorder %v869, 1
        %vm902 = vcmp.eq.s32.totalorder %v870, 1
        %vm903 = vcmp.eq.s32.totalorder %v871, 1
        %vm904 = vcmp.eq.s32.totalorder %v872, 1
        %vm905 = vcmp.eq.s32.totalorder %v873, 1
        %vm906 = vcmp.eq.s32.totalorder %v874, 1
        %vm907 = vcmp.eq.s32.totalorder %v875, 1
        %vm908 = vcmp.eq.s32.totalorder %v876, 1
        %vm909 = vcmp.eq.s32.totalorder %v877, 1
        %vm910 = vcmp.eq.s32.totalorder %v878, 1
        %vm911 = vcmp.eq.s32.totalorder %v879, 1
        %vm912 = vcmp.eq.s32.totalorder %v880, 1
        %vm913 = vcmp.eq.s32.totalorder %v881, 1
        %vm914 = vcmp.eq.s32.totalorder %v882, 1
        %vm915 = vcmp.eq.s32.totalorder %v883, 1
        %vm916 = vcmp.eq.s32.totalorder %v884, 1
        %vm917 = vcmp.eq.s32.totalorder %v885, 1
        %vm918 = vcmp.eq.s32.totalorder %v886, 1
        %vm919 = vcmp.eq.s32.totalorder %v887, 1
        %vm920 = vcmp.eq.s32.totalorder %v888, 1
        %v921 = vsel %vm889, %v794, 0.0
        %v922 = vsel %vm890, %v793, 0.0
        %v923 = vsel %vm891, %v824, 0.0
        %v924 = vsel %vm892, %v823, 0.0
        %v925 = vsel %vm893, %v822, 0.0
        %v926 = vsel %vm894, %v821, 0.0
        %v927 = vsel %vm895, %v820, 0.0
        %v928 = vsel %vm896, %v819, 0.0
        %v929 = vsel %vm897, %v818, 0.0
        %v930 = vsel %vm898, %v817, 0.0
        %v931 = vsel %vm899, %v816, 0.0
        %v932 = vsel %vm900, %v815, 0.0
        %v933 = vsel %vm901, %v814, 0.0
        %v934 = vsel %vm902, %v813, 0.0
        %v935 = vsel %vm903, %v812, 0.0
        %v936 = vsel %vm904, %v811, 0.0
        %v937 = vsel %vm905, %v810, 0.0
        %v938 = vsel %vm906, %v809, 0.0
        %v939 = vsel %vm907, %v808, 0.0
        %v940 = vsel %vm908, %v807, 0.0
        %v941 = vsel %vm909, %v806, 0.0
        %v942 = vsel %vm910, %v805, 0.0
        %v943 = vsel %vm911, %v804, 0.0
        %v944 = vsel %vm912, %v803, 0.0
        %v945 = vsel %vm913, %v802, 0.0
        %v946 = vsel %vm914, %v801, 0.0
        %v947 = vsel %vm915, %v800, 0.0
        %v948 = vsel %vm916, %v799, 0.0
        %v949 = vsel %vm917, %v798, 0.0
        %v950 = vsel %vm918, %v797, 0.0
        %v951 = vsel %vm919, %v796, 0.0
        %v952 = vsel %vm920, %v795, 0.0
        %v953 = vsel %vm696, 1, 0
        %v954 = vsel %vm697, 1, 0
        %v955 = vsel %vm698, 1, 0
        %v956 = vsel %vm699, 1, 0
        %v957 = vsel %vm700, 1, 0
        %v958 = vsel %vm701, 1, 0
        %v959 = vsel %vm702, 1, 0
        %v960 = vsel %vm703, 1, 0
        %v961 = vsel %vm704, 1, 0
        %v962 = vsel %vm705, 1, 0
        %v963 = vsel %vm706, 1, 0
        %v964 = vsel %vm707, 1, 0
        %v965 = vsel %vm708, 1, 0
        %v966 = vsel %vm709, 1, 0
        %v967 = vsel %vm710, 1, 0
        %v968 = vsel %vm711, 1, 0
        %v969 = vsel %vm712, 1, 0
        %v970 = vsel %vm713, 1, 0
        %v971 = vsel %vm714, 1, 0
        %v972 = vsel %vm715, 1, 0
        %v973 = vsel %vm716, 1, 0
        %v974 = vsel %vm717, 1, 0
        %v975 = vsel %vm718, 1, 0
        %v976 = vsel %vm719, 1, 0
        %v977 = vsel %vm720, 1, 0
        %v978 = vsel %vm721, 1, 0
        %v979 = vsel %vm722, 1, 0
        %v980 = vsel %vm723, 1, 0
        %v981 = vsel %vm724, 1, 0
        %v982 = vsel %vm725, 1, 0
        %v983 = vsel %vm726, 1, 0
        %v984 = vsel %vm727, 1, 0
        %vm985 = vcmp.eq.s32.totalorder %v953, 1
        %vm986 = vcmp.eq.s32.totalorder %v954, 1
        %vm987 = vcmp.eq.s32.totalorder %v955, 1
        %vm988 = vcmp.eq.s32.totalorder %v956, 1
        %vm989 = vcmp.eq.s32.totalorder %v957, 1
        %vm990 = vcmp.eq.s32.totalorder %v958, 1
        %vm991 = vcmp.eq.s32.totalorder %v959, 1
        %vm992 = vcmp.eq.s32.totalorder %v960, 1
        %vm993 = vcmp.eq.s32.totalorder %v961, 1
        %vm994 = vcmp.eq.s32.totalorder %v962, 1
        %vm995 = vcmp.eq.s32.totalorder %v963, 1
        %vm996 = vcmp.eq.s32.totalorder %v964, 1
        %vm997 = vcmp.eq.s32.totalorder %v965, 1
        %vm998 = vcmp.eq.s32.totalorder %v966, 1
        %vm999 = vcmp.eq.s32.totalorder %v967, 1
        %vm1000 = vcmp.eq.s32.totalorder %v968, 1
        %vm1001 = vcmp.eq.s32.totalorder %v969, 1
        %vm1002 = vcmp.eq.s32.totalorder %v970, 1
        %vm1003 = vcmp.eq.s32.totalorder %v971, 1
        %vm1004 = vcmp.eq.s32.totalorder %v972, 1
        %vm1005 = vcmp.eq.s32.totalorder %v973, 1
        %vm1006 = vcmp.eq.s32.totalorder %v974, 1
        %vm1007 = vcmp.eq.s32.totalorder %v975, 1
        %vm1008 = vcmp.eq.s32.totalorder %v976, 1
        %vm1009 = vcmp.eq.s32.totalorder %v977, 1
        %vm1010 = vcmp.eq.s32.totalorder %v978, 1
        %vm1011 = vcmp.eq.s32.totalorder %v979, 1
        %vm1012 = vcmp.eq.s32.totalorder %v980, 1
        %vm1013 = vcmp.eq.s32.totalorder %v981, 1
        %vm1014 = vcmp.eq.s32.totalorder %v982, 1
        %vm1015 = vcmp.eq.s32.totalorder %v983, 1
        %vm1016 = vcmp.eq.s32.totalorder %v984, 1
        %v1017 = vsel %vm985, %v501, 0.0
        %v1018 = vsel %vm986, %v502, 0.0
        %v1019 = vsel %vm987, %v471, 0.0
        %v1020 = vsel %vm988, %v472, 0.0
        %v1021 = vsel %vm989, %v473, 0.0
        %v1022 = vsel %vm990, %v474, 0.0
        %v1023 = vsel %vm991, %v475, 0.0
        %v1024 = vsel %vm992, %v476, 0.0
        %v1025 = vsel %vm993, %v477, 0.0
        %v1026 = vsel %vm994, %v478, 0.0
        %v1027 = vsel %vm995, %v479, 0.0
        %v1028 = vsel %vm996, %v480, 0.0
        %v1029 = vsel %vm997, %v481, 0.0
        %v1030 = vsel %vm998, %v482, 0.0
        %v1031 = vsel %vm999, %v483, 0.0
        %v1032 = vsel %vm1000, %v484, 0.0
        %v1033 = vsel %vm1001, %v485, 0.0
        %v1034 = vsel %vm1002, %v486, 0.0
        %v1035 = vsel %vm1003, %v487, 0.0
        %v1036 = vsel %vm1004, %v488, 0.0
        %v1037 = vsel %vm1005, %v489, 0.0
        %v1038 = vsel %vm1006, %v490, 0.0
        %v1039 = vsel %vm1007, %v491, 0.0
        %v1040 = vsel %vm1008, %v492, 0.0
        %v1041 = vsel %vm1009, %v493, 0.0
        %v1042 = vsel %vm1010, %v494, 0.0
        %v1043 = vsel %vm1011, %v495, 0.0
        %v1044 = vsel %vm1012, %v496, 0.0
        %v1045 = vsel %vm1013, %v497, 0.0
        %v1046 = vsel %vm1014, %v498, 0.0
        %v1047 = vsel %vm1015, %v499, 0.0
        %v1048 = vsel %vm1016, %v500, 0.0
        %v1049 = vrot.slane %v471, 1
        %v1050 = vrot.slane %v472, 1
        %v1051 = vrot.slane %v473, 1
        %v1052 = vrot.slane %v474, 1
        %v1053 = vrot.slane %v475, 1
        %v1054 = vrot.slane %v476, 1
        %v1055 = vrot.slane %v477, 1
        %v1056 = vrot.slane %v478, 1
        %v1057 = vrot.slane %v479, 1
        %v1058 = vrot.slane %v480, 1
        %v1059 = vrot.slane %v481, 1
        %v1060 = vrot.slane %v482, 1
        %v1061 = vrot.slane %v483, 1
        %v1062 = vrot.slane %v484, 1
        %v1063 = vrot.slane %v485, 1
        %v1064 = vrot.slane %v486, 1
        %v1065 = vrot.slane %v487, 1
        %v1066 = vrot.slane %v488, 1
        %v1067 = vrot.slane %v489, 1
        %v1068 = vrot.slane %v490, 1
        %v1069 = vrot.slane %v491, 1
        %v1070 = vrot.slane %v492, 1
        %v1071 = vrot.slane %v493, 1
        %v1072 = vrot.slane %v494, 1
        %v1073 = vrot.slane %v495, 1
        %v1074 = vrot.slane %v496, 1
        %v1075 = vrot.slane %v497, 1
        %v1076 = vrot.slane %v498, 1
        %v1077 = vrot.slane %v499, 1
        %v1078 = vrot.slane %v500, 1
        %v1079 = vrot.slane %v501, 1
        %v1080 = vrot.slane %v502, 1
        %vm1081 = vcmp.lt.s32.totalorder %v504, 7
        %v1082 = vsel %vm1081, %v1079, %v1080
        %v1083 = vsel %vm1081, %v1078, %v1079
        %v1084 = vsel %vm1081, %v1077, %v1078
        %v1085 = vsel %vm1081, %v1076, %v1077
        %v1086 = vsel %vm1081, %v1075, %v1076
        %v1087 = vsel %vm1081, %v1074, %v1075
        %v1088 = vsel %vm1081, %v1073, %v1074
        %v1089 = vsel %vm1081, %v1072, %v1073
        %v1090 = vsel %vm1081, %v1071, %v1072
        %v1091 = vsel %vm1081, %v1070, %v1071
        %v1092 = vsel %vm1081, %v1069, %v1070
        %v1093 = vsel %vm1081, %v1068, %v1069
        %v1094 = vsel %vm1081, %v1067, %v1068
        %v1095 = vsel %vm1081, %v1066, %v1067
        %v1096 = vsel %vm1081, %v1065, %v1066
        %v1097 = vsel %vm1081, %v1064, %v1065
        %v1098 = vsel %vm1081, %v1063, %v1064
        %v1099 = vsel %vm1081, %v1062, %v1063
        %v1100 = vsel %vm1081, %v1061, %v1062
        %v1101 = vsel %vm1081, %v1060, %v1061
        %v1102 = vsel %vm1081, %v1059, %v1060
        %v1103 = vsel %vm1081, %v1058, %v1059
        %v1104 = vsel %vm1081, %v1057, %v1058
        %v1105 = vsel %vm1081, %v1056, %v1057
        %v1106 = vsel %vm1081, %v1055, %v1056
        %v1107 = vsel %vm1081, %v1054, %v1055
        %v1108 = vsel %vm1081, %v1053, %v1054
        %v1109 = vsel %vm1081, %v1052, %v1053
        %v1110 = vsel %vm1081, %v1051, %v1052
        %v1111 = vsel %vm1081, %v1050, %v1051
        %v1112 = vsel %vm1081, %v1049, %v1050
        %v1113 = vsel %vm1081, %v1080, %v1049
        %vm1114 = vmand %vm696, %vm664
        %vm1115 = vmand %vm697, %vm665
        %vm1116 = vmand %vm698, %vm666
        %vm1117 = vmand %vm699, %vm667
        %vm1118 = vmand %vm700, %vm668
        %vm1119 = vmand %vm701, %vm669
        %vm1120 = vmand %vm702, %vm670
        %vm1121 = vmand %vm703, %vm671
        %vm1122 = vmand %vm704, %vm672
        %vm1123 = vmand %vm705, %vm673
        %vm1124 = vmand %vm706, %vm674
        %vm1125 = vmand %vm707, %vm675
        %vm1126 = vmand %vm708, %vm676
        %vm1127 = vmand %vm709, %vm677
        %vm1128 = vmand %vm710, %vm678
        %vm1129 = vmand %vm711, %vm679
        %vm1130 = vmand %vm712, %vm680
        %vm1131 = vmand %vm713, %vm681
        %vm1132 = vmand %vm714, %vm682
        %vm1133 = vmand %vm715, %vm683
        %vm1134 = vmand %vm716, %vm684
        %vm1135 = vmand %vm717, %vm685
        %vm1136 = vmand %vm718, %vm686
        %vm1137 = vmand %vm719, %vm687
        %vm1138 = vmand %vm720, %vm688
        %vm1139 = vmand %vm721, %vm689
        %vm1140 = vmand %vm722, %vm690
        %vm1141 = vmand %vm723, %vm691
        %vm1142 = vmand %vm724, %vm692
        %vm1143 = vmand %vm725, %vm693
        %vm1144 = vmand %vm726, %vm694
        %vm1145 = vmand %vm727, %vm695
        %v1146 = vsel %vm1114, 1, 0
        %v1147 = vsel %vm1115, 1, 0
        %v1148 = vsel %vm1116, 1, 0
        %v1149 = vsel %vm1117, 1, 0
        %v1150 = vsel %vm1118, 1, 0
        %v1151 = vsel %vm1119, 1, 0
        %v1152 = vsel %vm1120, 1, 0
        %v1153 = vsel %vm1121, 1, 0
        %v1154 = vsel %vm1122, 1, 0
        %v1155 = vsel %vm1123, 1, 0
        %v1156 = vsel %vm1124, 1, 0
        %v1157 = vsel %vm1125, 1, 0
        %v1158 = vsel %vm1126, 1, 0
        %v1159 = vsel %vm1127, 1, 0
        %v1160 = vsel %vm1128, 1, 0
        %v1161 = vsel %vm1129, 1, 0
        %v1162 = vsel %vm1130, 1, 0
        %v1163 = vsel %vm1131, 1, 0
        %v1164 = vsel %vm1132, 1, 0
        %v1165 = vsel %vm1133, 1, 0
        %v1166 = vsel %vm1134, 1, 0
        %v1167 = vsel %vm1135, 1, 0
        %v1168 = vsel %vm1136, 1, 0
        %v1169 = vsel %vm1137, 1, 0
        %v1170 = vsel %vm1138, 1, 0
        %v1171 = vsel %vm1139, 1, 0
        %v1172 = vsel %vm1140, 1, 0
        %v1173 = vsel %vm1141, 1, 0
        %v1174 = vsel %vm1142, 1, 0
        %v1175 = vsel %vm1143, 1, 0
        %v1176 = vsel %vm1144, 1, 0
        %v1177 = vsel %vm1145, 1, 0
        %vm1178 = vcmp.eq.s32.totalorder %v1146, 1
        %vm1179 = vcmp.eq.s32.totalorder %v1147, 1
        %vm1180 = vcmp.eq.s32.totalorder %v1148, 1
        %vm1181 = vcmp.eq.s32.totalorder %v1149, 1
        %vm1182 = vcmp.eq.s32.totalorder %v1150, 1
        %vm1183 = vcmp.eq.s32.totalorder %v1151, 1
        %vm1184 = vcmp.eq.s32.totalorder %v1152, 1
        %vm1185 = vcmp.eq.s32.totalorder %v1153, 1
        %vm1186 = vcmp.eq.s32.totalorder %v1154, 1
        %vm1187 = vcmp.eq.s32.totalorder %v1155, 1
        %vm1188 = vcmp.eq.s32.totalorder %v1156, 1
        %vm1189 = vcmp.eq.s32.totalorder %v1157, 1
        %vm1190 = vcmp.eq.s32.totalorder %v1158, 1
        %vm1191 = vcmp.eq.s32.totalorder %v1159, 1
        %vm1192 = vcmp.eq.s32.totalorder %v1160, 1
        %vm1193 = vcmp.eq.s32.totalorder %v1161, 1
        %vm1194 = vcmp.eq.s32.totalorder %v1162, 1
        %vm1195 = vcmp.eq.s32.totalorder %v1163, 1
        %vm1196 = vcmp.eq.s32.totalorder %v1164, 1
        %vm1197 = vcmp.eq.s32.totalorder %v1165, 1
        %vm1198 = vcmp.eq.s32.totalorder %v1166, 1
        %vm1199 = vcmp.eq.s32.totalorder %v1167, 1
        %vm1200 = vcmp.eq.s32.totalorder %v1168, 1
        %vm1201 = vcmp.eq.s32.totalorder %v1169, 1
        %vm1202 = vcmp.eq.s32.totalorder %v1170, 1
        %vm1203 = vcmp.eq.s32.totalorder %v1171, 1
        %vm1204 = vcmp.eq.s32.totalorder %v1172, 1
        %vm1205 = vcmp.eq.s32.totalorder %v1173, 1
        %vm1206 = vcmp.eq.s32.totalorder %v1174, 1
        %vm1207 = vcmp.eq.s32.totalorder %v1175, 1
        %vm1208 = vcmp.eq.s32.totalorder %v1176, 1
        %vm1209 = vcmp.eq.s32.totalorder %v1177, 1
        %v1210 = vsel %vm1178, %v1082, 0.0
        %v1211 = vsel %vm1179, %v1113, 0.0
        %v1212 = vsel %vm1180, %v1112, 0.0
        %v1213 = vsel %vm1181, %v1111, 0.0
        %v1214 = vsel %vm1182, %v1110, 0.0
        %v1215 = vsel %vm1183, %v1109, 0.0
        %v1216 = vsel %vm1184, %v1108, 0.0
        %v1217 = vsel %vm1185, %v1107, 0.0
        %v1218 = vsel %vm1186, %v1106, 0.0
        %v1219 = vsel %vm1187, %v1105, 0.0
        %v1220 = vsel %vm1188, %v1104, 0.0
        %v1221 = vsel %vm1189, %v1103, 0.0
        %v1222 = vsel %vm1190, %v1102, 0.0
        %v1223 = vsel %vm1191, %v1101, 0.0
        %v1224 = vsel %vm1192, %v1100, 0.0
        %v1225 = vsel %vm1193, %v1099, 0.0
        %v1226 = vsel %vm1194, %v1098, 0.0
        %v1227 = vsel %vm1195, %v1097, 0.0
        %v1228 = vsel %vm1196, %v1096, 0.0
        %v1229 = vsel %vm1197, %v1095, 0.0
        %v1230 = vsel %vm1198, %v1094, 0.0
        %v1231 = vsel %vm1199, %v1093, 0.0
        %v1232 = vsel %vm1200, %v1092, 0.0
        %v1233 = vsel %vm1201, %v1091, 0.0
        %v1234 = vsel %vm1202, %v1090, 0.0
        %v1235 = vsel %vm1203, %v1089, 0.0
        %v1236 = vsel %vm1204, %v1088, 0.0
        %v1237 = vsel %vm1205, %v1087, 0.0
        %v1238 = vsel %vm1206, %v1086, 0.0
        %v1239 = vsel %vm1207, %v1085, 0.0
        %v1240 = vsel %vm1208, %v1084, 0.0
        %v1241 = vsel %vm1209, %v1083, 0.0
        %v1242 = vsel %vm632, 1, 0
        %v1243 = vsel %vm633, 1, 0
        %v1244 = vsel %vm634, 1, 0
        %v1245 = vsel %vm635, 1, 0
        %v1246 = vsel %vm636, 1, 0
        %v1247 = vsel %vm637, 1, 0
        %v1248 = vsel %vm638, 1, 0
        %v1249 = vsel %vm639, 1, 0
        %v1250 = vsel %vm640, 1, 0
        %v1251 = vsel %vm641, 1, 0
        %v1252 = vsel %vm642, 1, 0
        %v1253 = vsel %vm643, 1, 0
        %v1254 = vsel %vm644, 1, 0
        %v1255 = vsel %vm645, 1, 0
        %v1256 = vsel %vm646, 1, 0
        %v1257 = vsel %vm647, 1, 0
        %v1258 = vsel %vm648, 1, 0
        %v1259 = vsel %vm649, 1, 0
        %v1260 = vsel %vm650, 1, 0
        %v1261 = vsel %vm651, 1, 0
        %v1262 = vsel %vm652, 1, 0
        %v1263 = vsel %vm653, 1, 0
        %v1264 = vsel %vm654, 1, 0
        %v1265 = vsel %vm655, 1, 0
        %v1266 = vsel %vm656, 1, 0
        %v1267 = vsel %vm657, 1, 0
        %v1268 = vsel %vm658, 1, 0
        %v1269 = vsel %vm659, 1, 0
        %v1270 = vsel %vm660, 1, 0
        %v1271 = vsel %vm661, 1, 0
        %v1272 = vsel %vm662, 1, 0
        %v1273 = vsel %vm663, 1, 0
        %vm1274 = vcmp.eq.s32.totalorder %v1242, 1
        %vm1275 = vcmp.eq.s32.totalorder %v1243, 1
        %vm1276 = vcmp.eq.s32.totalorder %v1244, 1
        %vm1277 = vcmp.eq.s32.totalorder %v1245, 1
        %vm1278 = vcmp.eq.s32.totalorder %v1246, 1
        %vm1279 = vcmp.eq.s32.totalorder %v1247, 1
        %vm1280 = vcmp.eq.s32.totalorder %v1248, 1
        %vm1281 = vcmp.eq.s32.totalorder %v1249, 1
        %vm1282 = vcmp.eq.s32.totalorder %v1250, 1
        %vm1283 = vcmp.eq.s32.totalorder %v1251, 1
        %vm1284 = vcmp.eq.s32.totalorder %v1252, 1
        %vm1285 = vcmp.eq.s32.totalorder %v1253, 1
        %vm1286 = vcmp.eq.s32.totalorder %v1254, 1
        %vm1287 = vcmp.eq.s32.totalorder %v1255, 1
        %vm1288 = vcmp.eq.s32.totalorder %v1256, 1
        %vm1289 = vcmp.eq.s32.totalorder %v1257, 1
        %vm1290 = vcmp.eq.s32.totalorder %v1258, 1
        %vm1291 = vcmp.eq.s32.totalorder %v1259, 1
        %vm1292 = vcmp.eq.s32.totalorder %v1260, 1
        %vm1293 = vcmp.eq.s32.totalorder %v1261, 1
        %vm1294 = vcmp.eq.s32.totalorder %v1262, 1
        %vm1295 = vcmp.eq.s32.totalorder %v1263, 1
        %vm1296 = vcmp.eq.s32.totalorder %v1264, 1
        %vm1297 = vcmp.eq.s32.totalorder %v1265, 1
        %vm1298 = vcmp.eq.s32.totalorder %v1266, 1
        %vm1299 = vcmp.eq.s32.totalorder %v1267, 1
        %vm1300 = vcmp.eq.s32.totalorder %v1268, 1
        %vm1301 = vcmp.eq.s32.totalorder %v1269, 1
        %vm1302 = vcmp.eq.s32.totalorder %v1270, 1
        %vm1303 = vcmp.eq.s32.totalorder %v1271, 1
        %vm1304 = vcmp.eq.s32.totalorder %v1272, 1
        %vm1305 = vcmp.eq.s32.totalorder %v1273, 1
        %v1306 = vsel %vm1274, %v824, 0.0
        %v1307 = vsel %vm1275, %v823, 0.0
        %v1308 = vsel %vm1276, %v822, 0.0
        %v1309 = vsel %vm1277, %v821, 0.0
        %v1310 = vsel %vm1278, %v820, 0.0
        %v1311 = vsel %vm1279, %v819, 0.0
        %v1312 = vsel %vm1280, %v818, 0.0
        %v1313 = vsel %vm1281, %v817, 0.0
        %v1314 = vsel %vm1282, %v816, 0.0
        %v1315 = vsel %vm1283, %v815, 0.0
        %v1316 = vsel %vm1284, %v814, 0.0
        %v1317 = vsel %vm1285, %v813, 0.0
        %v1318 = vsel %vm1286, %v812, 0.0
        %v1319 = vsel %vm1287, %v811, 0.0
        %v1320 = vsel %vm1288, %v810, 0.0
        %v1321 = vsel %vm1289, %v809, 0.0
        %v1322 = vsel %vm1290, %v808, 0.0
        %v1323 = vsel %vm1291, %v807, 0.0
        %v1324 = vsel %vm1292, %v806, 0.0
        %v1325 = vsel %vm1293, %v805, 0.0
        %v1326 = vsel %vm1294, %v804, 0.0
        %v1327 = vsel %vm1295, %v803, 0.0
        %v1328 = vsel %vm1296, %v802, 0.0
        %v1329 = vsel %vm1297, %v801, 0.0
        %v1330 = vsel %vm1298, %v800, 0.0
        %v1331 = vsel %vm1299, %v799, 0.0
        %v1332 = vsel %vm1300, %v798, 0.0
        %v1333 = vsel %vm1301, %v797, 0.0
        %v1334 = vsel %vm1302, %v796, 0.0
        %v1335 = vsel %vm1303, %v795, 0.0
        %v1336 = vsel %vm1304, %v794, 0.0
        %v1337 = vsel %vm1305, %v793, 0.0
        %v1338 = vsel %vm664, 1, 0
        %v1339 = vsel %vm665, 1, 0
        %v1340 = vsel %vm666, 1, 0
        %v1341 = vsel %vm667, 1, 0
        %v1342 = vsel %vm668, 1, 0
        %v1343 = vsel %vm669, 1, 0
        %v1344 = vsel %vm670, 1, 0
        %v1345 = vsel %vm671, 1, 0
        %v1346 = vsel %vm672, 1, 0
        %v1347 = vsel %vm673, 1, 0
        %v1348 = vsel %vm674, 1, 0
        %v1349 = vsel %vm675, 1, 0
        %v1350 = vsel %vm676, 1, 0
        %v1351 = vsel %vm677, 1, 0
        %v1352 = vsel %vm678, 1, 0
        %v1353 = vsel %vm679, 1, 0
        %v1354 = vsel %vm680, 1, 0
        %v1355 = vsel %vm681, 1, 0
        %v1356 = vsel %vm682, 1, 0
        %v1357 = vsel %vm683, 1, 0
        %v1358 = vsel %vm684, 1, 0
        %v1359 = vsel %vm685, 1, 0
        %v1360 = vsel %vm686, 1, 0
        %v1361 = vsel %vm687, 1, 0
        %v1362 = vsel %vm688, 1, 0
        %v1363 = vsel %vm689, 1, 0
        %v1364 = vsel %vm690, 1, 0
        %v1365 = vsel %vm691, 1, 0
        %v1366 = vsel %vm692, 1, 0
        %v1367 = vsel %vm693, 1, 0
        %v1368 = vsel %vm694, 1, 0
        %v1369 = vsel %vm695, 1, 0
        %vm1370 = vcmp.eq.s32.totalorder %v1338, 1
        %vm1371 = vcmp.eq.s32.totalorder %v1339, 1
        %vm1372 = vcmp.eq.s32.totalorder %v1340, 1
        %vm1373 = vcmp.eq.s32.totalorder %v1341, 1
        %vm1374 = vcmp.eq.s32.totalorder %v1342, 1
        %vm1375 = vcmp.eq.s32.totalorder %v1343, 1
        %vm1376 = vcmp.eq.s32.totalorder %v1344, 1
        %vm1377 = vcmp.eq.s32.totalorder %v1345, 1
        %vm1378 = vcmp.eq.s32.totalorder %v1346, 1
        %vm1379 = vcmp.eq.s32.totalorder %v1347, 1
        %vm1380 = vcmp.eq.s32.totalorder %v1348, 1
        %vm1381 = vcmp.eq.s32.totalorder %v1349, 1
        %vm1382 = vcmp.eq.s32.totalorder %v1350, 1
        %vm1383 = vcmp.eq.s32.totalorder %v1351, 1
        %vm1384 = vcmp.eq.s32.totalorder %v1352, 1
        %vm1385 = vcmp.eq.s32.totalorder %v1353, 1
        %vm1386 = vcmp.eq.s32.totalorder %v1354, 1
        %vm1387 = vcmp.eq.s32.totalorder %v1355, 1
        %vm1388 = vcmp.eq.s32.totalorder %v1356, 1
        %vm1389 = vcmp.eq.s32.totalorder %v1357, 1
        %vm1390 = vcmp.eq.s32.totalorder %v1358, 1
        %vm1391 = vcmp.eq.s32.totalorder %v1359, 1
        %vm1392 = vcmp.eq.s32.totalorder %v1360, 1
        %vm1393 = vcmp.eq.s32.totalorder %v1361, 1
        %vm1394 = vcmp.eq.s32.totalorder %v1362, 1
        %vm1395 = vcmp.eq.s32.totalorder %v1363, 1
        %vm1396 = vcmp.eq.s32.totalorder %v1364, 1
        %vm1397 = vcmp.eq.s32.totalorder %v1365, 1
        %vm1398 = vcmp.eq.s32.totalorder %v1366, 1
        %vm1399 = vcmp.eq.s32.totalorder %v1367, 1
        %vm1400 = vcmp.eq.s32.totalorder %v1368, 1
        %vm1401 = vcmp.eq.s32.totalorder %v1369, 1
        %v1402 = vsel %vm1370, %v1112, 0.0
        %v1403 = vsel %vm1371, %v1111, 0.0
        %v1404 = vsel %vm1372, %v1110, 0.0
        %v1405 = vsel %vm1373, %v1109, 0.0
        %v1406 = vsel %vm1374, %v1108, 0.0
        %v1407 = vsel %vm1375, %v1107, 0.0
        %v1408 = vsel %vm1376, %v1106, 0.0
        %v1409 = vsel %vm1377, %v1105, 0.0
        %v1410 = vsel %vm1378, %v1104, 0.0
        %v1411 = vsel %vm1379, %v1103, 0.0
        %v1412 = vsel %vm1380, %v1102, 0.0
        %v1413 = vsel %vm1381, %v1101, 0.0
        %v1414 = vsel %vm1382, %v1100, 0.0
        %v1415 = vsel %vm1383, %v1099, 0.0
        %v1416 = vsel %vm1384, %v1098, 0.0
        %v1417 = vsel %vm1385, %v1097, 0.0
        %v1418 = vsel %vm1386, %v1096, 0.0
        %v1419 = vsel %vm1387, %v1095, 0.0
        %v1420 = vsel %vm1388, %v1094, 0.0
        %v1421 = vsel %vm1389, %v1093, 0.0
        %v1422 = vsel %vm1390, %v1092, 0.0
        %v1423 = vsel %vm1391, %v1091, 0.0
        %v1424 = vsel %vm1392, %v1090, 0.0
        %v1425 = vsel %vm1393, %v1089, 0.0
        %v1426 = vsel %vm1394, %v1088, 0.0
        %v1427 = vsel %vm1395, %v1087, 0.0
        %v1428 = vsel %vm1396, %v1086, 0.0
        %v1429 = vsel %vm1397, %v1085, 0.0
        %v1430 = vsel %vm1398, %v1084, 0.0
        %v1431 = vsel %vm1399, %v1083, 0.0
        %v1432 = vsel %vm1400, %v1082, 0.0
        %v1433 = vsel %vm1401, %v1113, 0.0
        %vm1434 = vmand %vm728, %vm632
        %vm1435 = vmand %vm729, %vm633
        %vm1436 = vmand %vm730, %vm634
        %vm1437 = vmand %vm731, %vm635
        %vm1438 = vmand %vm732, %vm636
        %vm1439 = vmand %vm733, %vm637
        %vm1440 = vmand %vm734, %vm638
        %vm1441 = vmand %vm735, %vm639
        %vm1442 = vmand %vm736, %vm640
        %vm1443 = vmand %vm737, %vm641
        %vm1444 = vmand %vm738, %vm642
        %vm1445 = vmand %vm739, %vm643
        %vm1446 = vmand %vm740, %vm644
        %vm1447 = vmand %vm741, %vm645
        %vm1448 = vmand %vm742, %vm646
        %vm1449 = vmand %vm743, %vm647
        %vm1450 = vmand %vm744, %vm648
        %vm1451 = vmand %vm745, %vm649
        %vm1452 = vmand %vm746, %vm650
        %vm1453 = vmand %vm747, %vm651
        %vm1454 = vmand %vm748, %vm652
        %vm1455 = vmand %vm749, %vm653
        %vm1456 = vmand %vm750, %vm654
        %vm1457 = vmand %vm751, %vm655
        %vm1458 = vmand %vm752, %vm656
        %vm1459 = vmand %vm753, %vm657
        %vm1460 = vmand %vm754, %vm658
        %vm1461 = vmand %vm755, %vm659
        %vm1462 = vmand %vm756, %vm660
        %vm1463 = vmand %vm757, %vm661
        %vm1464 = vmand %vm758, %vm662
        %vm1465 = vmand %vm759, %vm663
        %v1466 = vsel %vm1434, 1, 0
        %v1467 = vsel %vm1435, 1, 0
        %v1468 = vsel %vm1436, 1, 0
        %v1469 = vsel %vm1437, 1, 0
        %v1470 = vsel %vm1438, 1, 0
        %v1471 = vsel %vm1439, 1, 0
        %v1472 = vsel %vm1440, 1, 0
        %v1473 = vsel %vm1441, 1, 0
        %v1474 = vsel %vm1442, 1, 0
        %v1475 = vsel %vm1443, 1, 0
        %v1476 = vsel %vm1444, 1, 0
        %v1477 = vsel %vm1445, 1, 0
        %v1478 = vsel %vm1446, 1, 0
        %v1479 = vsel %vm1447, 1, 0
        %v1480 = vsel %vm1448, 1, 0
        %v1481 = vsel %vm1449, 1, 0
        %v1482 = vsel %vm1450, 1, 0
        %v1483 = vsel %vm1451, 1, 0
        %v1484 = vsel %vm1452, 1, 0
        %v1485 = vsel %vm1453, 1, 0
        %v1486 = vsel %vm1454, 1, 0
        %v1487 = vsel %vm1455, 1, 0
        %v1488 = vsel %vm1456, 1, 0
        %v1489 = vsel %vm1457, 1, 0
        %v1490 = vsel %vm1458, 1, 0
        %v1491 = vsel %vm1459, 1, 0
        %v1492 = vsel %vm1460, 1, 0
        %v1493 = vsel %vm1461, 1, 0
        %v1494 = vsel %vm1462, 1, 0
        %v1495 = vsel %vm1463, 1, 0
        %v1496 = vsel %vm1464, 1, 0
        %v1497 = vsel %vm1465, 1, 0
        %vm1498 = vcmp.eq.s32.totalorder %v1466, 1
        %vm1499 = vcmp.eq.s32.totalorder %v1467, 1
        %vm1500 = vcmp.eq.s32.totalorder %v1468, 1
        %vm1501 = vcmp.eq.s32.totalorder %v1469, 1
        %vm1502 = vcmp.eq.s32.totalorder %v1470, 1
        %vm1503 = vcmp.eq.s32.totalorder %v1471, 1
        %vm1504 = vcmp.eq.s32.totalorder %v1472, 1
        %vm1505 = vcmp.eq.s32.totalorder %v1473, 1
        %vm1506 = vcmp.eq.s32.totalorder %v1474, 1
        %vm1507 = vcmp.eq.s32.totalorder %v1475, 1
        %vm1508 = vcmp.eq.s32.totalorder %v1476, 1
        %vm1509 = vcmp.eq.s32.totalorder %v1477, 1
        %vm1510 = vcmp.eq.s32.totalorder %v1478, 1
        %vm1511 = vcmp.eq.s32.totalorder %v1479, 1
        %vm1512 = vcmp.eq.s32.totalorder %v1480, 1
        %vm1513 = vcmp.eq.s32.totalorder %v1481, 1
        %vm1514 = vcmp.eq.s32.totalorder %v1482, 1
        %vm1515 = vcmp.eq.s32.totalorder %v1483, 1
        %vm1516 = vcmp.eq.s32.totalorder %v1484, 1
        %vm1517 = vcmp.eq.s32.totalorder %v1485, 1
        %vm1518 = vcmp.eq.s32.totalorder %v1486, 1
        %vm1519 = vcmp.eq.s32.totalorder %v1487, 1
        %vm1520 = vcmp.eq.s32.totalorder %v1488, 1
        %vm1521 = vcmp.eq.s32.totalorder %v1489, 1
        %vm1522 = vcmp.eq.s32.totalorder %v1490, 1
        %vm1523 = vcmp.eq.s32.totalorder %v1491, 1
        %vm1524 = vcmp.eq.s32.totalorder %v1492, 1
        %vm1525 = vcmp.eq.s32.totalorder %v1493, 1
        %vm1526 = vcmp.eq.s32.totalorder %v1494, 1
        %vm1527 = vcmp.eq.s32.totalorder %v1495, 1
        %vm1528 = vcmp.eq.s32.totalorder %v1496, 1
        %vm1529 = vcmp.eq.s32.totalorder %v1497, 1
        %v1530 = vsel %vm1498, %v822, 0.0
        %v1531 = vsel %vm1499, %v821, 0.0
        %v1532 = vsel %vm1500, %v820, 0.0
        %v1533 = vsel %vm1501, %v819, 0.0
        %v1534 = vsel %vm1502, %v818, 0.0
        %v1535 = vsel %vm1503, %v817, 0.0
        %v1536 = vsel %vm1504, %v816, 0.0
        %v1537 = vsel %vm1505, %v815, 0.0
        %v1538 = vsel %vm1506, %v814, 0.0
        %v1539 = vsel %vm1507, %v813, 0.0
        %v1540 = vsel %vm1508, %v812, 0.0
        %v1541 = vsel %vm1509, %v811, 0.0
        %v1542 = vsel %vm1510, %v810, 0.0
        %v1543 = vsel %vm1511, %v809, 0.0
        %v1544 = vsel %vm1512, %v808, 0.0
        %v1545 = vsel %vm1513, %v807, 0.0
        %v1546 = vsel %vm1514, %v806, 0.0
        %v1547 = vsel %vm1515, %v805, 0.0
        %v1548 = vsel %vm1516, %v804, 0.0
        %v1549 = vsel %vm1517, %v803, 0.0
        %v1550 = vsel %vm1518, %v802, 0.0
        %v1551 = vsel %vm1519, %v801, 0.0
        %v1552 = vsel %vm1520, %v800, 0.0
        %v1553 = vsel %vm1521, %v799, 0.0
        %v1554 = vsel %vm1522, %v798, 0.0
        %v1555 = vsel %vm1523, %v797, 0.0
        %v1556 = vsel %vm1524, %v796, 0.0
        %v1557 = vsel %vm1525, %v795, 0.0
        %v1558 = vsel %vm1526, %v794, 0.0
        %v1559 = vsel %vm1527, %v793, 0.0
        %v1560 = vsel %vm1528, %v824, 0.0
        %v1561 = vsel %vm1529, %v823, 0.0
        %v1562 = vsel %vm728, 1, 0
        %v1563 = vsel %vm729, 1, 0
        %v1564 = vsel %vm730, 1, 0
        %v1565 = vsel %vm731, 1, 0
        %v1566 = vsel %vm732, 1, 0
        %v1567 = vsel %vm733, 1, 0
        %v1568 = vsel %vm734, 1, 0
        %v1569 = vsel %vm735, 1, 0
        %v1570 = vsel %vm736, 1, 0
        %v1571 = vsel %vm737, 1, 0
        %v1572 = vsel %vm738, 1, 0
        %v1573 = vsel %vm739, 1, 0
        %v1574 = vsel %vm740, 1, 0
        %v1575 = vsel %vm741, 1, 0
        %v1576 = vsel %vm742, 1, 0
        %v1577 = vsel %vm743, 1, 0
        %v1578 = vsel %vm744, 1, 0
        %v1579 = vsel %vm745, 1, 0
        %v1580 = vsel %vm746, 1, 0
        %v1581 = vsel %vm747, 1, 0
        %v1582 = vsel %vm748, 1, 0
        %v1583 = vsel %vm749, 1, 0
        %v1584 = vsel %vm750, 1, 0
        %v1585 = vsel %vm751, 1, 0
        %v1586 = vsel %vm752, 1, 0
        %v1587 = vsel %vm753, 1, 0
        %v1588 = vsel %vm754, 1, 0
        %v1589 = vsel %vm755, 1, 0
        %v1590 = vsel %vm756, 1, 0
        %v1591 = vsel %vm757, 1, 0
        %v1592 = vsel %vm758, 1, 0
        %v1593 = vsel %vm759, 1, 0
        %vm1594 = vcmp.eq.s32.totalorder %v1562, 1
        %vm1595 = vcmp.eq.s32.totalorder %v1563, 1
        %vm1596 = vcmp.eq.s32.totalorder %v1564, 1
        %vm1597 = vcmp.eq.s32.totalorder %v1565, 1
        %vm1598 = vcmp.eq.s32.totalorder %v1566, 1
        %vm1599 = vcmp.eq.s32.totalorder %v1567, 1
        %vm1600 = vcmp.eq.s32.totalorder %v1568, 1
        %vm1601 = vcmp.eq.s32.totalorder %v1569, 1
        %vm1602 = vcmp.eq.s32.totalorder %v1570, 1
        %vm1603 = vcmp.eq.s32.totalorder %v1571, 1
        %vm1604 = vcmp.eq.s32.totalorder %v1572, 1
        %vm1605 = vcmp.eq.s32.totalorder %v1573, 1
        %vm1606 = vcmp.eq.s32.totalorder %v1574, 1
        %vm1607 = vcmp.eq.s32.totalorder %v1575, 1
        %vm1608 = vcmp.eq.s32.totalorder %v1576, 1
        %vm1609 = vcmp.eq.s32.totalorder %v1577, 1
        %vm1610 = vcmp.eq.s32.totalorder %v1578, 1
        %vm1611 = vcmp.eq.s32.totalorder %v1579, 1
        %vm1612 = vcmp.eq.s32.totalorder %v1580, 1
        %vm1613 = vcmp.eq.s32.totalorder %v1581, 1
        %vm1614 = vcmp.eq.s32.totalorder %v1582, 1
        %vm1615 = vcmp.eq.s32.totalorder %v1583, 1
        %vm1616 = vcmp.eq.s32.totalorder %v1584, 1
        %vm1617 = vcmp.eq.s32.totalorder %v1585, 1
        %vm1618 = vcmp.eq.s32.totalorder %v1586, 1
        %vm1619 = vcmp.eq.s32.totalorder %v1587, 1
        %vm1620 = vcmp.eq.s32.totalorder %v1588, 1
        %vm1621 = vcmp.eq.s32.totalorder %v1589, 1
        %vm1622 = vcmp.eq.s32.totalorder %v1590, 1
        %vm1623 = vcmp.eq.s32.totalorder %v1591, 1
        %vm1624 = vcmp.eq.s32.totalorder %v1592, 1
        %vm1625 = vcmp.eq.s32.totalorder %v1593, 1
        %v1626 = vsel %vm1594, %v473, 0.0
        %v1627 = vsel %vm1595, %v474, 0.0
        %v1628 = vsel %vm1596, %v475, 0.0
        %v1629 = vsel %vm1597, %v476, 0.0
        %v1630 = vsel %vm1598, %v477, 0.0
        %v1631 = vsel %vm1599, %v478, 0.0
        %v1632 = vsel %vm1600, %v479, 0.0
        %v1633 = vsel %vm1601, %v480, 0.0
        %v1634 = vsel %vm1602, %v481, 0.0
        %v1635 = vsel %vm1603, %v482, 0.0
        %v1636 = vsel %vm1604, %v483, 0.0
        %v1637 = vsel %vm1605, %v484, 0.0
        %v1638 = vsel %vm1606, %v485, 0.0
        %v1639 = vsel %vm1607, %v486, 0.0
        %v1640 = vsel %vm1608, %v487, 0.0
        %v1641 = vsel %vm1609, %v488, 0.0
        %v1642 = vsel %vm1610, %v489, 0.0
        %v1643 = vsel %vm1611, %v490, 0.0
        %v1644 = vsel %vm1612, %v491, 0.0
        %v1645 = vsel %vm1613, %v492, 0.0
        %v1646 = vsel %vm1614, %v493, 0.0
        %v1647 = vsel %vm1615, %v494, 0.0
        %v1648 = vsel %vm1616, %v495, 0.0
        %v1649 = vsel %vm1617, %v496, 0.0
        %v1650 = vsel %vm1618, %v497, 0.0
        %v1651 = vsel %vm1619, %v498, 0.0
        %v1652 = vsel %vm1620, %v499, 0.0
        %v1653 = vsel %vm1621, %v500, 0.0
        %v1654 = vsel %vm1622, %v501, 0.0
        %v1655 = vsel %vm1623, %v502, 0.0
        %v1656 = vsel %vm1624, %v471, 0.0
        %v1657 = vsel %vm1625, %v472, 0.0
        %vm1658 = vmand %vm728, %vm664
        %vm1659 = vmand %vm729, %vm665
        %vm1660 = vmand %vm730, %vm666
        %vm1661 = vmand %vm731, %vm667
        %vm1662 = vmand %vm732, %vm668
        %vm1663 = vmand %vm733, %vm669
        %vm1664 = vmand %vm734, %vm670
        %vm1665 = vmand %vm735, %vm671
        %vm1666 = vmand %vm736, %vm672
        %vm1667 = vmand %vm737, %vm673
        %vm1668 = vmand %vm738, %vm674
        %vm1669 = vmand %vm739, %vm675
        %vm1670 = vmand %vm740, %vm676
        %vm1671 = vmand %vm741, %vm677
        %vm1672 = vmand %vm742, %vm678
        %vm1673 = vmand %vm743, %vm679
        %vm1674 = vmand %vm744, %vm680
        %vm1675 = vmand %vm745, %vm681
        %vm1676 = vmand %vm746, %vm682
        %vm1677 = vmand %vm747, %vm683
        %vm1678 = vmand %vm748, %vm684
        %vm1679 = vmand %vm749, %vm685
        %vm1680 = vmand %vm750, %vm686
        %vm1681 = vmand %vm751, %vm687
        %vm1682 = vmand %vm752, %vm688
        %vm1683 = vmand %vm753, %vm689
        %vm1684 = vmand %vm754, %vm690
        %vm1685 = vmand %vm755, %vm691
        %vm1686 = vmand %vm756, %vm692
        %vm1687 = vmand %vm757, %vm693
        %vm1688 = vmand %vm758, %vm694
        %vm1689 = vmand %vm759, %vm695
        %v1690 = vsel %vm1658, 1, 0
        %v1691 = vsel %vm1659, 1, 0
        %v1692 = vsel %vm1660, 1, 0
        %v1693 = vsel %vm1661, 1, 0
        %v1694 = vsel %vm1662, 1, 0
        %v1695 = vsel %vm1663, 1, 0
        %v1696 = vsel %vm1664, 1, 0
        %v1697 = vsel %vm1665, 1, 0
        %v1698 = vsel %vm1666, 1, 0
        %v1699 = vsel %vm1667, 1, 0
        %v1700 = vsel %vm1668, 1, 0
        %v1701 = vsel %vm1669, 1, 0
        %v1702 = vsel %vm1670, 1, 0
        %v1703 = vsel %vm1671, 1, 0
        %v1704 = vsel %vm1672, 1, 0
        %v1705 = vsel %vm1673, 1, 0
        %v1706 = vsel %vm1674, 1, 0
        %v1707 = vsel %vm1675, 1, 0
        %v1708 = vsel %vm1676, 1, 0
        %v1709 = vsel %vm1677, 1, 0
        %v1710 = vsel %vm1678, 1, 0
        %v1711 = vsel %vm1679, 1, 0
        %v1712 = vsel %vm1680, 1, 0
        %v1713 = vsel %vm1681, 1, 0
        %v1714 = vsel %vm1682, 1, 0
        %v1715 = vsel %vm1683, 1, 0
        %v1716 = vsel %vm1684, 1, 0
        %v1717 = vsel %vm1685, 1, 0
        %v1718 = vsel %vm1686, 1, 0
        %v1719 = vsel %vm1687, 1, 0
        %v1720 = vsel %vm1688, 1, 0
        %v1721 = vsel %vm1689, 1, 0
        %vm1722 = vcmp.eq.s32.totalorder %v1690, 1
        %vm1723 = vcmp.eq.s32.totalorder %v1691, 1
        %vm1724 = vcmp.eq.s32.totalorder %v1692, 1
        %vm1725 = vcmp.eq.s32.totalorder %v1693, 1
        %vm1726 = vcmp.eq.s32.totalorder %v1694, 1
        %vm1727 = vcmp.eq.s32.totalorder %v1695, 1
        %vm1728 = vcmp.eq.s32.totalorder %v1696, 1
        %vm1729 = vcmp.eq.s32.totalorder %v1697, 1
        %vm1730 = vcmp.eq.s32.totalorder %v1698, 1
        %vm1731 = vcmp.eq.s32.totalorder %v1699, 1
        %vm1732 = vcmp.eq.s32.totalorder %v1700, 1
        %vm1733 = vcmp.eq.s32.totalorder %v1701, 1
        %vm1734 = vcmp.eq.s32.totalorder %v1702, 1
        %vm1735 = vcmp.eq.s32.totalorder %v1703, 1
        %vm1736 = vcmp.eq.s32.totalorder %v1704, 1
        %vm1737 = vcmp.eq.s32.totalorder %v1705, 1
        %vm1738 = vcmp.eq.s32.totalorder %v1706, 1
        %vm1739 = vcmp.eq.s32.totalorder %v1707, 1
        %vm1740 = vcmp.eq.s32.totalorder %v1708, 1
        %vm1741 = vcmp.eq.s32.totalorder %v1709, 1
        %vm1742 = vcmp.eq.s32.totalorder %v1710, 1
        %vm1743 = vcmp.eq.s32.totalorder %v1711, 1
        %vm1744 = vcmp.eq.s32.totalorder %v1712, 1
        %vm1745 = vcmp.eq.s32.totalorder %v1713, 1
        %vm1746 = vcmp.eq.s32.totalorder %v1714, 1
        %vm1747 = vcmp.eq.s32.totalorder %v1715, 1
        %vm1748 = vcmp.eq.s32.totalorder %v1716, 1
        %vm1749 = vcmp.eq.s32.totalorder %v1717, 1
        %vm1750 = vcmp.eq.s32.totalorder %v1718, 1
        %vm1751 = vcmp.eq.s32.totalorder %v1719, 1
        %vm1752 = vcmp.eq.s32.totalorder %v1720, 1
        %vm1753 = vcmp.eq.s32.totalorder %v1721, 1
        %v1754 = vsel %vm1722, %v1110, 0.0
        %v1755 = vsel %vm1723, %v1109, 0.0
        %v1756 = vsel %vm1724, %v1108, 0.0
        %v1757 = vsel %vm1725, %v1107, 0.0
        %v1758 = vsel %vm1726, %v1106, 0.0
        %v1759 = vsel %vm1727, %v1105, 0.0
        %v1760 = vsel %vm1728, %v1104, 0.0
        %v1761 = vsel %vm1729, %v1103, 0.0
        %v1762 = vsel %vm1730, %v1102, 0.0
        %v1763 = vsel %vm1731, %v1101, 0.0
        %v1764 = vsel %vm1732, %v1100, 0.0
        %v1765 = vsel %vm1733, %v1099, 0.0
        %v1766 = vsel %vm1734, %v1098, 0.0
        %v1767 = vsel %vm1735, %v1097, 0.0
        %v1768 = vsel %vm1736, %v1096, 0.0
        %v1769 = vsel %vm1737, %v1095, 0.0
        %v1770 = vsel %vm1738, %v1094, 0.0
        %v1771 = vsel %vm1739, %v1093, 0.0
        %v1772 = vsel %vm1740, %v1092, 0.0
        %v1773 = vsel %vm1741, %v1091, 0.0
        %v1774 = vsel %vm1742, %v1090, 0.0
        %v1775 = vsel %vm1743, %v1089, 0.0
        %v1776 = vsel %vm1744, %v1088, 0.0
        %v1777 = vsel %vm1745, %v1087, 0.0
        %v1778 = vsel %vm1746, %v1086, 0.0
        %v1779 = vsel %vm1747, %v1085, 0.0
        %v1780 = vsel %vm1748, %v1084, 0.0
        %v1781 = vsel %vm1749, %v1083, 0.0
        %v1782 = vsel %vm1750, %v1082, 0.0
        %v1783 = vsel %vm1751, %v1113, 0.0
        %v1784 = vsel %vm1752, %v1112, 0.0
        %v1785 = vsel %vm1753, %v1111, 0.0
        %1818 = vrot.lane.b32.xlu0 %v1017, 4
        %v1819 = vpop.permute.xlu0 %1818
        %1820 = vrot.lane.b32.xlu0 %v1018, 4
        %v1821 = vpop.permute.xlu0 %1820
        %1822 = vrot.lane.b32.xlu0 %v1019, 4
        %v1823 = vpop.permute.xlu0 %1822
        %1824 = vrot.lane.b32.xlu0 %v1020, 4
        %v1825 = vpop.permute.xlu0 %1824
        %1826 = vrot.lane.b32.xlu0 %v1021, 4
        %v1827 = vpop.permute.xlu0 %1826
        %1828 = vrot.lane.b32.xlu0 %v1022, 4
        %v1829 = vpop.permute.xlu0 %1828
        %1830 = vrot.lane.b32.xlu0 %v1023, 4
        %v1831 = vpop.permute.xlu0 %1830
        %1832 = vrot.lane.b32.xlu0 %v1024, 4
        %v1833 = vpop.permute.xlu0 %1832
        %1834 = vrot.lane.b32.xlu0 %v1025, 4
        %v1835 = vpop.permute.xlu0 %1834
        %1836 = vrot.lane.b32.xlu0 %v1026, 4
        %v1837 = vpop.permute.xlu0 %1836
        %1838 = vrot.lane.b32.xlu0 %v1027, 4
        %v1839 = vpop.permute.xlu0 %1838
        %1840 = vrot.lane.b32.xlu0 %v1028, 4
        %v1841 = vpop.permute.xlu0 %1840
        %1842 = vrot.lane.b32.xlu0 %v1029, 4
        %v1843 = vpop.permute.xlu0 %1842
        %1844 = vrot.lane.b32.xlu0 %v1030, 4
        %v1845 = vpop.permute.xlu0 %1844
        %1846 = vrot.lane.b32.xlu0 %v1031, 4
        %v1847 = vpop.permute.xlu0 %1846
        %1848 = vrot.lane.b32.xlu0 %v1032, 4
        %v1849 = vpop.permute.xlu0 %1848
        %1850 = vrot.lane.b32.xlu0 %v1033, 4
        %v1851 = vpop.permute.xlu0 %1850
        %1852 = vrot.lane.b32.xlu0 %v1034, 4
        %v1853 = vpop.permute.xlu0 %1852
        %1854 = vrot.lane.b32.xlu0 %v1035, 4
        %v1855 = vpop.permute.xlu0 %1854
        %1856 = vrot.lane.b32.xlu0 %v1036, 4
        %v1857 = vpop.permute.xlu0 %1856
        %1858 = vrot.lane.b32.xlu0 %v1037, 4
        %v1859 = vpop.permute.xlu0 %1858
        %1860 = vrot.lane.b32.xlu0 %v1038, 4
        %v1861 = vpop.permute.xlu0 %1860
        %1862 = vrot.lane.b32.xlu0 %v1039, 4
        %v1863 = vpop.permute.xlu0 %1862
        %1864 = vrot.lane.b32.xlu0 %v1040, 4
        %v1865 = vpop.permute.xlu0 %1864
        %1866 = vrot.lane.b32.xlu0 %v1041, 4
        %v1867 = vpop.permute.xlu0 %1866
        %1868 = vrot.lane.b32.xlu0 %v1042, 4
        %v1869 = vpop.permute.xlu0 %1868
        %1870 = vrot.lane.b32.xlu0 %v1043, 4
        %v1871 = vpop.permute.xlu0 %1870
        %1872 = vrot.lane.b32.xlu0 %v1044, 4
        %v1873 = vpop.permute.xlu0 %1872
        %1874 = vrot.lane.b32.xlu0 %v1045, 4
        %v1875 = vpop.permute.xlu0 %1874
        %1876 = vrot.lane.b32.xlu0 %v1046, 4
        %v1877 = vpop.permute.xlu0 %1876
        %1878 = vrot.lane.b32.xlu0 %v1047, 4
        %v1879 = vpop.permute.xlu0 %1878
        %1880 = vrot.lane.b32.xlu0 %v1048, 4
        %v1881 = vpop.permute.xlu0 %1880
        %1946 = vrot.lane.b32.xlu0 %v1210, 8
        %v1947 = vpop.permute.xlu0 %1946
        %1948 = vrot.lane.b32.xlu0 %v1211, 8
        %v1949 = vpop.permute.xlu0 %1948
        %1950 = vrot.lane.b32.xlu0 %v1212, 8
        %v1951 = vpop.permute.xlu0 %1950
        %1952 = vrot.lane.b32.xlu0 %v1213, 8
        %v1953 = vpop.permute.xlu0 %1952
        %1954 = vrot.lane.b32.xlu0 %v1214, 8
        %v1955 = vpop.permute.xlu0 %1954
        %1956 = vrot.lane.b32.xlu0 %v1215, 8
        %v1957 = vpop.permute.xlu0 %1956
        %1958 = vrot.lane.b32.xlu0 %v1216, 8
        %v1959 = vpop.permute.xlu0 %1958
        %1960 = vrot.lane.b32.xlu0 %v1217, 8
        %v1961 = vpop.permute.xlu0 %1960
        %1962 = vrot.lane.b32.xlu0 %v1218, 8
        %v1963 = vpop.permute.xlu0 %1962
        %1964 = vrot.lane.b32.xlu0 %v1219, 8
        %v1965 = vpop.permute.xlu0 %1964
        %1966 = vrot.lane.b32.xlu0 %v1220, 8
        %v1967 = vpop.permute.xlu0 %1966
        %1968 = vrot.lane.b32.xlu0 %v1221, 8
        %v1969 = vpop.permute.xlu0 %1968
        %1970 = vrot.lane.b32.xlu0 %v1222, 8
        %v1971 = vpop.permute.xlu0 %1970
        %1972 = vrot.lane.b32.xlu0 %v1223, 8
        %v1973 = vpop.permute.xlu0 %1972
        %1974 = vrot.lane.b32.xlu0 %v1224, 8
        %v1975 = vpop.permute.xlu0 %1974
        %1976 = vrot.lane.b32.xlu0 %v1225, 8
        %v1977 = vpop.permute.xlu0 %1976
        %1978 = vrot.lane.b32.xlu0 %v1226, 8
        %v1979 = vpop.permute.xlu0 %1978
        %1980 = vrot.lane.b32.xlu0 %v1227, 8
        %v1981 = vpop.permute.xlu0 %1980
        %1982 = vrot.lane.b32.xlu0 %v1228, 8
        %v1983 = vpop.permute.xlu0 %1982
        %1984 = vrot.lane.b32.xlu0 %v1229, 8
        %v1985 = vpop.permute.xlu0 %1984
        %1986 = vrot.lane.b32.xlu0 %v1230, 8
        %v1987 = vpop.permute.xlu0 %1986
        %1988 = vrot.lane.b32.xlu0 %v1231, 8
        %v1989 = vpop.permute.xlu0 %1988
        %1990 = vrot.lane.b32.xlu0 %v1232, 8
        %v1991 = vpop.permute.xlu0 %1990
        %1992 = vrot.lane.b32.xlu0 %v1233, 8
        %v1993 = vpop.permute.xlu0 %1992
        %1994 = vrot.lane.b32.xlu0 %v1234, 8
        %v1995 = vpop.permute.xlu0 %1994
        %1996 = vrot.lane.b32.xlu0 %v1235, 8
        %v1997 = vpop.permute.xlu0 %1996
        %1998 = vrot.lane.b32.xlu0 %v1236, 8
        %v1999 = vpop.permute.xlu0 %1998
        %2000 = vrot.lane.b32.xlu0 %v1237, 8
        %v2001 = vpop.permute.xlu0 %2000
        %2002 = vrot.lane.b32.xlu0 %v1238, 8
        %v2003 = vpop.permute.xlu0 %2002
        %2004 = vrot.lane.b32.xlu0 %v1239, 8
        %v2005 = vpop.permute.xlu0 %2004
        %2006 = vrot.lane.b32.xlu0 %v1240, 8
        %v2007 = vpop.permute.xlu0 %2006
        %2008 = vrot.lane.b32.xlu0 %v1241, 8
        %v2009 = vpop.permute.xlu0 %2008
        %2074 = vrot.lane.b32.xlu0 %v1306, 12
        %v2075 = vpop.permute.xlu0 %2074
        %2076 = vrot.lane.b32.xlu0 %v1307, 12
        %v2077 = vpop.permute.xlu0 %2076
        %2078 = vrot.lane.b32.xlu0 %v1308, 12
        %v2079 = vpop.permute.xlu0 %2078
        %2080 = vrot.lane.b32.xlu0 %v1309, 12
        %v2081 = vpop.permute.xlu0 %2080
        %2082 = vrot.lane.b32.xlu0 %v1310, 12
        %v2083 = vpop.permute.xlu0 %2082
        %2084 = vrot.lane.b32.xlu0 %v1311, 12
        %v2085 = vpop.permute.xlu0 %2084
        %2086 = vrot.lane.b32.xlu0 %v1312, 12
        %v2087 = vpop.permute.xlu0 %2086
        %2088 = vrot.lane.b32.xlu0 %v1313, 12
        %v2089 = vpop.permute.xlu0 %2088
        %2090 = vrot.lane.b32.xlu0 %v1314, 12
        %v2091 = vpop.permute.xlu0 %2090
        %2092 = vrot.lane.b32.xlu0 %v1315, 12
        %v2093 = vpop.permute.xlu0 %2092
        %2094 = vrot.lane.b32.xlu0 %v1316, 12
        %v2095 = vpop.permute.xlu0 %2094
        %2096 = vrot.lane.b32.xlu0 %v1317, 12
        %v2097 = vpop.permute.xlu0 %2096
        %2098 = vrot.lane.b32.xlu0 %v1318, 12
        %v2099 = vpop.permute.xlu0 %2098
        %2100 = vrot.lane.b32.xlu0 %v1319, 12
        %v2101 = vpop.permute.xlu0 %2100
        %2102 = vrot.lane.b32.xlu0 %v1320, 12
        %v2103 = vpop.permute.xlu0 %2102
        %2104 = vrot.lane.b32.xlu0 %v1321, 12
        %v2105 = vpop.permute.xlu0 %2104
        %2106 = vrot.lane.b32.xlu0 %v1322, 12
        %v2107 = vpop.permute.xlu0 %2106
        %2108 = vrot.lane.b32.xlu0 %v1323, 12
        %v2109 = vpop.permute.xlu0 %2108
        %2110 = vrot.lane.b32.xlu0 %v1324, 12
        %v2111 = vpop.permute.xlu0 %2110
        %2112 = vrot.lane.b32.xlu0 %v1325, 12
        %v2113 = vpop.permute.xlu0 %2112
        %2114 = vrot.lane.b32.xlu0 %v1326, 12
        %v2115 = vpop.permute.xlu0 %2114
        %2116 = vrot.lane.b32.xlu0 %v1327, 12
        %v2117 = vpop.permute.xlu0 %2116
        %2118 = vrot.lane.b32.xlu0 %v1328, 12
        %v2119 = vpop.permute.xlu0 %2118
        %2120 = vrot.lane.b32.xlu0 %v1329, 12
        %v2121 = vpop.permute.xlu0 %2120
        %2122 = vrot.lane.b32.xlu0 %v1330, 12
        %v2123 = vpop.permute.xlu0 %2122
        %2124 = vrot.lane.b32.xlu0 %v1331, 12
        %v2125 = vpop.permute.xlu0 %2124
        %2126 = vrot.lane.b32.xlu0 %v1332, 12
        %v2127 = vpop.permute.xlu0 %2126
        %2128 = vrot.lane.b32.xlu0 %v1333, 12
        %v2129 = vpop.permute.xlu0 %2128
        %2130 = vrot.lane.b32.xlu0 %v1334, 12
        %v2131 = vpop.permute.xlu0 %2130
        %2132 = vrot.lane.b32.xlu0 %v1335, 12
        %v2133 = vpop.permute.xlu0 %2132
        %2134 = vrot.lane.b32.xlu0 %v1336, 12
        %v2135 = vpop.permute.xlu0 %2134
        %2136 = vrot.lane.b32.xlu0 %v1337, 12
        %v2137 = vpop.permute.xlu0 %2136
        %2202 = vrot.lane.b32.xlu0 %v471, 16
        %v2203 = vpop.permute.xlu0 %2202
        %2204 = vrot.lane.b32.xlu0 %v472, 16
        %v2205 = vpop.permute.xlu0 %2204
        %2206 = vrot.lane.b32.xlu0 %v473, 16
        %v2207 = vpop.permute.xlu0 %2206
        %2208 = vrot.lane.b32.xlu0 %v474, 16
        %v2209 = vpop.permute.xlu0 %2208
        %2210 = vrot.lane.b32.xlu0 %v475, 16
        %v2211 = vpop.permute.xlu0 %2210
        %2212 = vrot.lane.b32.xlu0 %v476, 16
        %v2213 = vpop.permute.xlu0 %2212
        %2214 = vrot.lane.b32.xlu0 %v477, 16
        %v2215 = vpop.permute.xlu0 %2214
        %2216 = vrot.lane.b32.xlu0 %v478, 16
        %v2217 = vpop.permute.xlu0 %2216
        %2218 = vrot.lane.b32.xlu0 %v479, 16
        %v2219 = vpop.permute.xlu0 %2218
        %2220 = vrot.lane.b32.xlu0 %v480, 16
        %v2221 = vpop.permute.xlu0 %2220
        %2222 = vrot.lane.b32.xlu0 %v481, 16
        %v2223 = vpop.permute.xlu0 %2222
        %2224 = vrot.lane.b32.xlu0 %v482, 16
        %v2225 = vpop.permute.xlu0 %2224
        %2226 = vrot.lane.b32.xlu0 %v483, 16
        %v2227 = vpop.permute.xlu0 %2226
        %2228 = vrot.lane.b32.xlu0 %v484, 16
        %v2229 = vpop.permute.xlu0 %2228
        %2230 = vrot.lane.b32.xlu0 %v485, 16
        %v2231 = vpop.permute.xlu0 %2230
        %2232 = vrot.lane.b32.xlu0 %v486, 16
        %v2233 = vpop.permute.xlu0 %2232
        %2234 = vrot.lane.b32.xlu0 %v487, 16
        %v2235 = vpop.permute.xlu0 %2234
        %2236 = vrot.lane.b32.xlu0 %v488, 16
        %v2237 = vpop.permute.xlu0 %2236
        %2238 = vrot.lane.b32.xlu0 %v489, 16
        %v2239 = vpop.permute.xlu0 %2238
        %2240 = vrot.lane.b32.xlu0 %v490, 16
        %v2241 = vpop.permute.xlu0 %2240
        %2242 = vrot.lane.b32.xlu0 %v491, 16
        %v2243 = vpop.permute.xlu0 %2242
        %2244 = vrot.lane.b32.xlu0 %v492, 16
        %v2245 = vpop.permute.xlu0 %2244
        %2246 = vrot.lane.b32.xlu0 %v493, 16
        %v2247 = vpop.permute.xlu0 %2246
        %2248 = vrot.lane.b32.xlu0 %v494, 16
        %v2249 = vpop.permute.xlu0 %2248
        %2250 = vrot.lane.b32.xlu0 %v495, 16
        %v2251 = vpop.permute.xlu0 %2250
        %2252 = vrot.lane.b32.xlu0 %v496, 16
        %v2253 = vpop.permute.xlu0 %2252
        %2254 = vrot.lane.b32.xlu0 %v497, 16
        %v2255 = vpop.permute.xlu0 %2254
        %2256 = vrot.lane.b32.xlu0 %v498, 16
        %v2257 = vpop.permute.xlu0 %2256
        %2258 = vrot.lane.b32.xlu0 %v499, 16
        %v2259 = vpop.permute.xlu0 %2258
        %2260 = vrot.lane.b32.xlu0 %v500, 16
        %v2261 = vpop.permute.xlu0 %2260
        %2262 = vrot.lane.b32.xlu0 %v501, 16
        %v2263 = vpop.permute.xlu0 %2262
        %2264 = vrot.lane.b32.xlu0 %v502, 16
        %v2265 = vpop.permute.xlu0 %2264
        %2330 = vrot.lane.b32.xlu0 %v1402, 20
        %v2331 = vpop.permute.xlu0 %2330
        %2332 = vrot.lane.b32.xlu0 %v1403, 20
        %v2333 = vpop.permute.xlu0 %2332
        %2334 = vrot.lane.b32.xlu0 %v1404, 20
        %v2335 = vpop.permute.xlu0 %2334
        %2336 = vrot.lane.b32.xlu0 %v1405, 20
        %v2337 = vpop.permute.xlu0 %2336
        %2338 = vrot.lane.b32.xlu0 %v1406, 20
        %v2339 = vpop.permute.xlu0 %2338
        %2340 = vrot.lane.b32.xlu0 %v1407, 20
        %v2341 = vpop.permute.xlu0 %2340
        %2342 = vrot.lane.b32.xlu0 %v1408, 20
        %v2343 = vpop.permute.xlu0 %2342
        %2344 = vrot.lane.b32.xlu0 %v1409, 20
        %v2345 = vpop.permute.xlu0 %2344
        %2346 = vrot.lane.b32.xlu0 %v1410, 20
        %v2347 = vpop.permute.xlu0 %2346
        %2348 = vrot.lane.b32.xlu0 %v1411, 20
        %v2349 = vpop.permute.xlu0 %2348
        %2350 = vrot.lane.b32.xlu0 %v1412, 20
        %v2351 = vpop.permute.xlu0 %2350
        %2352 = vrot.lane.b32.xlu0 %v1413, 20
        %v2353 = vpop.permute.xlu0 %2352
        %2354 = vrot.lane.b32.xlu0 %v1414, 20
        %v2355 = vpop.permute.xlu0 %2354
        %2356 = vrot.lane.b32.xlu0 %v1415, 20
        %v2357 = vpop.permute.xlu0 %2356
        %2358 = vrot.lane.b32.xlu0 %v1416, 20
        %v2359 = vpop.permute.xlu0 %2358
        %2360 = vrot.lane.b32.xlu0 %v1417, 20
        %v2361 = vpop.permute.xlu0 %2360
        %2362 = vrot.lane.b32.xlu0 %v1418, 20
        %v2363 = vpop.permute.xlu0 %2362
        %2364 = vrot.lane.b32.xlu0 %v1419, 20
        %v2365 = vpop.permute.xlu0 %2364
        %2366 = vrot.lane.b32.xlu0 %v1420, 20
        %v2367 = vpop.permute.xlu0 %2366
        %2368 = vrot.lane.b32.xlu0 %v1421, 20
        %v2369 = vpop.permute.xlu0 %2368
        %2370 = vrot.lane.b32.xlu0 %v1422, 20
        %v2371 = vpop.permute.xlu0 %2370
        %2372 = vrot.lane.b32.xlu0 %v1423, 20
        %v2373 = vpop.permute.xlu0 %2372
        %2374 = vrot.lane.b32.xlu0 %v1424, 20
        %v2375 = vpop.permute.xlu0 %2374
        %2376 = vrot.lane.b32.xlu0 %v1425, 20
        %v2377 = vpop.permute.xlu0 %2376
        %2378 = vrot.lane.b32.xlu0 %v1426, 20
        %v2379 = vpop.permute.xlu0 %2378
        %2380 = vrot.lane.b32.xlu0 %v1427, 20
        %v2381 = vpop.permute.xlu0 %2380
        %2382 = vrot.lane.b32.xlu0 %v1428, 20
        %v2383 = vpop.permute.xlu0 %2382
        %2384 = vrot.lane.b32.xlu0 %v1429, 20
        %v2385 = vpop.permute.xlu0 %2384
        %2386 = vrot.lane.b32.xlu0 %v1430, 20
        %v2387 = vpop.permute.xlu0 %2386
        %2388 = vrot.lane.b32.xlu0 %v1431, 20
        %v2389 = vpop.permute.xlu0 %2388
        %2390 = vrot.lane.b32.xlu0 %v1432, 20
        %v2391 = vpop.permute.xlu0 %2390
        %2392 = vrot.lane.b32.xlu0 %v1433, 20
        %v2393 = vpop.permute.xlu0 %2392
        %2458 = vrot.lane.b32.xlu0 %v1530, 24
        %v2459 = vpop.permute.xlu0 %2458
        %2460 = vrot.lane.b32.xlu0 %v1531, 24
        %v2461 = vpop.permute.xlu0 %2460
        %2462 = vrot.lane.b32.xlu0 %v1532, 24
        %v2463 = vpop.permute.xlu0 %2462
        %2464 = vrot.lane.b32.xlu0 %v1533, 24
        %v2465 = vpop.permute.xlu0 %2464
        %2466 = vrot.lane.b32.xlu0 %v1534, 24
        %v2467 = vpop.permute.xlu0 %2466
        %2468 = vrot.lane.b32.xlu0 %v1535, 24
        %v2469 = vpop.permute.xlu0 %2468
        %2470 = vrot.lane.b32.xlu0 %v1536, 24
        %v2471 = vpop.permute.xlu0 %2470
        %2472 = vrot.lane.b32.xlu0 %v1537, 24
        %v2473 = vpop.permute.xlu0 %2472
        %2474 = vrot.lane.b32.xlu0 %v1538, 24
        %v2475 = vpop.permute.xlu0 %2474
        %2476 = vrot.lane.b32.xlu0 %v1539, 24
        %v2477 = vpop.permute.xlu0 %2476
        %2478 = vrot.lane.b32.xlu0 %v1540, 24
        %v2479 = vpop.permute.xlu0 %2478
        %2480 = vrot.lane.b32.xlu0 %v1541, 24
        %v2481 = vpop.permute.xlu0 %2480
        %2482 = vrot.lane.b32.xlu0 %v1542, 24
        %v2483 = vpop.permute.xlu0 %2482
        %2484 = vrot.lane.b32.xlu0 %v1543, 24
        %v2485 = vpop.permute.xlu0 %2484
        %2486 = vrot.lane.b32.xlu0 %v1544, 24
        %v2487 = vpop.permute.xlu0 %2486
        %2488 = vrot.lane.b32.xlu0 %v1545, 24
        %v2489 = vpop.permute.xlu0 %2488
        %2490 = vrot.lane.b32.xlu0 %v1546, 24
        %v2491 = vpop.permute.xlu0 %2490
        %2492 = vrot.lane.b32.xlu0 %v1547, 24
        %v2493 = vpop.permute.xlu0 %2492
        %2494 = vrot.lane.b32.xlu0 %v1548, 24
        %v2495 = vpop.permute.xlu0 %2494
        %2496 = vrot.lane.b32.xlu0 %v1549, 24
        %v2497 = vpop.permute.xlu0 %2496
        %2498 = vrot.lane.b32.xlu0 %v1550, 24
        %v2499 = vpop.permute.xlu0 %2498
        %2500 = vrot.lane.b32.xlu0 %v1551, 24
        %v2501 = vpop.permute.xlu0 %2500
        %2502 = vrot.lane.b32.xlu0 %v1552, 24
        %v2503 = vpop.permute.xlu0 %2502
        %2504 = vrot.lane.b32.xlu0 %v1553, 24
        %v2505 = vpop.permute.xlu0 %2504
        %2506 = vrot.lane.b32.xlu0 %v1554, 24
        %v2507 = vpop.permute.xlu0 %2506
        %2508 = vrot.lane.b32.xlu0 %v1555, 24
        %v2509 = vpop.permute.xlu0 %2508
        %2510 = vrot.lane.b32.xlu0 %v1556, 24
        %v2511 = vpop.permute.xlu0 %2510
        %2512 = vrot.lane.b32.xlu0 %v1557, 24
        %v2513 = vpop.permute.xlu0 %2512
        %2514 = vrot.lane.b32.xlu0 %v1558, 24
        %v2515 = vpop.permute.xlu0 %2514
        %2516 = vrot.lane.b32.xlu0 %v1559, 24
        %v2517 = vpop.permute.xlu0 %2516
        %2518 = vrot.lane.b32.xlu0 %v1560, 24
        %v2519 = vpop.permute.xlu0 %2518
        %2520 = vrot.lane.b32.xlu0 %v1561, 24
        %v2521 = vpop.permute.xlu0 %2520
        %2586 = vrot.lane.b32.xlu0 %v1626, 28
        %v2587 = vpop.permute.xlu0 %2586
        %2588 = vrot.lane.b32.xlu0 %v1627, 28
        %v2589 = vpop.permute.xlu0 %2588
        %2590 = vrot.lane.b32.xlu0 %v1628, 28
        %v2591 = vpop.permute.xlu0 %2590
        %2592 = vrot.lane.b32.xlu0 %v1629, 28
        %v2593 = vpop.permute.xlu0 %2592
        %2594 = vrot.lane.b32.xlu0 %v1630, 28
        %v2595 = vpop.permute.xlu0 %2594
        %2596 = vrot.lane.b32.xlu0 %v1631, 28
        %v2597 = vpop.permute.xlu0 %2596
        %2598 = vrot.lane.b32.xlu0 %v1632, 28
        %v2599 = vpop.permute.xlu0 %2598
        %2600 = vrot.lane.b32.xlu0 %v1633, 28
        %v2601 = vpop.permute.xlu0 %2600
        %2602 = vrot.lane.b32.xlu0 %v1634, 28
        %v2603 = vpop.permute.xlu0 %2602
        %2604 = vrot.lane.b32.xlu0 %v1635, 28
        %v2605 = vpop.permute.xlu0 %2604
        %2606 = vrot.lane.b32.xlu0 %v1636, 28
        %v2607 = vpop.permute.xlu0 %2606
        %2608 = vrot.lane.b32.xlu0 %v1637, 28
        %v2609 = vpop.permute.xlu0 %2608
        %2610 = vrot.lane.b32.xlu0 %v1638, 28
        %v2611 = vpop.permute.xlu0 %2610
        %2612 = vrot.lane.b32.xlu0 %v1639, 28
        %v2613 = vpop.permute.xlu0 %2612
        %2614 = vrot.lane.b32.xlu0 %v1640, 28
        %v2615 = vpop.permute.xlu0 %2614
        %2616 = vrot.lane.b32.xlu0 %v1641, 28
        %v2617 = vpop.permute.xlu0 %2616
        %2618 = vrot.lane.b32.xlu0 %v1642, 28
        %v2619 = vpop.permute.xlu0 %2618
        %2620 = vrot.lane.b32.xlu0 %v1643, 28
        %v2621 = vpop.permute.xlu0 %2620
        %2622 = vrot.lane.b32.xlu0 %v1644, 28
        %v2623 = vpop.permute.xlu0 %2622
        %2624 = vrot.lane.b32.xlu0 %v1645, 28
        %v2625 = vpop.permute.xlu0 %2624
        %2626 = vrot.lane.b32.xlu0 %v1646, 28
        %v2627 = vpop.permute.xlu0 %2626
        %2628 = vrot.lane.b32.xlu0 %v1647, 28
        %v2629 = vpop.permute.xlu0 %2628
        %2630 = vrot.lane.b32.xlu0 %v1648, 28
        %v2631 = vpop.permute.xlu0 %2630
        %2632 = vrot.lane.b32.xlu0 %v1649, 28
        %v2633 = vpop.permute.xlu0 %2632
        %2634 = vrot.lane.b32.xlu0 %v1650, 28
        %v2635 = vpop.permute.xlu0 %2634
        %2636 = vrot.lane.b32.xlu0 %v1651, 28
        %v2637 = vpop.permute.xlu0 %2636
        %2638 = vrot.lane.b32.xlu0 %v1652, 28
        %v2639 = vpop.permute.xlu0 %2638
        %2640 = vrot.lane.b32.xlu0 %v1653, 28
        %v2641 = vpop.permute.xlu0 %2640
        %2642 = vrot.lane.b32.xlu0 %v1654, 28
        %v2643 = vpop.permute.xlu0 %2642
        %2644 = vrot.lane.b32.xlu0 %v1655, 28
        %v2645 = vpop.permute.xlu0 %2644
        %2646 = vrot.lane.b32.xlu0 %v1656, 28
        %v2647 = vpop.permute.xlu0 %2646
        %2648 = vrot.lane.b32.xlu0 %v1657, 28
        %v2649 = vpop.permute.xlu0 %2648
        %2714 = vrot.lane.b32.xlu0 %v1754, 32
        %v2715 = vpop.permute.xlu0 %2714
        %2716 = vrot.lane.b32.xlu0 %v1755, 32
        %v2717 = vpop.permute.xlu0 %2716
        %2718 = vrot.lane.b32.xlu0 %v1756, 32
        %v2719 = vpop.permute.xlu0 %2718
        %2720 = vrot.lane.b32.xlu0 %v1757, 32
        %v2721 = vpop.permute.xlu0 %2720
        %2722 = vrot.lane.b32.xlu0 %v1758, 32
        %v2723 = vpop.permute.xlu0 %2722
        %2724 = vrot.lane.b32.xlu0 %v1759, 32
        %v2725 = vpop.permute.xlu0 %2724
        %2726 = vrot.lane.b32.xlu0 %v1760, 32
        %v2727 = vpop.permute.xlu0 %2726
        %2728 = vrot.lane.b32.xlu0 %v1761, 32
        %v2729 = vpop.permute.xlu0 %2728
        %2730 = vrot.lane.b32.xlu0 %v1762, 32
        %v2731 = vpop.permute.xlu0 %2730
        %2732 = vrot.lane.b32.xlu0 %v1763, 32
        %v2733 = vpop.permute.xlu0 %2732
        %2734 = vrot.lane.b32.xlu0 %v1764, 32
        %v2735 = vpop.permute.xlu0 %2734
        %2736 = vrot.lane.b32.xlu0 %v1765, 32
        %v2737 = vpop.permute.xlu0 %2736
        %2738 = vrot.lane.b32.xlu0 %v1766, 32
        %v2739 = vpop.permute.xlu0 %2738
        %2740 = vrot.lane.b32.xlu0 %v1767, 32
        %v2741 = vpop.permute.xlu0 %2740
        %2742 = vrot.lane.b32.xlu0 %v1768, 32
        %v2743 = vpop.permute.xlu0 %2742
        %2744 = vrot.lane.b32.xlu0 %v1769, 32
        %v2745 = vpop.permute.xlu0 %2744
        %2746 = vrot.lane.b32.xlu0 %v1770, 32
        %v2747 = vpop.permute.xlu0 %2746
        %2748 = vrot.lane.b32.xlu0 %v1771, 32
        %v2749 = vpop.permute.xlu0 %2748
        %2750 = vrot.lane.b32.xlu0 %v1772, 32
        %v2751 = vpop.permute.xlu0 %2750
        %2752 = vrot.lane.b32.xlu0 %v1773, 32
        %v2753 = vpop.permute.xlu0 %2752
        %2754 = vrot.lane.b32.xlu0 %v1774, 32
        %v2755 = vpop.permute.xlu0 %2754
        %2756 = vrot.lane.b32.xlu0 %v1775, 32
        %v2757 = vpop.permute.xlu0 %2756
        %2758 = vrot.lane.b32.xlu0 %v1776, 32
        %v2759 = vpop.permute.xlu0 %2758
        %2760 = vrot.lane.b32.xlu0 %v1777, 32
        %v2761 = vpop.permute.xlu0 %2760
        %2762 = vrot.lane.b32.xlu0 %v1778, 32
        %v2763 = vpop.permute.xlu0 %2762
        %2764 = vrot.lane.b32.xlu0 %v1779, 32
        %v2765 = vpop.permute.xlu0 %2764
        %2766 = vrot.lane.b32.xlu0 %v1780, 32
        %v2767 = vpop.permute.xlu0 %2766
        %2768 = vrot.lane.b32.xlu0 %v1781, 32
        %v2769 = vpop.permute.xlu0 %2768
        %2770 = vrot.lane.b32.xlu0 %v1782, 32
        %v2771 = vpop.permute.xlu0 %2770
        %2772 = vrot.lane.b32.xlu0 %v1783, 32
        %v2773 = vpop.permute.xlu0 %2772
        %2774 = vrot.lane.b32.xlu0 %v1784, 32
        %v2775 = vpop.permute.xlu0 %2774
        %2776 = vrot.lane.b32.xlu0 %v1785, 32
        %v2777 = vpop.permute.xlu0 %2776
        %vm2810 = vcmask 31744
        %v2811 = vsel %vm2810, %v921, %v1819
        %v2812 = vsel %vm2810, %v922, %v1821
        %v2813 = vsel %vm2810, %v923, %v1823
        %v2814 = vsel %vm2810, %v924, %v1825
        %v2815 = vsel %vm2810, %v925, %v1827
        %v2816 = vsel %vm2810, %v926, %v1829
        %v2817 = vsel %vm2810, %v927, %v1831
        %v2818 = vsel %vm2810, %v928, %v1833
        %v2819 = vsel %vm2810, %v929, %v1835
        %v2820 = vsel %vm2810, %v930, %v1837
        %v2821 = vsel %vm2810, %v931, %v1839
        %v2822 = vsel %vm2810, %v932, %v1841
        %v2823 = vsel %vm2810, %v933, %v1843
        %v2824 = vsel %vm2810, %v934, %v1845
        %v2825 = vsel %vm2810, %v935, %v1847
        %v2826 = vsel %vm2810, %v936, %v1849
        %v2827 = vsel %vm2810, %v937, %v1851
        %v2828 = vsel %vm2810, %v938, %v1853
        %v2829 = vsel %vm2810, %v939, %v1855
        %v2830 = vsel %vm2810, %v940, %v1857
        %v2831 = vsel %vm2810, %v941, %v1859
        %v2832 = vsel %vm2810, %v942, %v1861
        %v2833 = vsel %vm2810, %v943, %v1863
        %v2834 = vsel %vm2810, %v944, %v1865
        %v2835 = vsel %vm2810, %v945, %v1867
        %v2836 = vsel %vm2810, %v946, %v1869
        %v2837 = vsel %vm2810, %v947, %v1871
        %v2838 = vsel %vm2810, %v948, %v1873
        %v2839 = vsel %vm2810, %v949, %v1875
        %v2840 = vsel %vm2810, %v950, %v1877
        %v2841 = vsel %vm2810, %v951, %v1879
        %v2842 = vsel %vm2810, %v952, %v1881
        %vm2843 = vcmask 64512
        %v2844 = vsel %vm2843, %v2811, %v1947
        %v2845 = vsel %vm2843, %v2812, %v1949
        %v2846 = vsel %vm2843, %v2813, %v1951
        %v2847 = vsel %vm2843, %v2814, %v1953
        %v2848 = vsel %vm2843, %v2815, %v1955
        %v2849 = vsel %vm2843, %v2816, %v1957
        %v2850 = vsel %vm2843, %v2817, %v1959
        %v2851 = vsel %vm2843, %v2818, %v1961
        %v2852 = vsel %vm2843, %v2819, %v1963
        %v2853 = vsel %vm2843, %v2820, %v1965
        %v2854 = vsel %vm2843, %v2821, %v1967
        %v2855 = vsel %vm2843, %v2822, %v1969
        %v2856 = vsel %vm2843, %v2823, %v1971
        %v2857 = vsel %vm2843, %v2824, %v1973
        %v2858 = vsel %vm2843, %v2825, %v1975
        %v2859 = vsel %vm2843, %v2826, %v1977
        %v2860 = vsel %vm2843, %v2827, %v1979
        %v2861 = vsel %vm2843, %v2828, %v1981
        %v2862 = vsel %vm2843, %v2829, %v1983
        %v2863 = vsel %vm2843, %v2830, %v1985
        %v2864 = vsel %vm2843, %v2831, %v1987
        %v2865 = vsel %vm2843, %v2832, %v1989
        %v2866 = vsel %vm2843, %v2833, %v1991
        %v2867 = vsel %vm2843, %v2834, %v1993
        %v2868 = vsel %vm2843, %v2835, %v1995
        %v2869 = vsel %vm2843, %v2836, %v1997
        %v2870 = vsel %vm2843, %v2837, %v1999
        %v2871 = vsel %vm2843, %v2838, %v2001
        %v2872 = vsel %vm2843, %v2839, %v2003
        %v2873 = vsel %vm2843, %v2840, %v2005
        %v2874 = vsel %vm2843, %v2841, %v2007
        %v2875 = vsel %vm2843, %v2842, %v2009
        %vm2876 = vcmask 97280
        %v2877 = vsel %vm2876, %v2844, %v2075
        %v2878 = vsel %vm2876, %v2845, %v2077
        %v2879 = vsel %vm2876, %v2846, %v2079
        %v2880 = vsel %vm2876, %v2847, %v2081
        %v2881 = vsel %vm2876, %v2848, %v2083
        %v2882 = vsel %vm2876, %v2849, %v2085
        %v2883 = vsel %vm2876, %v2850, %v2087
        %v2884 = vsel %vm2876, %v2851, %v2089
        %v2885 = vsel %vm2876, %v2852, %v2091
        %v2886 = vsel %vm2876, %v2853, %v2093
        %v2887 = vsel %vm2876, %v2854, %v2095
        %v2888 = vsel %vm2876, %v2855, %v2097
        %v2889 = vsel %vm2876, %v2856, %v2099
        %v2890 = vsel %vm2876, %v2857, %v2101
        %v2891 = vsel %vm2876, %v2858, %v2103
        %v2892 = vsel %vm2876, %v2859, %v2105
        %v2893 = vsel %vm2876, %v2860, %v2107
        %v2894 = vsel %vm2876, %v2861, %v2109
        %v2895 = vsel %vm2876, %v2862, %v2111
        %v2896 = vsel %vm2876, %v2863, %v2113
        %v2897 = vsel %vm2876, %v2864, %v2115
        %v2898 = vsel %vm2876, %v2865, %v2117
        %v2899 = vsel %vm2876, %v2866, %v2119
        %v2900 = vsel %vm2876, %v2867, %v2121
        %v2901 = vsel %vm2876, %v2868, %v2123
        %v2902 = vsel %vm2876, %v2869, %v2125
        %v2903 = vsel %vm2876, %v2870, %v2127
        %v2904 = vsel %vm2876, %v2871, %v2129
        %v2905 = vsel %vm2876, %v2872, %v2131
        %v2906 = vsel %vm2876, %v2873, %v2133
        %v2907 = vsel %vm2876, %v2874, %v2135
        %v2908 = vsel %vm2876, %v2875, %v2137
        %vm2909 = vcmask 130048
        %v2910 = vsel %vm2909, %v2877, %v2203
        %v2911 = vsel %vm2909, %v2878, %v2205
        %v2912 = vsel %vm2909, %v2879, %v2207
        %v2913 = vsel %vm2909, %v2880, %v2209
        %v2914 = vsel %vm2909, %v2881, %v2211
        %v2915 = vsel %vm2909, %v2882, %v2213
        %v2916 = vsel %vm2909, %v2883, %v2215
        %v2917 = vsel %vm2909, %v2884, %v2217
        %v2918 = vsel %vm2909, %v2885, %v2219
        %v2919 = vsel %vm2909, %v2886, %v2221
        %v2920 = vsel %vm2909, %v2887, %v2223
        %v2921 = vsel %vm2909, %v2888, %v2225
        %v2922 = vsel %vm2909, %v2889, %v2227
        %v2923 = vsel %vm2909, %v2890, %v2229
        %v2924 = vsel %vm2909, %v2891, %v2231
        %v2925 = vsel %vm2909, %v2892, %v2233
        %v2926 = vsel %vm2909, %v2893, %v2235
        %v2927 = vsel %vm2909, %v2894, %v2237
        %v2928 = vsel %vm2909, %v2895, %v2239
        %v2929 = vsel %vm2909, %v2896, %v2241
        %v2930 = vsel %vm2909, %v2897, %v2243
        %v2931 = vsel %vm2909, %v2898, %v2245
        %v2932 = vsel %vm2909, %v2899, %v2247
        %v2933 = vsel %vm2909, %v2900, %v2249
        %v2934 = vsel %vm2909, %v2901, %v2251
        %v2935 = vsel %vm2909, %v2902, %v2253
        %v2936 = vsel %vm2909, %v2903, %v2255
        %v2937 = vsel %vm2909, %v2904, %v2257
        %v2938 = vsel %vm2909, %v2905, %v2259
        %v2939 = vsel %vm2909, %v2906, %v2261
        %v2940 = vsel %vm2909, %v2907, %v2263
        %v2941 = vsel %vm2909, %v2908, %v2265
        %vm2942 = vcmask 162816
        %v2943 = vsel %vm2942, %v2910, %v2331
        %v2944 = vsel %vm2942, %v2911, %v2333
        %v2945 = vsel %vm2942, %v2912, %v2335
        %v2946 = vsel %vm2942, %v2913, %v2337
        %v2947 = vsel %vm2942, %v2914, %v2339
        %v2948 = vsel %vm2942, %v2915, %v2341
        %v2949 = vsel %vm2942, %v2916, %v2343
        %v2950 = vsel %vm2942, %v2917, %v2345
        %v2951 = vsel %vm2942, %v2918, %v2347
        %v2952 = vsel %vm2942, %v2919, %v2349
        %v2953 = vsel %vm2942, %v2920, %v2351
        %v2954 = vsel %vm2942, %v2921, %v2353
        %v2955 = vsel %vm2942, %v2922, %v2355
        %v2956 = vsel %vm2942, %v2923, %v2357
        %v2957 = vsel %vm2942, %v2924, %v2359
        %v2958 = vsel %vm2942, %v2925, %v2361
        %v2959 = vsel %vm2942, %v2926, %v2363
        %v2960 = vsel %vm2942, %v2927, %v2365
        %v2961 = vsel %vm2942, %v2928, %v2367
        %v2962 = vsel %vm2942, %v2929, %v2369
        %v2963 = vsel %vm2942, %v2930, %v2371
        %v2964 = vsel %vm2942, %v2931, %v2373
        %v2965 = vsel %vm2942, %v2932, %v2375
        %v2966 = vsel %vm2942, %v2933, %v2377
        %v2967 = vsel %vm2942, %v2934, %v2379
        %v2968 = vsel %vm2942, %v2935, %v2381
        %v2969 = vsel %vm2942, %v2936, %v2383
        %v2970 = vsel %vm2942, %v2937, %v2385
        %v2971 = vsel %vm2942, %v2938, %v2387
        %v2972 = vsel %vm2942, %v2939, %v2389
        %v2973 = vsel %vm2942, %v2940, %v2391
        %v2974 = vsel %vm2942, %v2941, %v2393
        %vm2975 = vcmask 195584
        %v2976 = vsel %vm2975, %v2943, %v2459
        %v2977 = vsel %vm2975, %v2944, %v2461
        %v2978 = vsel %vm2975, %v2945, %v2463
        %v2979 = vsel %vm2975, %v2946, %v2465
        %v2980 = vsel %vm2975, %v2947, %v2467
        %v2981 = vsel %vm2975, %v2948, %v2469
        %v2982 = vsel %vm2975, %v2949, %v2471
        %v2983 = vsel %vm2975, %v2950, %v2473
        %v2984 = vsel %vm2975, %v2951, %v2475
        %v2985 = vsel %vm2975, %v2952, %v2477
        %v2986 = vsel %vm2975, %v2953, %v2479
        %v2987 = vsel %vm2975, %v2954, %v2481
        %v2988 = vsel %vm2975, %v2955, %v2483
        %v2989 = vsel %vm2975, %v2956, %v2485
        %v2990 = vsel %vm2975, %v2957, %v2487
        %v2991 = vsel %vm2975, %v2958, %v2489
        %v2992 = vsel %vm2975, %v2959, %v2491
        %v2993 = vsel %vm2975, %v2960, %v2493
        %v2994 = vsel %vm2975, %v2961, %v2495
        %v2995 = vsel %vm2975, %v2962, %v2497
        %v2996 = vsel %vm2975, %v2963, %v2499
        %v2997 = vsel %vm2975, %v2964, %v2501
        %v2998 = vsel %vm2975, %v2965, %v2503
        %v2999 = vsel %vm2975, %v2966, %v2505
        %v3000 = vsel %vm2975, %v2967, %v2507
        %v3001 = vsel %vm2975, %v2968, %v2509
        %v3002 = vsel %vm2975, %v2969, %v2511
        %v3003 = vsel %vm2975, %v2970, %v2513
        %v3004 = vsel %vm2975, %v2971, %v2515
        %v3005 = vsel %vm2975, %v2972, %v2517
        %v3006 = vsel %vm2975, %v2973, %v2519
        %v3007 = vsel %vm2975, %v2974, %v2521
        %vm3008 = vcmask 228352
        %v3009 = vsel %vm3008, %v2976, %v2587
        %v3010 = vsel %vm3008, %v2977, %v2589
        %v3011 = vsel %vm3008, %v2978, %v2591
        %v3012 = vsel %vm3008, %v2979, %v2593
        %v3013 = vsel %vm3008, %v2980, %v2595
        %v3014 = vsel %vm3008, %v2981, %v2597
        %v3015 = vsel %vm3008, %v2982, %v2599
        %v3016 = vsel %vm3008, %v2983, %v2601
        %v3017 = vsel %vm3008, %v2984, %v2603
        %v3018 = vsel %vm3008, %v2985, %v2605
        %v3019 = vsel %vm3008, %v2986, %v2607
        %v3020 = vsel %vm3008, %v2987, %v2609
        %v3021 = vsel %vm3008, %v2988, %v2611
        %v3022 = vsel %vm3008, %v2989, %v2613
        %v3023 = vsel %vm3008, %v2990, %v2615
        %v3024 = vsel %vm3008, %v2991, %v2617
        %v3025 = vsel %vm3008, %v2992, %v2619
        %v3026 = vsel %vm3008, %v2993, %v2621
        %v3027 = vsel %vm3008, %v2994, %v2623
        %v3028 = vsel %vm3008, %v2995, %v2625
        %v3029 = vsel %vm3008, %v2996, %v2627
        %v3030 = vsel %vm3008, %v2997, %v2629
        %v3031 = vsel %vm3008, %v2998, %v2631
        %v3032 = vsel %vm3008, %v2999, %v2633
        %v3033 = vsel %vm3008, %v3000, %v2635
        %v3034 = vsel %vm3008, %v3001, %v2637
        %v3035 = vsel %vm3008, %v3002, %v2639
        %v3036 = vsel %vm3008, %v3003, %v2641
        %v3037 = vsel %vm3008, %v3004, %v2643
        %v3038 = vsel %vm3008, %v3005, %v2645
        %v3039 = vsel %vm3008, %v3006, %v2647
        %v3040 = vsel %vm3008, %v3007, %v2649
        %vm3041 = vcmask 261120
        %v3042 = vsel %vm3041, %v3009, %v2715
        %v3043 = vsel %vm3041, %v3010, %v2717
        %v3044 = vsel %vm3041, %v3011, %v2719
        %v3045 = vsel %vm3041, %v3012, %v2721
        %v3046 = vsel %vm3041, %v3013, %v2723
        %v3047 = vsel %vm3041, %v3014, %v2725
        %v3048 = vsel %vm3041, %v3015, %v2727
        %v3049 = vsel %vm3041, %v3016, %v2729
        %v3050 = vsel %vm3041, %v3017, %v2731
        %v3051 = vsel %vm3041, %v3018, %v2733
        %v3052 = vsel %vm3041, %v3019, %v2735
        %v3053 = vsel %vm3041, %v3020, %v2737
        %v3054 = vsel %vm3041, %v3021, %v2739
        %v3055 = vsel %vm3041, %v3022, %v2741
        %v3056 = vsel %vm3041, %v3023, %v2743
        %v3057 = vsel %vm3041, %v3024, %v2745
        %v3058 = vsel %vm3041, %v3025, %v2747
        %v3059 = vsel %vm3041, %v3026, %v2749
        %v3060 = vsel %vm3041, %v3027, %v2751
        %v3061 = vsel %vm3041, %v3028, %v2753
        %v3062 = vsel %vm3041, %v3029, %v2755
        %v3063 = vsel %vm3041, %v3030, %v2757
        %v3064 = vsel %vm3041, %v3031, %v2759
        %v3065 = vsel %vm3041, %v3032, %v2761
        %v3066 = vsel %vm3041, %v3033, %v2763
        %v3067 = vsel %vm3041, %v3034, %v2765
        %v3068 = vsel %vm3041, %v3035, %v2767
        %v3069 = vsel %vm3041, %v3036, %v2769
        %v3070 = vsel %vm3041, %v3037, %v2771
        %v3071 = vsel %vm3041, %v3038, %v2773
        %v3072 = vsel %vm3041, %v3039, %v2775
        %v3073 = vsel %vm3041, %v3040, %v2777
        %v3074 = vpack.c.bf16 %v3043, %v3042
        %v3075 = vpack.c.bf16 %v3045, %v3044
        %v3076 = vpack.c.bf16 %v3047, %v3046
        %v3077 = vpack.c.bf16 %v3049, %v3048
        %v3078 = vpack.c.bf16 %v3051, %v3050
        %v3079 = vpack.c.bf16 %v3053, %v3052
        %v3080 = vpack.c.bf16 %v3055, %v3054
        %v3081 = vpack.c.bf16 %v3057, %v3056
        %v3082 = vpack.c.bf16 %v3059, %v3058
        %v3083 = vpack.c.bf16 %v3061, %v3060
        %v3084 = vpack.c.bf16 %v3063, %v3062
        %v3085 = vpack.c.bf16 %v3065, %v3064
        %v3086 = vpack.c.bf16 %v3067, %v3066
        %v3087 = vpack.c.bf16 %v3069, %v3068
        %v3088 = vpack.c.bf16 %v3071, %v3070
        %v3089 = vpack.c.bf16 %v3073, %v3072
        %v3090 = vld [vmem:[%s1] sm:$0xf]
        %v3091 = vld [vmem:[%s1 + $0x4] sm:$0xf]
        %v3092 = vld [vmem:[%s1 + $0x8] sm:$0xf]
        %v3093 = vld [vmem:[%s1 + $0xc] sm:$0xf]
        %v3094 = vld [vmem:[%s1 + $0x10] sm:$0x3]
        %v3095 = vld [vmem:[%s2] sm:$0x1]
        %v3097 = vperm.slane %v3095, 0
        %v3104 = vunpack.c.l.b16 %v3090
        %v3105 = vunpack.c.l.b16 %v3091
        %v3106 = vunpack.c.l.b16 %v3092
        %v3107 = vunpack.c.l.b16 %v3093
        %v3108 = vunpack.c.l.b16 %v3094
        %v3109 = vpack.c.b16 %v3105, %v3104
        %v3110 = vpack.c.b16 %v3107, %v3106
        %v3111 = vpack.c.b16 %v3108, %v3108
        %vm3114 = vcmask 293888
        %v3116 = vsel %vm3114, %v3074, 0
        %v3119 = vsel %vm3114, %v3075, 0
        %v3122 = vsel %vm3114, %v3076, 0
        %v3125 = vsel %vm3114, %v3077, 0
        %v3128 = vsel %vm3114, %v3078, 0
        %v3131 = vsel %vm3114, %v3079, 0
        %v3134 = vsel %vm3114, %v3080, 0
        %v3137 = vsel %vm3114, %v3081, 0
        %v3140 = vsel %vm3114, %v3082, 0
        %v3143 = vsel %vm3114, %v3083, 0
        %v3146 = vsel %vm3114, %v3084, 0
        %v3149 = vsel %vm3114, %v3085, 0
        %v3152 = vsel %vm3114, %v3086, 0
        %v3155 = vsel %vm3114, %v3087, 0
        %v3158 = vsel %vm3114, %v3088, 0
        %v3161 = vsel %vm3114, %v3089, 0
        %vm3163 = vcmask 1041408
        %v3165 = vsel %vm3163, %v3111, 0
        %3167 = vmatpush.bf16.msra.mxu0 0
        %3168 = vmatpush.bf16.msra.mxu0 0
        %3169 = vmatpush.bf16.msra.mxu0 0
        %3170 = vmatpush.bf16.msra.mxu0 0
        %3171 = vmatpush.bf16.msra.mxu0 0
        %3172 = vmatpush.bf16.msra.mxu0 %v3165
        %3173 = vmatpush.bf16.msra.mxu0 %v3110
        %3174 = vmatpush.bf16.msra.mxu0 %v3109
        %3175 = vmatmul.bf16.gmra.mxu0 %v3116
        %v3176 = vpop.f32.mrf.mxu0
        %v3177 = vadd.f32 %v3097, %v3176
        %v3178 = vpop.f32.mrf.mxu0
        %v3179 = vadd.f32 %v3097, %v3178
        %3180 = vmatmul.bf16.gmra.mxu0 %v3119
        %v3181 = vpop.f32.mrf.mxu0
        %v3182 = vadd.f32 %v3097, %v3181
        %v3183 = vpop.f32.mrf.mxu0
        %v3184 = vadd.f32 %v3097, %v3183
        %3185 = vmatmul.bf16.gmra.mxu0 %v3122
        %v3186 = vpop.f32.mrf.mxu0
        %v3187 = vadd.f32 %v3097, %v3186
        %v3188 = vpop.f32.mrf.mxu0
        %v3189 = vadd.f32 %v3097, %v3188
        %3190 = vmatmul.bf16.gmra.mxu0 %v3125
        %v3191 = vpop.f32.mrf.mxu0
        %v3192 = vadd.f32 %v3097, %v3191
        %v3193 = vpop.f32.mrf.mxu0
        %v3194 = vadd.f32 %v3097, %v3193
        %3195 = vmatmul.bf16.gmra.mxu0 %v3128
        %v3196 = vpop.f32.mrf.mxu0
        %v3197 = vadd.f32 %v3097, %v3196
        %v3198 = vpop.f32.mrf.mxu0
        %v3199 = vadd.f32 %v3097, %v3198
        %3200 = vmatmul.bf16.gmra.mxu0 %v3131
        %v3201 = vpop.f32.mrf.mxu0
        %v3202 = vadd.f32 %v3097, %v3201
        %v3203 = vpop.f32.mrf.mxu0
        %v3204 = vadd.f32 %v3097, %v3203
        %3205 = vmatmul.bf16.gmra.mxu0 %v3134
        %v3206 = vpop.f32.mrf.mxu0
        %v3207 = vadd.f32 %v3097, %v3206
        %v3208 = vpop.f32.mrf.mxu0
        %v3209 = vadd.f32 %v3097, %v3208
        %3210 = vmatmul.bf16.gmra.mxu0 %v3137
        %v3211 = vpop.f32.mrf.mxu0
        %v3212 = vadd.f32 %v3097, %v3211
        %v3213 = vpop.f32.mrf.mxu0
        %v3214 = vadd.f32 %v3097, %v3213
        %3215 = vmatmul.bf16.gmra.mxu0 %v3140
        %v3216 = vpop.f32.mrf.mxu0
        %v3217 = vadd.f32 %v3097, %v3216
        %v3218 = vpop.f32.mrf.mxu0
        %v3219 = vadd.f32 %v3097, %v3218
        %3220 = vmatmul.bf16.gmra.mxu0 %v3143
        %v3221 = vpop.f32.mrf.mxu0
        %v3222 = vadd.f32 %v3097, %v3221
        %v3223 = vpop.f32.mrf.mxu0
        %v3224 = vadd.f32 %v3097, %v3223
        %3225 = vmatmul.bf16.gmra.mxu0 %v3146
        %v3226 = vpop.f32.mrf.mxu0
        %v3227 = vadd.f32 %v3097, %v3226
        %v3228 = vpop.f32.mrf.mxu0
        %v3229 = vadd.f32 %v3097, %v3228
        %3230 = vmatmul.bf16.gmra.mxu0 %v3149
        %v3231 = vpop.f32.mrf.mxu0
        %v3232 = vadd.f32 %v3097, %v3231
        %v3233 = vpop.f32.mrf.mxu0
        %v3234 = vadd.f32 %v3097, %v3233
        %3235 = vmatmul.bf16.gmra.mxu0 %v3152
        %v3236 = vpop.f32.mrf.mxu0
        %v3237 = vadd.f32 %v3097, %v3236
        %v3238 = vpop.f32.mrf.mxu0
        %v3239 = vadd.f32 %v3097, %v3238
        %3240 = vmatmul.bf16.gmra.mxu0 %v3155
        %v3241 = vpop.f32.mrf.mxu0
        %v3242 = vadd.f32 %v3097, %v3241
        %v3243 = vpop.f32.mrf.mxu0
        %v3244 = vadd.f32 %v3097, %v3243
        %3245 = vmatmul.bf16.gmra.mxu0 %v3158
        %v3246 = vpop.f32.mrf.mxu0
        %v3247 = vadd.f32 %v3097, %v3246
        %v3248 = vpop.f32.mrf.mxu0
        %v3249 = vadd.f32 %v3097, %v3248
        %3250 = vmatmul.bf16.gmra.mxu0 %v3161
        %v3251 = vpop.f32.mrf.mxu0
        %v3252 = vadd.f32 %v3097, %v3251
        %v3253 = vpop.f32.mrf.mxu0
        %v3254 = vadd.f32 %v3097, %v3253
        %3255 = vdwg.mxu0
        %v3256 = vmax.f32 %v3177, 0.0
        %v3257 = vmax.f32 %v3179, 0.0
        %v3258 = vmax.f32 %v3182, 0.0
        %v3259 = vmax.f32 %v3184, 0.0
        %v3260 = vmax.f32 %v3187, 0.0
        %v3261 = vmax.f32 %v3189, 0.0
        %v3262 = vmax.f32 %v3192, 0.0
        %v3263 = vmax.f32 %v3194, 0.0
        %v3264 = vmax.f32 %v3197, 0.0
        %v3265 = vmax.f32 %v3199, 0.0
        %v3266 = vmax.f32 %v3202, 0.0
        %v3267 = vmax.f32 %v3204, 0.0
        %v3268 = vmax.f32 %v3207, 0.0
        %v3269 = vmax.f32 %v3209, 0.0
        %v3270 = vmax.f32 %v3212, 0.0
        %v3271 = vmax.f32 %v3214, 0.0
        %v3272 = vmax.f32 %v3217, 0.0
        %v3273 = vmax.f32 %v3219, 0.0
        %v3274 = vmax.f32 %v3222, 0.0
        %v3275 = vmax.f32 %v3224, 0.0
        %v3276 = vmax.f32 %v3227, 0.0
        %v3277 = vmax.f32 %v3229, 0.0
        %v3278 = vmax.f32 %v3232, 0.0
        %v3279 = vmax.f32 %v3234, 0.0
        %v3280 = vmax.f32 %v3237, 0.0
        %v3281 = vmax.f32 %v3239, 0.0
        %v3282 = vmax.f32 %v3242, 0.0
        %v3283 = vmax.f32 %v3244, 0.0
        %v3284 = vmax.f32 %v3247, 0.0
        %v3285 = vmax.f32 %v3249, 0.0
        %v3286 = vmax.f32 %v3252, 0.0
        %v3287 = vmax.f32 %v3254, 0.0
        %v3288 = vrot.slane %v3256, 1
        %v3289 = vrot.slane %v3257, 1
        %v3290 = vrot.slane %v3258, 1
        %v3291 = vrot.slane %v3259, 1
        %v3292 = vrot.slane %v3260, 1
        %v3293 = vrot.slane %v3261, 1
        %v3294 = vrot.slane %v3262, 1
        %v3295 = vrot.slane %v3263, 1
        %v3296 = vrot.slane %v3264, 1
        %v3297 = vrot.slane %v3265, 1
        %v3298 = vrot.slane %v3266, 1
        %v3299 = vrot.slane %v3267, 1
        %v3300 = vrot.slane %v3268, 1
        %v3301 = vrot.slane %v3269, 1
        %v3302 = vrot.slane %v3270, 1
        %v3303 = vrot.slane %v3271, 1
        %v3304 = vrot.slane %v3272, 1
        %v3305 = vrot.slane %v3273, 1
        %v3306 = vrot.slane %v3274, 1
        %v3307 = vrot.slane %v3275, 1
        %v3308 = vrot.slane %v3276, 1
        %v3309 = vrot.slane %v3277, 1
        %v3310 = vrot.slane %v3278, 1
        %v3311 = vrot.slane %v3279, 1
        %v3312 = vrot.slane %v3280, 1
        %v3313 = vrot.slane %v3281, 1
        %v3314 = vrot.slane %v3282, 1
        %v3315 = vrot.slane %v3283, 1
        %v3316 = vrot.slane %v3284, 1
        %v3317 = vrot.slane %v3285, 1
        %v3318 = vrot.slane %v3286, 1
        %v3319 = vrot.slane %v3287, 1
        %v3320 = vsel %vm1081, %v3318, %v3319
        %v3321 = vsel %vm1081, %v3317, %v3318
        %v3322 = vsel %vm1081, %v3316, %v3317
        %v3323 = vsel %vm1081, %v3315, %v3316
        %v3324 = vsel %vm1081, %v3314, %v3315
        %v3325 = vsel %vm1081, %v3313, %v3314
        %v3326 = vsel %vm1081, %v3312, %v3313
        %v3327 = vsel %vm1081, %v3311, %v3312
        %v3328 = vsel %vm1081, %v3310, %v3311
        %v3329 = vsel %vm1081, %v3309, %v3310
        %v3330 = vsel %vm1081, %v3308, %v3309
        %v3331 = vsel %vm1081, %v3307, %v3308
        %v3332 = vsel %vm1081, %v3306, %v3307
        %v3333 = vsel %vm1081, %v3305, %v3306
        %v3334 = vsel %vm1081, %v3304, %v3305
        %v3335 = vsel %vm1081, %v3303, %v3304
        %v3336 = vsel %vm1081, %v3302, %v3303
        %v3337 = vsel %vm1081, %v3301, %v3302
        %v3338 = vsel %vm1081, %v3300, %v3301
        %v3339 = vsel %vm1081, %v3299, %v3300
        %v3340 = vsel %vm1081, %v3298, %v3299
        %v3341 = vsel %vm1081, %v3297, %v3298
        %v3342 = vsel %vm1081, %v3296, %v3297
        %v3343 = vsel %vm1081, %v3295, %v3296
        %v3344 = vsel %vm1081, %v3294, %v3295
        %v3345 = vsel %vm1081, %v3293, %v3294
        %v3346 = vsel %vm1081, %v3292, %v3293
        %v3347 = vsel %vm1081, %v3291, %v3292
        %v3348 = vsel %vm1081, %v3290, %v3291
        %v3349 = vsel %vm1081, %v3289, %v3290
        %v3350 = vsel %vm1081, %v3288, %v3289
        %v3351 = vsel %vm1081, %v3319, %v3288
        %v3352 = vmax.f32 %v3256, %v3350
        %v3353 = vmax.f32 %v3257, %v3349
        %v3354 = vmax.f32 %v3258, %v3348
        %v3355 = vmax.f32 %v3259, %v3347
        %v3356 = vmax.f32 %v3260, %v3346
        %v3357 = vmax.f32 %v3261, %v3345
        %v3358 = vmax.f32 %v3262, %v3344
        %v3359 = vmax.f32 %v3263, %v3343
        %v3360 = vmax.f32 %v3264, %v3342
        %v3361 = vmax.f32 %v3265, %v3341
        %v3362 = vmax.f32 %v3266, %v3340
        %v3363 = vmax.f32 %v3267, %v3339
        %v3364 = vmax.f32 %v3268, %v3338
        %v3365 = vmax.f32 %v3269, %v3337
        %v3366 = vmax.f32 %v3270, %v3336
        %v3367 = vmax.f32 %v3271, %v3335
        %v3368 = vmax.f32 %v3272, %v3334
        %v3369 = vmax.f32 %v3273, %v3333
        %v3370 = vmax.f32 %v3274, %v3332
        %v3371 = vmax.f32 %v3275, %v3331
        %v3372 = vmax.f32 %v3276, %v3330
        %v3373 = vmax.f32 %v3277, %v3329
        %v3374 = vmax.f32 %v3278, %v3328
        %v3375 = vmax.f32 %v3279, %v3327
        %v3376 = vmax.f32 %v3280, %v3326
        %v3377 = vmax.f32 %v3281, %v3325
        %v3378 = vmax.f32 %v3282, %v3324
        %v3379 = vmax.f32 %v3283, %v3323
        %v3380 = vmax.f32 %v3284, %v3322
        %v3381 = vmax.f32 %v3285, %v3321
        %v3382 = vmax.f32 %v3286, %v3320
        %v3383 = vmax.f32 %v3287, %v3351
        %v3384 = vmax.f32 %v3352, %v3354
        %v3385 = vmax.f32 %v3353, %v3355
        %v3386 = vmax.f32 %v3354, %v3356
        %v3387 = vmax.f32 %v3355, %v3357
        %v3388 = vmax.f32 %v3356, %v3358
        %v3389 = vmax.f32 %v3357, %v3359
        %v3390 = vmax.f32 %v3358, %v3360
        %v3391 = vmax.f32 %v3359, %v3361
        %v3392 = vmax.f32 %v3360, %v3362
        %v3393 = vmax.f32 %v3361, %v3363
        %v3394 = vmax.f32 %v3362, %v3364
        %v3395 = vmax.f32 %v3363, %v3365
        %v3396 = vmax.f32 %v3364, %v3366
        %v3397 = vmax.f32 %v3365, %v3367
        %v3398 = vmax.f32 %v3366, %v3368
        %v3399 = vmax.f32 %v3367, %v3369
        %v3400 = vmax.f32 %v3368, %v3370
        %v3401 = vmax.f32 %v3369, %v3371
        %v3402 = vmax.f32 %v3370, %v3372
        %v3403 = vmax.f32 %v3371, %v3373
        %v3404 = vmax.f32 %v3372, %v3374
        %v3405 = vmax.f32 %v3373, %v3375
        %v3406 = vmax.f32 %v3374, %v3376
        %v3407 = vmax.f32 %v3375, %v3377
        %v3408 = vmax.f32 %v3376, %v3378
        %v3409 = vmax.f32 %v3377, %v3379
        %v3410 = vmax.f32 %v3378, %v3380
        %v3411 = vmax.f32 %v3379, %v3381
        %v3412 = vmax.f32 %v3380, %v3382
        %v3413 = vmax.f32 %v3381, %v3383
        %v3414 = vmax.f32 %v3382, %v3352
        %v3415 = vmax.f32 %v3383, %v3353
        %v3416 = vpack.c.bf16 %v3385, %v3384
        %v3417 = vpack.c.bf16 %v3387, %v3386
        %v3418 = vpack.c.bf16 %v3389, %v3388
        %v3419 = vpack.c.bf16 %v3391, %v3390
        %v3420 = vpack.c.bf16 %v3393, %v3392
        %v3421 = vpack.c.bf16 %v3395, %v3394
        %v3422 = vpack.c.bf16 %v3397, %v3396
        %v3423 = vpack.c.bf16 %v3399, %v3398
        %v3424 = vpack.c.bf16 %v3401, %v3400
        %v3425 = vpack.c.bf16 %v3403, %v3402
        %v3426 = vpack.c.bf16 %v3405, %v3404
        %v3427 = vpack.c.bf16 %v3407, %v3406
        %v3428 = vpack.c.bf16 %v3409, %v3408
        %v3429 = vpack.c.bf16 %v3411, %v3410
        %v3430 = vpack.c.bf16 %v3413, %v3412
        %v3431 = vpack.c.bf16 %v3415, %v3414
        %v3432 = vld [vmem:[%s3] sm:$0xff]
        %v3433 = vld [vmem:[%s3 + $0x8] sm:$0xff]
        %v3434 = vld [vmem:[%s3 + $0x10] sm:$0xff]
        %v3435 = vld [vmem:[%s3 + $0x18] sm:$0xff]
        %v3436 = vld [vmem:[%s3 + $0x20] sm:$0xff]
        %v3437 = vld [vmem:[%s3 + $0x28] sm:$0xff]
        %v3438 = vld [vmem:[%s3 + $0x30] sm:$0xff]
        %v3439 = vld [vmem:[%s3 + $0x38] sm:$0xff]
        %v3448 = vunpack.c.l.b16 %v3432
        %v3449 = vunpack.c.h.b16 %v3432
        %v3450 = vunpack.c.l.b16 %v3433
        %v3451 = vunpack.c.h.b16 %v3433
        %v3452 = vunpack.c.l.b16 %v3434
        %v3453 = vunpack.c.h.b16 %v3434
        %v3454 = vunpack.c.l.b16 %v3435
        %v3455 = vunpack.c.h.b16 %v3435
        %v3456 = vunpack.c.l.b16 %v3436
        %v3457 = vunpack.c.h.b16 %v3436
        %v3458 = vunpack.c.l.b16 %v3437
        %v3459 = vunpack.c.h.b16 %v3437
        %v3460 = vunpack.c.l.b16 %v3438
        %v3461 = vunpack.c.h.b16 %v3438
        %v3462 = vunpack.c.l.b16 %v3439
        %v3463 = vunpack.c.h.b16 %v3439
        %v3464 = vpack.c.b16 %v3450, %v3448
        %v3465 = vpack.c.b16 %v3451, %v3449
        %v3466 = vpack.c.b16 %v3454, %v3452
        %v3467 = vpack.c.b16 %v3455, %v3453
        %v3468 = vpack.c.b16 %v3458, %v3456
        %v3469 = vpack.c.b16 %v3459, %v3457
        %v3470 = vpack.c.b16 %v3462, %v3460
        %v3471 = vpack.c.b16 %v3463, %v3461
        %3480 = vmatpush.bf16.msra.mxu0 %v3423
        %3481 = vmatpush.bf16.msra.mxu0 %v3422
        %3482 = vmatpush.bf16.msra.mxu0 %v3421
        %3483 = vmatpush.bf16.msra.mxu0 %v3420
        %3484 = vmatpush.bf16.msra.mxu0 %v3419
        %3485 = vmatpush.bf16.msra.mxu0 %v3418
        %3486 = vmatpush.bf16.msra.mxu0 %v3417
        %3487 = vmatpush.bf16.msra.mxu0 %v3416
        %3488 = vmatmul.bf16.gmra.mxu0 %v3464
        %v3489 = vpop.f32.mrf.mxu0
        %v3490 = vadd.f32 0.0, %v3489
        %v3491 = vpop.f32.mrf.mxu0
        %v3492 = vadd.f32 0.0, %v3491
        %3493 = vmatmul.bf16.gmra.mxu0 %v3466
        %v3494 = vpop.f32.mrf.mxu0
        %v3495 = vadd.f32 0.0, %v3494
        %v3496 = vpop.f32.mrf.mxu0
        %v3497 = vadd.f32 0.0, %v3496
        %3498 = vmatmul.bf16.gmra.mxu0 %v3468
        %v3499 = vpop.f32.mrf.mxu0
        %v3500 = vadd.f32 0.0, %v3499
        %v3501 = vpop.f32.mrf.mxu0
        %v3502 = vadd.f32 0.0, %v3501
        %3503 = vmatmul.bf16.gmra.mxu0 %v3470
        %v3504 = vpop.f32.mrf.mxu0
        %v3505 = vadd.f32 0.0, %v3504
        %v3506 = vpop.f32.mrf.mxu0
        %v3507 = vadd.f32 0.0, %v3506
        %3508 = vdwg.mxu0
        %3509 = vmatpush.bf16.msra.mxu0 %v3431
        %3510 = vmatpush.bf16.msra.mxu0 %v3430
        %3511 = vmatpush.bf16.msra.mxu0 %v3429
        %3512 = vmatpush.bf16.msra.mxu0 %v3428
        %3513 = vmatpush.bf16.msra.mxu0 %v3427
        %3514 = vmatpush.bf16.msra.mxu0 %v3426
        %3515 = vmatpush.bf16.msra.mxu0 %v3425
        %3516 = vmatpush.bf16.msra.mxu0 %v3424
        %3517 = vmatmul.bf16.gmra.mxu0 %v3465
        %v3518 = vpop.f32.mrf.mxu0
        %v3519 = vadd.f32 %v3490, %v3518
        %v3520 = vpop.f32.mrf.mxu0
        %v3521 = vadd.f32 %v3492, %v3520
        %3522 = vmatmul.bf16.gmra.mxu0 %v3467
        %v3523 = vpop.f32.mrf.mxu0
        %v3524 = vadd.f32 %v3495, %v3523
        %v3525 = vpop.f32.mrf.mxu0
        %v3526 = vadd.f32 %v3497, %v3525
        %3527 = vmatmul.bf16.gmra.mxu0 %v3469
        %v3528 = vpop.f32.mrf.mxu0
        %v3529 = vadd.f32 %v3500, %v3528
        %v3530 = vpop.f32.mrf.mxu0
        %v3531 = vadd.f32 %v3502, %v3530
        %3532 = vmatmul.bf16.gmra.mxu0 %v3471
        %v3533 = vpop.f32.mrf.mxu0
        %v3534 = vadd.f32 %v3505, %v3533
        %v3535 = vpop.f32.mrf.mxu0
        %v3536 = vadd.f32 %v3507, %v3535
        %3537 = vdwg.mxu0
        %v3538 = vand.u32 %v504, 7
        %v3539 = vand.u32 %v505, 7
        %v3540 = vand.u32 %v506, 7
        %v3541 = vand.u32 %v507, 7
        %v3542 = vand.u32 %v508, 7
        %v3543 = vand.u32 %v509, 7
        %v3544 = vand.u32 %v510, 7
        %v3545 = vand.u32 %v511, 7
        %v3546 = vshra.s32 %v504, 3
        %v3547 = vshra.s32 %v505, 3
        %v3548 = vshra.s32 %v506, 3
        %v3549 = vshra.s32 %v507, 3
        %v3550 = vshra.s32 %v508, 3
        %v3551 = vshra.s32 %v509, 3
        %v3552 = vshra.s32 %v510, 3
        %v3553 = vshra.s32 %v511, 3
        %v3554 = vand.u32 %v3546, 7
        %v3555 = vand.u32 %v3547, 7
        %v3556 = vand.u32 %v3548, 7
        %v3557 = vand.u32 %v3549, 7
        %v3558 = vand.u32 %v3550, 7
        %v3559 = vand.u32 %v3551, 7
        %v3560 = vand.u32 %v3552, 7
        %v3561 = vand.u32 %v3553, 7
        %vm3562 = vcmp.ge.s32.totalorder %v3538, 1
        %vm3563 = vcmp.ge.s32.totalorder %v3539, 1
        %vm3564 = vcmp.ge.s32.totalorder %v3540, 1
        %vm3565 = vcmp.ge.s32.totalorder %v3541, 1
        %vm3566 = vcmp.ge.s32.totalorder %v3542, 1
        %vm3567 = vcmp.ge.s32.totalorder %v3543, 1
        %vm3568 = vcmp.ge.s32.totalorder %v3544, 1
        %vm3569 = vcmp.ge.s32.totalorder %v3545, 1
        %vm3570 = vcmp.le.s32.totalorder %v3538, 6
        %vm3571 = vcmp.le.s32.totalorder %v3539, 6
        %vm3572 = vcmp.le.s32.totalorder %v3540, 6
        %vm3573 = vcmp.le.s32.totalorder %v3541, 6
        %vm3574 = vcmp.le.s32.totalorder %v3542, 6
        %vm3575 = vcmp.le.s32.totalorder %v3543, 6
        %vm3576 = vcmp.le.s32.totalorder %v3544, 6
        %vm3577 = vcmp.le.s32.totalorder %v3545, 6
        %vm3578 = vcmp.ge.s32.totalorder %v3554, 1
        %vm3579 = vcmp.ge.s32.totalorder %v3555, 1
        %vm3580 = vcmp.ge.s32.totalorder %v3556, 1
        %vm3581 = vcmp.ge.s32.totalorder %v3557, 1
        %vm3582 = vcmp.ge.s32.totalorder %v3558, 1
        %vm3583 = vcmp.ge.s32.totalorder %v3559, 1
        %vm3584 = vcmp.ge.s32.totalorder %v3560, 1
        %vm3585 = vcmp.ge.s32.totalorder %v3561, 1
        %vm3586 = vcmp.le.s32.totalorder %v3554, 6
        %vm3587 = vcmp.le.s32.totalorder %v3555, 6
        %vm3588 = vcmp.le.s32.totalorder %v3556, 6
        %vm3589 = vcmp.le.s32.totalorder %v3557, 6
        %vm3590 = vcmp.le.s32.totalorder %v3558, 6
        %vm3591 = vcmp.le.s32.totalorder %v3559, 6
        %vm3592 = vcmp.le.s32.totalorder %v3560, 6
        %vm3593 = vcmp.le.s32.totalorder %v3561, 6
        %v3594 = vrot.slane %v3519, 7
        %v3595 = vrot.slane %v3521, 7
        %v3596 = vrot.slane %v3524, 7
        %v3597 = vrot.slane %v3526, 7
        %v3598 = vrot.slane %v3529, 7
        %v3599 = vrot.slane %v3531, 7
        %v3600 = vrot.slane %v3534, 7
        %v3601 = vrot.slane %v3536, 7
        %v3602 = vsel %vm792, %v3600, %v3601
        %v3603 = vsel %vm792, %v3599, %v3600
        %v3604 = vsel %vm792, %v3598, %v3599
        %v3605 = vsel %vm792, %v3597, %v3598
        %v3606 = vsel %vm792, %v3596, %v3597
        %v3607 = vsel %vm792, %v3595, %v3596
        %v3608 = vsel %vm792, %v3594, %v3595
        %v3609 = vsel %vm792, %v3601, %v3594
        %vm3610 = vmand %vm3578, %vm3562
        %vm3611 = vmand %vm3579, %vm3563
        %vm3612 = vmand %vm3580, %vm3564
        %vm3613 = vmand %vm3581, %vm3565
        %vm3614 = vmand %vm3582, %vm3566
        %vm3615 = vmand %vm3583, %vm3567
        %vm3616 = vmand %vm3584, %vm3568
        %vm3617 = vmand %vm3585, %vm3569
        %v3618 = vsel %vm3610, 1, 0
        %v3619 = vsel %vm3611, 1, 0
        %v3620 = vsel %vm3612, 1, 0
        %v3621 = vsel %vm3613, 1, 0
        %v3622 = vsel %vm3614, 1, 0
        %v3623 = vsel %vm3615, 1, 0
        %v3624 = vsel %vm3616, 1, 0
        %v3625 = vsel %vm3617, 1, 0
        %vm3626 = vcmp.eq.s32.totalorder %v3618, 1
        %vm3627 = vcmp.eq.s32.totalorder %v3619, 1
        %vm3628 = vcmp.eq.s32.totalorder %v3620, 1
        %vm3629 = vcmp.eq.s32.totalorder %v3621, 1
        %vm3630 = vcmp.eq.s32.totalorder %v3622, 1
        %vm3631 = vcmp.eq.s32.totalorder %v3623, 1
        %vm3632 = vcmp.eq.s32.totalorder %v3624, 1
        %vm3633 = vcmp.eq.s32.totalorder %v3625, 1
        %v3634 = vsel %vm3626, %v3602, 0.0
        %v3635 = vsel %vm3627, %v3609, 0.0
        %v3636 = vsel %vm3628, %v3608, 0.0
        %v3637 = vsel %vm3629, %v3607, 0.0
        %v3638 = vsel %vm3630, %v3606, 0.0
        %v3639 = vsel %vm3631, %v3605, 0.0
        %v3640 = vsel %vm3632, %v3604, 0.0
        %v3641 = vsel %vm3633, %v3603, 0.0
        %v3642 = vsel %vm3578, 1, 0
        %v3643 = vsel %vm3579, 1, 0
        %v3644 = vsel %vm3580, 1, 0
        %v3645 = vsel %vm3581, 1, 0
        %v3646 = vsel %vm3582, 1, 0
        %v3647 = vsel %vm3583, 1, 0
        %v3648 = vsel %vm3584, 1, 0
        %v3649 = vsel %vm3585, 1, 0
        %vm3650 = vcmp.eq.s32.totalorder %v3642, 1
        %vm3651 = vcmp.eq.s32.totalorder %v3643, 1
        %vm3652 = vcmp.eq.s32.totalorder %v3644, 1
        %vm3653 = vcmp.eq.s32.totalorder %v3645, 1
        %vm3654 = vcmp.eq.s32.totalorder %v3646, 1
        %vm3655 = vcmp.eq.s32.totalorder %v3647, 1
        %vm3656 = vcmp.eq.s32.totalorder %v3648, 1
        %vm3657 = vcmp.eq.s32.totalorder %v3649, 1
        %v3658 = vsel %vm3650, %v3536, 0.0
        %v3659 = vsel %vm3651, %v3519, 0.0
        %v3660 = vsel %vm3652, %v3521, 0.0
        %v3661 = vsel %vm3653, %v3524, 0.0
        %v3662 = vsel %vm3654, %v3526, 0.0
        %v3663 = vsel %vm3655, %v3529, 0.0
        %v3664 = vsel %vm3656, %v3531, 0.0
        %v3665 = vsel %vm3657, %v3534, 0.0
        %v3666 = vrot.slane %v3519, 1
        %v3667 = vrot.slane %v3521, 1
        %v3668 = vrot.slane %v3524, 1
        %v3669 = vrot.slane %v3526, 1
        %v3670 = vrot.slane %v3529, 1
        %v3671 = vrot.slane %v3531, 1
        %v3672 = vrot.slane %v3534, 1
        %v3673 = vrot.slane %v3536, 1
        %v3674 = vsel %vm1081, %v3672, %v3673
        %v3675 = vsel %vm1081, %v3671, %v3672
        %v3676 = vsel %vm1081, %v3670, %v3671
        %v3677 = vsel %vm1081, %v3669, %v3670
        %v3678 = vsel %vm1081, %v3668, %v3669
        %v3679 = vsel %vm1081, %v3667, %v3668
        %v3680 = vsel %vm1081, %v3666, %v3667
        %v3681 = vsel %vm1081, %v3673, %v3666
        %vm3682 = vmand %vm3578, %vm3570
        %vm3683 = vmand %vm3579, %vm3571
        %vm3684 = vmand %vm3580, %vm3572
        %vm3685 = vmand %vm3581, %vm3573
        %vm3686 = vmand %vm3582, %vm3574
        %vm3687 = vmand %vm3583, %vm3575
        %vm3688 = vmand %vm3584, %vm3576
        %vm3689 = vmand %vm3585, %vm3577
        %v3690 = vsel %vm3682, 1, 0
        %v3691 = vsel %vm3683, 1, 0
        %v3692 = vsel %vm3684, 1, 0
        %v3693 = vsel %vm3685, 1, 0
        %v3694 = vsel %vm3686, 1, 0
        %v3695 = vsel %vm3687, 1, 0
        %v3696 = vsel %vm3688, 1, 0
        %v3697 = vsel %vm3689, 1, 0
        %vm3698 = vcmp.eq.s32.totalorder %v3690, 1
        %vm3699 = vcmp.eq.s32.totalorder %v3691, 1
        %vm3700 = vcmp.eq.s32.totalorder %v3692, 1
        %vm3701 = vcmp.eq.s32.totalorder %v3693, 1
        %vm3702 = vcmp.eq.s32.totalorder %v3694, 1
        %vm3703 = vcmp.eq.s32.totalorder %v3695, 1
        %vm3704 = vcmp.eq.s32.totalorder %v3696, 1
        %vm3705 = vcmp.eq.s32.totalorder %v3697, 1
        %v3706 = vsel %vm3698, %v3681, 0.0
        %v3707 = vsel %vm3699, %v3680, 0.0
        %v3708 = vsel %vm3700, %v3679, 0.0
        %v3709 = vsel %vm3701, %v3678, 0.0
        %v3710 = vsel %vm3702, %v3677, 0.0
        %v3711 = vsel %vm3703, %v3676, 0.0
        %v3712 = vsel %vm3704, %v3675, 0.0
        %v3713 = vsel %vm3705, %v3674, 0.0
        %v3714 = vsel %vm3562, 1, 0
        %v3715 = vsel %vm3563, 1, 0
        %v3716 = vsel %vm3564, 1, 0
        %v3717 = vsel %vm3565, 1, 0
        %v3718 = vsel %vm3566, 1, 0
        %v3719 = vsel %vm3567, 1, 0
        %v3720 = vsel %vm3568, 1, 0
        %v3721 = vsel %vm3569, 1, 0
        %vm3722 = vcmp.eq.s32.totalorder %v3714, 1
        %vm3723 = vcmp.eq.s32.totalorder %v3715, 1
        %vm3724 = vcmp.eq.s32.totalorder %v3716, 1
        %vm3725 = vcmp.eq.s32.totalorder %v3717, 1
        %vm3726 = vcmp.eq.s32.totalorder %v3718, 1
        %vm3727 = vcmp.eq.s32.totalorder %v3719, 1
        %vm3728 = vcmp.eq.s32.totalorder %v3720, 1
        %vm3729 = vcmp.eq.s32.totalorder %v3721, 1
        %v3730 = vsel %vm3722, %v3609, 0.0
        %v3731 = vsel %vm3723, %v3608, 0.0
        %v3732 = vsel %vm3724, %v3607, 0.0
        %v3733 = vsel %vm3725, %v3606, 0.0
        %v3734 = vsel %vm3726, %v3605, 0.0
        %v3735 = vsel %vm3727, %v3604, 0.0
        %v3736 = vsel %vm3728, %v3603, 0.0
        %v3737 = vsel %vm3729, %v3602, 0.0
        %v3738 = vsel %vm3570, 1, 0
        %v3739 = vsel %vm3571, 1, 0
        %v3740 = vsel %vm3572, 1, 0
        %v3741 = vsel %vm3573, 1, 0
        %v3742 = vsel %vm3574, 1, 0
        %v3743 = vsel %vm3575, 1, 0
        %v3744 = vsel %vm3576, 1, 0
        %v3745 = vsel %vm3577, 1, 0
        %vm3746 = vcmp.eq.s32.totalorder %v3738, 1
        %vm3747 = vcmp.eq.s32.totalorder %v3739, 1
        %vm3748 = vcmp.eq.s32.totalorder %v3740, 1
        %vm3749 = vcmp.eq.s32.totalorder %v3741, 1
        %vm3750 = vcmp.eq.s32.totalorder %v3742, 1
        %vm3751 = vcmp.eq.s32.totalorder %v3743, 1
        %vm3752 = vcmp.eq.s32.totalorder %v3744, 1
        %vm3753 = vcmp.eq.s32.totalorder %v3745, 1
        %v3754 = vsel %vm3746, %v3680, 0.0
        %v3755 = vsel %vm3747, %v3679, 0.0
        %v3756 = vsel %vm3748, %v3678, 0.0
        %v3757 = vsel %vm3749, %v3677, 0.0
        %v3758 = vsel %vm3750, %v3676, 0.0
        %v3759 = vsel %vm3751, %v3675, 0.0
        %v3760 = vsel %vm3752, %v3674, 0.0
        %v3761 = vsel %vm3753, %v3681, 0.0
        %vm3762 = vmand %vm3586, %vm3562
        %vm3763 = vmand %vm3587, %vm3563
        %vm3764 = vmand %vm3588, %vm3564
        %vm3765 = vmand %vm3589, %vm3565
        %vm3766 = vmand %vm3590, %vm3566
        %vm3767 = vmand %vm3591, %vm3567
        %vm3768 = vmand %vm3592, %vm3568
        %vm3769 = vmand %vm3593, %vm3569
        %v3770 = vsel %vm3762, 1, 0
        %v3771 = vsel %vm3763, 1, 0
        %v3772 = vsel %vm3764, 1, 0
        %v3773 = vsel %vm3765, 1, 0
        %v3774 = vsel %vm3766, 1, 0
        %v3775 = vsel %vm3767, 1, 0
        %v3776 = vsel %vm3768, 1, 0
        %v3777 = vsel %vm3769, 1, 0
        %vm3778 = vcmp.eq.s32.totalorder %v3770, 1
        %vm3779 = vcmp.eq.s32.totalorder %v3771, 1
        %vm3780 = vcmp.eq.s32.totalorder %v3772, 1
        %vm3781 = vcmp.eq.s32.totalorder %v3773, 1
        %vm3782 = vcmp.eq.s32.totalorder %v3774, 1
        %vm3783 = vcmp.eq.s32.totalorder %v3775, 1
        %vm3784 = vcmp.eq.s32.totalorder %v3776, 1
        %vm3785 = vcmp.eq.s32.totalorder %v3777, 1
        %v3786 = vsel %vm3778, %v3608, 0.0
        %v3787 = vsel %vm3779, %v3607, 0.0
        %v3788 = vsel %vm3780, %v3606, 0.0
        %v3789 = vsel %vm3781, %v3605, 0.0
        %v3790 = vsel %vm3782, %v3604, 0.0
        %v3791 = vsel %vm3783, %v3603, 0.0
        %v3792 = vsel %vm3784, %v3602, 0.0
        %v3793 = vsel %vm3785, %v3609, 0.0
        %v3794 = vsel %vm3586, 1, 0
        %v3795 = vsel %vm3587, 1, 0
        %v3796 = vsel %vm3588, 1, 0
        %v3797 = vsel %vm3589, 1, 0
        %v3798 = vsel %vm3590, 1, 0
        %v3799 = vsel %vm3591, 1, 0
        %v3800 = vsel %vm3592, 1, 0
        %v3801 = vsel %vm3593, 1, 0
        %vm3802 = vcmp.eq.s32.totalorder %v3794, 1
        %vm3803 = vcmp.eq.s32.totalorder %v3795, 1
        %vm3804 = vcmp.eq.s32.totalorder %v3796, 1
        %vm3805 = vcmp.eq.s32.totalorder %v3797, 1
        %vm3806 = vcmp.eq.s32.totalorder %v3798, 1
        %vm3807 = vcmp.eq.s32.totalorder %v3799, 1
        %vm3808 = vcmp.eq.s32.totalorder %v3800, 1
        %vm3809 = vcmp.eq.s32.totalorder %v3801, 1
        %v3810 = vsel %vm3802, %v3521, 0.0
        %v3811 = vsel %vm3803, %v3524, 0.0
        %v3812 = vsel %vm3804, %v3526, 0.0
        %v3813 = vsel %vm3805, %v3529, 0.0
        %v3814 = vsel %vm3806, %v3531, 0.0
        %v3815 = vsel %vm3807, %v3534, 0.0
        %v3816 = vsel %vm3808, %v3536, 0.0
        %v3817 = vsel %vm3809, %v3519, 0.0
        %vm3818 = vmand %vm3586, %vm3570
        %vm3819 = vmand %vm3587, %vm3571
        %vm3820 = vmand %vm3588, %vm3572
        %vm3821 = vmand %vm3589, %vm3573
        %vm3822 = vmand %vm3590, %vm3574
        %vm3823 = vmand %vm3591, %vm3575
        %vm3824 = vmand %vm3592, %vm3576
        %vm3825 = vmand %vm3593, %vm3577
        %v3826 = vsel %vm3818, 1, 0
        %v3827 = vsel %vm3819, 1, 0
        %v3828 = vsel %vm3820, 1, 0
        %v3829 = vsel %vm3821, 1, 0
        %v3830 = vsel %vm3822, 1, 0
        %v3831 = vsel %vm3823, 1, 0
        %v3832 = vsel %vm3824, 1, 0
        %v3833 = vsel %vm3825, 1, 0
        %vm3834 = vcmp.eq.s32.totalorder %v3826, 1
        %vm3835 = vcmp.eq.s32.totalorder %v3827, 1
        %vm3836 = vcmp.eq.s32.totalorder %v3828, 1
        %vm3837 = vcmp.eq.s32.totalorder %v3829, 1
        %vm3838 = vcmp.eq.s32.totalorder %v3830, 1
        %vm3839 = vcmp.eq.s32.totalorder %v3831, 1
        %vm3840 = vcmp.eq.s32.totalorder %v3832, 1
        %vm3841 = vcmp.eq.s32.totalorder %v3833, 1
        %v3842 = vsel %vm3834, %v3679, 0.0
        %v3843 = vsel %vm3835, %v3678, 0.0
        %v3844 = vsel %vm3836, %v3677, 0.0
        %v3845 = vsel %vm3837, %v3676, 0.0
        %v3846 = vsel %vm3838, %v3675, 0.0
        %v3847 = vsel %vm3839, %v3674, 0.0
        %v3848 = vsel %vm3840, %v3681, 0.0
        %v3849 = vsel %vm3841, %v3680, 0.0
        %3858 = vrot.lane.b32.xlu0 %v3658, 32
        %v3859 = vpop.permute.xlu0 %3858
        %3860 = vrot.lane.b32.xlu0 %v3659, 32
        %v3861 = vpop.permute.xlu0 %3860
        %3862 = vrot.lane.b32.xlu0 %v3660, 32
        %v3863 = vpop.permute.xlu0 %3862
        %3864 = vrot.lane.b32.xlu0 %v3661, 32
        %v3865 = vpop.permute.xlu0 %3864
        %3866 = vrot.lane.b32.xlu0 %v3662, 32
        %v3867 = vpop.permute.xlu0 %3866
        %3868 = vrot.lane.b32.xlu0 %v3663, 32
        %v3869 = vpop.permute.xlu0 %3868
        %3870 = vrot.lane.b32.xlu0 %v3664, 32
        %v3871 = vpop.permute.xlu0 %3870
        %3872 = vrot.lane.b32.xlu0 %v3665, 32
        %v3873 = vpop.permute.xlu0 %3872
        %3890 = vrot.lane.b32.xlu0 %v3706, 64
        %v3891 = vpop.permute.xlu0 %3890
        %3892 = vrot.lane.b32.xlu0 %v3707, 64
        %v3893 = vpop.permute.xlu0 %3892
        %3894 = vrot.lane.b32.xlu0 %v3708, 64
        %v3895 = vpop.permute.xlu0 %3894
        %3896 = vrot.lane.b32.xlu0 %v3709, 64
        %v3897 = vpop.permute.xlu0 %3896
        %3898 = vrot.lane.b32.xlu0 %v3710, 64
        %v3899 = vpop.permute.xlu0 %3898
        %3900 = vrot.lane.b32.xlu0 %v3711, 64
        %v3901 = vpop.permute.xlu0 %3900
        %3902 = vrot.lane.b32.xlu0 %v3712, 64
        %v3903 = vpop.permute.xlu0 %3902
        %3904 = vrot.lane.b32.xlu0 %v3713, 64
        %v3905 = vpop.permute.xlu0 %3904
        %3922 = vrot.lane.b32.xlu0 %v3730, 96
        %v3923 = vpop.permute.xlu0 %3922
        %3924 = vrot.lane.b32.xlu0 %v3731, 96
        %v3925 = vpop.permute.xlu0 %3924
        %3926 = vrot.lane.b32.xlu0 %v3732, 96
        %v3927 = vpop.permute.xlu0 %3926
        %3928 = vrot.lane.b32.xlu0 %v3733, 96
        %v3929 = vpop.permute.xlu0 %3928
        %3930 = vrot.lane.b32.xlu0 %v3734, 96
        %v3931 = vpop.permute.xlu0 %3930
        %3932 = vrot.lane.b32.xlu0 %v3735, 96
        %v3933 = vpop.permute.xlu0 %3932
        %3934 = vrot.lane.b32.xlu0 %v3736, 96
        %v3935 = vpop.permute.xlu0 %3934
        %3936 = vrot.lane.b32.xlu0 %v3737, 96
        %v3937 = vpop.permute.xlu0 %3936
        %3954 = vrot.lane.b32.xlu0 %v3754, 32
        %v3955 = vpop.permute.xlu0 %3954
        %3956 = vrot.lane.b32.xlu0 %v3755, 32
        %v3957 = vpop.permute.xlu0 %3956
        %3958 = vrot.lane.b32.xlu0 %v3756, 32
        %v3959 = vpop.permute.xlu0 %3958
        %3960 = vrot.lane.b32.xlu0 %v3757, 32
        %v3961 = vpop.permute.xlu0 %3960
        %3962 = vrot.lane.b32.xlu0 %v3758, 32
        %v3963 = vpop.permute.xlu0 %3962
        %3964 = vrot.lane.b32.xlu0 %v3759, 32
        %v3965 = vpop.permute.xlu0 %3964
        %3966 = vrot.lane.b32.xlu0 %v3760, 32
        %v3967 = vpop.permute.xlu0 %3966
        %3968 = vrot.lane.b32.xlu0 %v3761, 32
        %v3969 = vpop.permute.xlu0 %3968
        %3986 = vrot.lane.b32.xlu0 %v3786, 64
        %v3987 = vpop.permute.xlu0 %3986
        %3988 = vrot.lane.b32.xlu0 %v3787, 64
        %v3989 = vpop.permute.xlu0 %3988
        %3990 = vrot.lane.b32.xlu0 %v3788, 64
        %v3991 = vpop.permute.xlu0 %3990
        %3992 = vrot.lane.b32.xlu0 %v3789, 64
        %v3993 = vpop.permute.xlu0 %3992
        %3994 = vrot.lane.b32.xlu0 %v3790, 64
        %v3995 = vpop.permute.xlu0 %3994
        %3996 = vrot.lane.b32.xlu0 %v3791, 64
        %v3997 = vpop.permute.xlu0 %3996
        %3998 = vrot.lane.b32.xlu0 %v3792, 64
        %v3999 = vpop.permute.xlu0 %3998
        %4000 = vrot.lane.b32.xlu0 %v3793, 64
        %v4001 = vpop.permute.xlu0 %4000
        %4018 = vrot.lane.b32.xlu0 %v3810, 96
        %v4019 = vpop.permute.xlu0 %4018
        %4020 = vrot.lane.b32.xlu0 %v3811, 96
        %v4021 = vpop.permute.xlu0 %4020
        %4022 = vrot.lane.b32.xlu0 %v3812, 96
        %v4023 = vpop.permute.xlu0 %4022
        %4024 = vrot.lane.b32.xlu0 %v3813, 96
        %v4025 = vpop.permute.xlu0 %4024
        %4026 = vrot.lane.b32.xlu0 %v3814, 96
        %v4027 = vpop.permute.xlu0 %4026
        %4028 = vrot.lane.b32.xlu0 %v3815, 96
        %v4029 = vpop.permute.xlu0 %4028
        %4030 = vrot.lane.b32.xlu0 %v3816, 96
        %v4031 = vpop.permute.xlu0 %4030
        %4032 = vrot.lane.b32.xlu0 %v3817, 96
        %v4033 = vpop.permute.xlu0 %4032
        %v4042 = vsel %vm3041, %v3634, %v3859
        %v4043 = vsel %vm3041, %v3635, %v3861
        %v4044 = vsel %vm3041, %v3636, %v3863
        %v4045 = vsel %vm3041, %v3637, %v3865
        %v4046 = vsel %vm3041, %v3638, %v3867
        %v4047 = vsel %vm3041, %v3639, %v3869
        %v4048 = vsel %vm3041, %v3640, %v3871
        %v4049 = vsel %vm3041, %v3641, %v3873
        %vm4050 = vcmask 523264
        %v4051 = vsel %vm4050, %v4042, %v3891
        %v4052 = vsel %vm4050, %v4043, %v3893
        %v4053 = vsel %vm4050, %v4044, %v3895
        %v4054 = vsel %vm4050, %v4045, %v3897
        %v4055 = vsel %vm4050, %v4046, %v3899
        %v4056 = vsel %vm4050, %v4047, %v3901
        %v4057 = vsel %vm4050, %v4048, %v3903
        %v4058 = vsel %vm4050, %v4049, %v3905
        %vm4059 = vcmask 785408
        %v4060 = vsel %vm4059, %v4051, %v3923
        %v4061 = vsel %vm4059, %v4052, %v3925
        %v4062 = vsel %vm4059, %v4053, %v3927
        %v4063 = vsel %vm4059, %v4054, %v3929
        %v4064 = vsel %vm4059, %v4055, %v3931
        %v4065 = vsel %vm4059, %v4056, %v3933
        %v4066 = vsel %vm4059, %v4057, %v3935
        %v4067 = vsel %vm4059, %v4058, %v3937
        %v4068 = vsel %vm3041, %v3519, %v3955
        %v4069 = vsel %vm3041, %v3521, %v3957
        %v4070 = vsel %vm3041, %v3524, %v3959
        %v4071 = vsel %vm3041, %v3526, %v3961
        %v4072 = vsel %vm3041, %v3529, %v3963
        %v4073 = vsel %vm3041, %v3531, %v3965
        %v4074 = vsel %vm3041, %v3534, %v3967
        %v4075 = vsel %vm3041, %v3536, %v3969
        %v4076 = vsel %vm4050, %v4068, %v3987
        %v4077 = vsel %vm4050, %v4069, %v3989
        %v4078 = vsel %vm4050, %v4070, %v3991
        %v4079 = vsel %vm4050, %v4071, %v3993
        %v4080 = vsel %vm4050, %v4072, %v3995
        %v4081 = vsel %vm4050, %v4073, %v3997
        %v4082 = vsel %vm4050, %v4074, %v3999
        %v4083 = vsel %vm4050, %v4075, %v4001
        %v4084 = vsel %vm4059, %v4076, %v4019
        %v4085 = vsel %vm4059, %v4077, %v4021
        %v4086 = vsel %vm4059, %v4078, %v4023
        %v4087 = vsel %vm4059, %v4079, %v4025
        %v4088 = vsel %vm4059, %v4080, %v4027
        %v4089 = vsel %vm4059, %v4081, %v4029
        %v4090 = vsel %vm4059, %v4082, %v4031
        %v4091 = vsel %vm4059, %v4083, %v4033
        %v4092 = vpack.c.bf16 %v4061, %v4060
        %v4093 = vpack.c.bf16 %v4085, %v4084
        %v4094 = vpack.c.bf16 %v3843, %v3842
        %v4095 = vpack.c.bf16 %v4063, %v4062
        %v4096 = vpack.c.bf16 %v4087, %v4086
        %v4097 = vpack.c.bf16 %v3845, %v3844
        %v4098 = vpack.c.bf16 %v4065, %v4064
        %v4099 = vpack.c.bf16 %v4089, %v4088
        %v4100 = vpack.c.bf16 %v3847, %v3846
        %v4101 = vpack.c.bf16 %v4067, %v4066
        %v4102 = vpack.c.bf16 %v4091, %v4090
        %v4103 = vpack.c.bf16 %v3849, %v3848
        %v4104 = vld [vmem:[%s4] sm:$0xf]
        %v4105 = vld [vmem:[%s4 + $0x4] sm:$0xf]
        %v4106 = vld [vmem:[%s4 + $0x8] sm:$0xf]
        %v4107 = vld [vmem:[%s4 + $0xc] sm:$0xf]
        %v4108 = vld [vmem:[%s4 + $0x10] sm:$0xf]
        %v4109 = vld [vmem:[%s4 + $0x14] sm:$0xf]
        %v4110 = vld [vmem:[%s4 + $0x18] sm:$0xf]
        %v4111 = vld [vmem:[%s4 + $0x1c] sm:$0xf]
        %v4112 = vld [vmem:[%s4 + $0x20] sm:$0xf]
        %v4113 = vld [vmem:[%s4 + $0x24] sm:$0xf]
        %v4114 = vld [vmem:[%s4 + $0x28] sm:$0xf]
        %v4115 = vld [vmem:[%s4 + $0x2c] sm:$0xf]
        %v4116 = vld [vmem:[%s4 + $0x30] sm:$0xf]
        %v4117 = vld [vmem:[%s4 + $0x34] sm:$0xf]
        %v4118 = vld [vmem:[%s4 + $0x38] sm:$0xf]
        %v4119 = vld [vmem:[%s4 + $0x3c] sm:$0xf]
        %v4120 = vld [vmem:[%s4 + $0x40] sm:$0xf]
        %v4121 = vld [vmem:[%s4 + $0x44] sm:$0xf]
        %v4122 = vld [vmem:[%s4 + $0x48] sm:$0xf]
        %v4123 = vld [vmem:[%s4 + $0x4c] sm:$0xf]
        %v4124 = vld [vmem:[%s4 + $0x50] sm:$0xf]
        %v4125 = vld [vmem:[%s4 + $0x54] sm:$0xf]
        %v4126 = vld [vmem:[%s4 + $0x58] sm:$0xf]
        %v4127 = vld [vmem:[%s4 + $0x5c] sm:$0xf]
        %v4128 = vld [vmem:[%s4 + $0x60] sm:$0xf]
        %v4129 = vld [vmem:[%s4 + $0x64] sm:$0xf]
        %v4130 = vld [vmem:[%s4 + $0x68] sm:$0xf]
        %v4131 = vld [vmem:[%s4 + $0x6c] sm:$0xf]
        %v4132 = vld [vmem:[%s4 + $0x70] sm:$0xf]
        %v4133 = vld [vmem:[%s4 + $0x74] sm:$0xf]
        %v4134 = vld [vmem:[%s4 + $0x78] sm:$0xf]
        %v4135 = vld [vmem:[%s4 + $0x7c] sm:$0xf]
        %v4136 = vld [vmem:[%s4 + $0x80] sm:$0xf]
        %v4137 = vld [vmem:[%s4 + $0x84] sm:$0xf]
        %v4138 = vld [vmem:[%s4 + $0x88] sm:$0xf]
        %v4139 = vld [vmem:[%s4 + $0x8c] sm:$0xf]
        %v4140 = vld [vmem:[%s5] sm:$0x1]
        %v4142 = vperm.slane %v4140, 0
        %v4180 = vunpack.c.l.b16 %v4104
        %v4181 = vunpack.c.l.b16 %v4105
        %v4182 = vunpack.c.l.b16 %v4106
        %v4183 = vunpack.c.l.b16 %v4107
        %v4184 = vunpack.c.l.b16 %v4108
        %v4185 = vunpack.c.l.b16 %v4109
        %v4186 = vunpack.c.l.b16 %v4110
        %v4187 = vunpack.c.l.b16 %v4111
        %v4188 = vunpack.c.l.b16 %v4112
        %v4189 = vunpack.c.l.b16 %v4113
        %v4190 = vunpack.c.l.b16 %v4114
        %v4191 = vunpack.c.l.b16 %v4115
        %v4192 = vunpack.c.l.b16 %v4116
        %v4193 = vunpack.c.l.b16 %v4117
        %v4194 = vunpack.c.l.b16 %v4118
        %v4195 = vunpack.c.l.b16 %v4119
        %v4196 = vunpack.c.l.b16 %v4120
        %v4197 = vunpack.c.l.b16 %v4121
        %v4198 = vunpack.c.l.b16 %v4122
        %v4199 = vunpack.c.l.b16 %v4123
        %v4200 = vunpack.c.l.b16 %v4124
        %v4201 = vunpack.c.l.b16 %v4125
        %v4202 = vunpack.c.l.b16 %v4126
        %v4203 = vunpack.c.l.b16 %v4127
        %v4204 = vunpack.c.l.b16 %v4128
        %v4205 = vunpack.c.l.b16 %v4129
        %v4206 = vunpack.c.l.b16 %v4130
        %v4207 = vunpack.c.l.b16 %v4131
        %v4208 = vunpack.c.l.b16 %v4132
        %v4209 = vunpack.c.l.b16 %v4133
        %v4210 = vunpack.c.l.b16 %v4134
        %v4211 = vunpack.c.l.b16 %v4135
        %v4212 = vunpack.c.l.b16 %v4136
        %v4213 = vunpack.c.l.b16 %v4137
        %v4214 = vunpack.c.l.b16 %v4138
        %v4215 = vunpack.c.l.b16 %v4139
        %v4216 = vpack.c.b16 %v4181, %v4180
        %v4217 = vpack.c.b16 %v4183, %v4182
        %v4218 = vpack.c.b16 %v4185, %v4184
        %v4219 = vpack.c.b16 %v4187, %v4186
        %v4220 = vpack.c.b16 %v4189, %v4188
        %v4221 = vpack.c.b16 %v4191, %v4190
        %v4222 = vpack.c.b16 %v4193, %v4192
        %v4223 = vpack.c.b16 %v4195, %v4194
        %v4224 = vpack.c.b16 %v4197, %v4196
        %v4225 = vpack.c.b16 %v4199, %v4198
        %v4226 = vpack.c.b16 %v4201, %v4200
        %v4227 = vpack.c.b16 %v4203, %v4202
        %v4228 = vpack.c.b16 %v4205, %v4204
        %v4229 = vpack.c.b16 %v4207, %v4206
        %v4230 = vpack.c.b16 %v4209, %v4208
        %v4231 = vpack.c.b16 %v4211, %v4210
        %v4232 = vpack.c.b16 %v4213, %v4212
        %v4233 = vpack.c.b16 %v4215, %v4214
        %v4253 = vsel %vm3041, %v4094, 0
        %v4256 = vsel %vm3041, %v4097, 0
        %v4259 = vsel %vm3041, %v4100, 0
        %v4262 = vsel %vm3041, %v4103, 0
        %4264 = vmatpush.bf16.msra.mxu0 %v4223
        %4265 = vmatpush.bf16.msra.mxu0 %v4222
        %4266 = vmatpush.bf16.msra.mxu0 %v4221
        %4267 = vmatpush.bf16.msra.mxu0 %v4220
        %4268 = vmatpush.bf16.msra.mxu0 %v4219
        %4269 = vmatpush.bf16.msra.mxu0 %v4218
        %4270 = vmatpush.bf16.msra.mxu0 %v4217
        %4271 = vmatpush.bf16.msra.mxu0 %v4216
        %4272 = vmatmul.bf16.gmra.mxu0 %v4092
        %v4273 = vpop.f32.mrf.mxu0
        %v4274 = vadd.f32 %v4142, %v4273
        %v4275 = vpop.f32.mrf.mxu0
        %v4276 = vadd.f32 %v4142, %v4275
        %4277 = vmatmul.bf16.gmra.mxu0 %v4095
        %v4278 = vpop.f32.mrf.mxu0
        %v4279 = vadd.f32 %v4142, %v4278
        %v4280 = vpop.f32.mrf.mxu0
        %v4281 = vadd.f32 %v4142, %v4280
        %4282 = vmatmul.bf16.gmra.mxu0 %v4098
        %v4283 = vpop.f32.mrf.mxu0
        %v4284 = vadd.f32 %v4142, %v4283
        %v4285 = vpop.f32.mrf.mxu0
        %v4286 = vadd.f32 %v4142, %v4285
        %4287 = vmatmul.bf16.gmra.mxu0 %v4101
        %v4288 = vpop.f32.mrf.mxu0
        %v4289 = vadd.f32 %v4142, %v4288
        %v4290 = vpop.f32.mrf.mxu0
        %v4291 = vadd.f32 %v4142, %v4290
        %4292 = vdwg.mxu0
        %4293 = vmatpush.bf16.msra.mxu0 %v4231
        %4294 = vmatpush.bf16.msra.mxu0 %v4230
        %4295 = vmatpush.bf16.msra.mxu0 %v4229
        %4296 = vmatpush.bf16.msra.mxu0 %v4228
        %4297 = vmatpush.bf16.msra.mxu0 %v4227
        %4298 = vmatpush.bf16.msra.mxu0 %v4226
        %4299 = vmatpush.bf16.msra.mxu0 %v4225
        %4300 = vmatpush.bf16.msra.mxu0 %v4224
        %4301 = vmatmul.bf16.gmra.mxu0 %v4093
        %v4302 = vpop.f32.mrf.mxu0
        %v4303 = vadd.f32 %v4274, %v4302
        %v4304 = vpop.f32.mrf.mxu0
        %v4305 = vadd.f32 %v4276, %v4304
        %4306 = vmatmul.bf16.gmra.mxu0 %v4096
        %v4307 = vpop.f32.mrf.mxu0
        %v4308 = vadd.f32 %v4279, %v4307
        %v4309 = vpop.f32.mrf.mxu0
        %v4310 = vadd.f32 %v4281, %v4309
        %4311 = vmatmul.bf16.gmra.mxu0 %v4099
        %v4312 = vpop.f32.mrf.mxu0
        %v4313 = vadd.f32 %v4284, %v4312
        %v4314 = vpop.f32.mrf.mxu0
        %v4315 = vadd.f32 %v4286, %v4314
        %4316 = vmatmul.bf16.gmra.mxu0 %v4102
        %v4317 = vpop.f32.mrf.mxu0
        %v4318 = vadd.f32 %v4289, %v4317
        %v4319 = vpop.f32.mrf.mxu0
        %v4320 = vadd.f32 %v4291, %v4319
        %4321 = vdwg.mxu0
        %4322 = vmatpush.bf16.msra.mxu0 0
        %4323 = vmatpush.bf16.msra.mxu0 0
        %4324 = vmatpush.bf16.msra.mxu0 0
        %4325 = vmatpush.bf16.msra.mxu0 0
        %4326 = vmatpush.bf16.msra.mxu0 0
        %4327 = vmatpush.bf16.msra.mxu0 0
        %4328 = vmatpush.bf16.msra.mxu0 %v4233
        %4329 = vmatpush.bf16.msra.mxu0 %v4232
        %4330 = vmatmul.bf16.gmra.mxu0 %v4253
        %v4331 = vpop.f32.mrf.mxu0
        %v4332 = vadd.f32 %v4303, %v4331
        %v4333 = vpop.f32.mrf.mxu0
        %v4334 = vadd.f32 %v4305, %v4333
        %4335 = vmatmul.bf16.gmra.mxu0 %v4256
        %v4336 = vpop.f32.mrf.mxu0
        %v4337 = vadd.f32 %v4308, %v4336
        %v4338 = vpop.f32.mrf.mxu0
        %v4339 = vadd.f32 %v4310, %v4338
        %4340 = vmatmul.bf16.gmra.mxu0 %v4259
        %v4341 = vpop.f32.mrf.mxu0
        %v4342 = vadd.f32 %v4313, %v4341
        %v4343 = vpop.f32.mrf.mxu0
        %v4344 = vadd.f32 %v4315, %v4343
        %4345 = vmatmul.bf16.gmra.mxu0 %v4262
        %v4346 = vpop.f32.mrf.mxu0
        %v4347 = vadd.f32 %v4318, %v4346
        %v4348 = vpop.f32.mrf.mxu0
        %v4349 = vadd.f32 %v4320, %v4348
        %4350 = vdwg.mxu0
        %v4351 = vmax.f32 %v4332, 0.0
        %v4352 = vmax.f32 %v4334, 0.0
        %v4353 = vmax.f32 %v4337, 0.0
        %v4354 = vmax.f32 %v4339, 0.0
        %v4355 = vmax.f32 %v4342, 0.0
        %v4356 = vmax.f32 %v4344, 0.0
        %v4357 = vmax.f32 %v4347, 0.0
        %v4358 = vmax.f32 %v4349, 0.0
        %v4359 = vrot.slane %v4351, 1
        %v4360 = vrot.slane %v4352, 1
        %v4361 = vrot.slane %v4353, 1
        %v4362 = vrot.slane %v4354, 1
        %v4363 = vrot.slane %v4355, 1
        %v4364 = vrot.slane %v4356, 1
        %v4365 = vrot.slane %v4357, 1
        %v4366 = vrot.slane %v4358, 1
        %v4367 = vsel %vm1081, %v4365, %v4366
        %v4368 = vsel %vm1081, %v4364, %v4365
        %v4369 = vsel %vm1081, %v4363, %v4364
        %v4370 = vsel %vm1081, %v4362, %v4363
        %v4371 = vsel %vm1081, %v4361, %v4362
        %v4372 = vsel %vm1081, %v4360, %v4361
        %v4373 = vsel %vm1081, %v4359, %v4360
        %v4374 = vsel %vm1081, %v4366, %v4359
        %v4375 = vmax.f32 %v4351, %v4373
        %v4376 = vmax.f32 %v4352, %v4372
        %v4377 = vmax.f32 %v4353, %v4371
        %v4378 = vmax.f32 %v4354, %v4370
        %v4379 = vmax.f32 %v4355, %v4369
        %v4380 = vmax.f32 %v4356, %v4368
        %v4381 = vmax.f32 %v4357, %v4367
        %v4382 = vmax.f32 %v4358, %v4374
        %v4383 = vmax.f32 %v4375, %v4376
        %v4384 = vmax.f32 %v4376, %v4377
        %v4385 = vmax.f32 %v4377, %v4378
        %v4386 = vmax.f32 %v4378, %v4379
        %v4387 = vmax.f32 %v4379, %v4380
        %v4388 = vmax.f32 %v4380, %v4381
        %v4389 = vmax.f32 %v4381, %v4382
        %v4390 = vmax.f32 %v4382, %v4375
        %v4391 = vpack.c.bf16 %v4384, %v4383
        %v4392 = vpack.c.bf16 %v4386, %v4385
        %v4393 = vpack.c.bf16 %v4388, %v4387
        %v4394 = vpack.c.bf16 %v4390, %v4389
        %v4395 = vld [vmem:[%s6] sm:$0xf]
        %v4396 = vld [vmem:[%s6 + $0x4] sm:$0xf]
        %v4399 = vunpack.c.l.b16 %v4395
        %v4400 = vunpack.c.l.b16 %v4396
        %v4401 = vpack.c.b16 %v4400, %v4399
        %v4403 = vsel %vm4050, %v4401, 0
        %4405 = vmatpush.bf16.msra.mxu0 0
        %4406 = vmatpush.bf16.msra.mxu0 0
        %4407 = vmatpush.bf16.msra.mxu0 0
        %4408 = vmatpush.bf16.msra.mxu0 0
        %4409 = vmatpush.bf16.msra.mxu0 %v4394
        %4410 = vmatpush.bf16.msra.mxu0 %v4393
        %4411 = vmatpush.bf16.msra.mxu0 %v4392
        %4412 = vmatpush.bf16.msra.mxu0 %v4391
        %4413 = vmatmul.bf16.gmra.mxu0 %v4403
        %v4414 = vpop.f32.mrf.mxu0
        %v4415 = vadd.f32 0.0, %v4414
        %v4416 = vpop.f32.mrf.mxu0
        %v4417 = vadd.f32 0.0, %v4416
        %4418 = vdwg.mxu0
        %v4419 = vand.u32 %v504, 3
        %v4420 = vand.u32 %v505, 3
        %v4421 = vshra.s32 %v504, 2
        %v4422 = vshra.s32 %v505, 2
        %v4423 = vand.u32 %v4421, 3
        %v4424 = vand.u32 %v4422, 3
        %vm4425 = vcmp.ge.s32.totalorder %v4419, 1
        %vm4426 = vcmp.ge.s32.totalorder %v4420, 1
        %vm4427 = vcmp.le.s32.totalorder %v4419, 2
        %vm4428 = vcmp.le.s32.totalorder %v4420, 2
        %vm4429 = vcmp.ge.s32.totalorder %v4423, 1
        %vm4430 = vcmp.ge.s32.totalorder %v4424, 1
        %vm4431 = vcmp.le.s32.totalorder %v4423, 2
        %vm4432 = vcmp.le.s32.totalorder %v4424, 2
        %v4433 = vrot.slane %v4415, 3
        %v4434 = vrot.slane %v4417, 3
        %vm4435 = vcmp.lt.s32.totalorder %v504, 5
        %v4436 = vsel %vm4435, %v4433, %v4434
        %v4437 = vsel %vm4435, %v4434, %v4433
        %vm4438 = vmand %vm4429, %vm4425
        %vm4439 = vmand %vm4430, %vm4426
        %v4440 = vsel %vm4438, 1, 0
        %v4441 = vsel %vm4439, 1, 0
        %vm4442 = vcmp.eq.s32.totalorder %v4440, 1
        %vm4443 = vcmp.eq.s32.totalorder %v4441, 1
        %v4444 = vsel %vm4442, %v4437, 0.0
        %v4445 = vsel %vm4443, %v4436, 0.0
        %v4446 = vrot.slane %v4415, 4
        %v4447 = vrot.slane %v4417, 4
        %vm4448 = vcmp.lt.s32.totalorder %v504, 4
        %v4449 = vsel %vm4448, %v4446, %v4447
        %v4450 = vsel %vm4448, %v4447, %v4446
        %v4451 = vsel %vm4429, 1, 0
        %v4452 = vsel %vm4430, 1, 0
        %vm4453 = vcmp.eq.s32.totalorder %v4451, 1
        %vm4454 = vcmp.eq.s32.totalorder %v4452, 1
        %v4455 = vsel %vm4453, %v4450, 0.0
        %v4456 = vsel %vm4454, %v4449, 0.0
        %v4457 = vrot.slane %v4415, 5
        %v4458 = vrot.slane %v4417, 5
        %vm4459 = vcmp.lt.s32.totalorder %v504, 3
        %v4460 = vsel %vm4459, %v4457, %v4458
        %v4461 = vsel %vm4459, %v4458, %v4457
        %vm4462 = vmand %vm4429, %vm4427
        %vm4463 = vmand %vm4430, %vm4428
        %v4464 = vsel %vm4462, 1, 0
        %v4465 = vsel %vm4463, 1, 0
        %vm4466 = vcmp.eq.s32.totalorder %v4464, 1
        %vm4467 = vcmp.eq.s32.totalorder %v4465, 1
        %v4468 = vsel %vm4466, %v4461, 0.0
        %v4469 = vsel %vm4467, %v4460, 0.0
        %v4470 = vrot.slane %v4415, 7
        %v4471 = vrot.slane %v4417, 7
        %v4472 = vsel %vm792, %v4470, %v4471
        %v4473 = vsel %vm792, %v4471, %v4470
        %v4474 = vsel %vm4425, 1, 0
        %v4475 = vsel %vm4426, 1, 0
        %vm4476 = vcmp.eq.s32.totalorder %v4474, 1
        %vm4477 = vcmp.eq.s32.totalorder %v4475, 1
        %v4478 = vsel %vm4476, %v4473, 0.0
        %v4479 = vsel %vm4477, %v4472, 0.0
        %v4480 = vrot.slane %v4415, 1
        %v4481 = vrot.slane %v4417, 1
        %v4482 = vsel %vm1081, %v4480, %v4481
        %v4483 = vsel %vm1081, %v4481, %v4480
        %v4484 = vsel %vm4427, 1, 0
        %v4485 = vsel %vm4428, 1, 0
        %vm4486 = vcmp.eq.s32.totalorder %v4484, 1
        %vm4487 = vcmp.eq.s32.totalorder %v4485, 1
        %v4488 = vsel %vm4486, %v4482, 0.0
        %v4489 = vsel %vm4487, %v4483, 0.0
        %vm4490 = vmand %vm4431, %vm4425
        %vm4491 = vmand %vm4432, %vm4426
        %v4492 = vsel %vm4490, 1, 0
        %v4493 = vsel %vm4491, 1, 0
        %vm4494 = vcmp.eq.s32.totalorder %v4492, 1
        %vm4495 = vcmp.eq.s32.totalorder %v4493, 1
        %v4496 = vsel %vm4494, %v4436, 0.0
        %v4497 = vsel %vm4495, %v4437, 0.0
        %v4498 = vsel %vm4431, 1, 0
        %v4499 = vsel %vm4432, 1, 0
        %vm4500 = vcmp.eq.s32.totalorder %v4498, 1
        %vm4501 = vcmp.eq.s32.totalorder %v4499, 1
        %v4502 = vsel %vm4500, %v4449, 0.0
        %v4503 = vsel %vm4501, %v4450, 0.0
        %vm4504 = vmand %vm4431, %vm4427
        %vm4505 = vmand %vm4432, %vm4428
        %v4506 = vsel %vm4504, 1, 0
        %v4507 = vsel %vm4505, 1, 0
        %vm4508 = vcmp.eq.s32.totalorder %v4506, 1
        %vm4509 = vcmp.eq.s32.totalorder %v4507, 1
        %v4510 = vsel %vm4508, %v4460, 0.0
        %v4511 = vsel %vm4509, %v4461, 0.0
        %4514 = vrot.lane.b32.xlu0 %v4455, 64
        %v4515 = vpop.permute.xlu0 %4514
        %4516 = vrot.lane.b32.xlu0 %v4456, 64
        %v4517 = vpop.permute.xlu0 %4516
        %4522 = vrot.lane.b32.xlu0 %v4478, 64
        %v4523 = vpop.permute.xlu0 %4522
        %4524 = vrot.lane.b32.xlu0 %v4479, 64
        %v4525 = vpop.permute.xlu0 %4524
        %4530 = vrot.lane.b32.xlu0 %v4488, 64
        %v4531 = vpop.permute.xlu0 %4530
        %4532 = vrot.lane.b32.xlu0 %v4489, 64
        %v4533 = vpop.permute.xlu0 %4532
        %4538 = vrot.lane.b32.xlu0 %v4502, 64
        %v4539 = vpop.permute.xlu0 %4538
        %4540 = vrot.lane.b32.xlu0 %v4503, 64
        %v4541 = vpop.permute.xlu0 %4540
        %v4544 = vsel %vm4050, %v4444, %v4515
        %v4545 = vsel %vm4050, %v4445, %v4517
        %v4546 = vsel %vm4050, %v4468, %v4523
        %v4547 = vsel %vm4050, %v4469, %v4525
        %v4548 = vsel %vm4050, %v4415, %v4531
        %v4549 = vsel %vm4050, %v4417, %v4533
        %v4550 = vsel %vm4050, %v4496, %v4539
        %v4551 = vsel %vm4050, %v4497, %v4541
        %v4552 = vpack.c.bf16 %v4545, %v4544
        %v4553 = vpack.c.bf16 %v4547, %v4546
        %v4554 = vpack.c.bf16 %v4549, %v4548
        %v4555 = vpack.c.bf16 %v4551, %v4550
        %v4556 = vpack.c.bf16 %v4511, %v4510
        %v4557 = vld [vmem:[%s7] sm:$0xf]
        %v4558 = vld [vmem:[%s7 + $0x4] sm:$0xf]
        %v4559 = vld [vmem:[%s7 + $0x8] sm:$0xf]
        %v4560 = vld [vmem:[%s7 + $0xc] sm:$0xf]
        %v4561 = vld [vmem:[%s7 + $0x10] sm:$0xf]
        %v4562 = vld [vmem:[%s7 + $0x14] sm:$0xf]
        %v4563 = vld [vmem:[%s7 + $0x18] sm:$0xf]
        %v4564 = vld [vmem:[%s7 + $0x1c] sm:$0xf]
        %v4565 = vld [vmem:[%s7 + $0x20] sm:$0xf]
        %v4566 = vld [vmem:[%s7 + $0x24] sm:$0xf]
        %v4567 = vld [vmem:[%s7 + $0x28] sm:$0xf]
        %v4568 = vld [vmem:[%s7 + $0x2c] sm:$0xf]
        %v4569 = vld [vmem:[%s7 + $0x30] sm:$0xf]
        %v4570 = vld [vmem:[%s7 + $0x34] sm:$0xf]
        %v4571 = vld [vmem:[%s7 + $0x38] sm:$0xf]
        %v4572 = vld [vmem:[%s7 + $0x3c] sm:$0xf]
        %v4573 = vld [vmem:[%s7 + $0x40] sm:$0xf]
        %v4574 = vld [vmem:[%s7 + $0x44] sm:$0xf]
        %v4575 = vld [vmem:[%s7 + $0x48] sm:$0xf]
        %v4576 = vld [vmem:[%s7 + $0x4c] sm:$0xf]
        %v4577 = vld [vmem:[%s7 + $0x50] sm:$0xf]
        %v4578 = vld [vmem:[%s7 + $0x54] sm:$0xf]
        %v4579 = vld [vmem:[%s7 + $0x58] sm:$0xf]
        %v4580 = vld [vmem:[%s7 + $0x5c] sm:$0xf]
        %v4581 = vld [vmem:[%s7 + $0x60] sm:$0xf]
        %v4582 = vld [vmem:[%s7 + $0x64] sm:$0xf]
        %v4583 = vld [vmem:[%s7 + $0x68] sm:$0xf]
        %v4584 = vld [vmem:[%s7 + $0x6c] sm:$0xf]
        %v4585 = vld [vmem:[%s7 + $0x70] sm:$0xf]
        %v4586 = vld [vmem:[%s7 + $0x74] sm:$0xf]
        %v4587 = vld [vmem:[%s7 + $0x78] sm:$0xf]
        %v4588 = vld [vmem:[%s7 + $0x7c] sm:$0xf]
        %v4589 = vld [vmem:[%s7 + $0x80] sm:$0xf]
        %v4590 = vld [vmem:[%s7 + $0x84] sm:$0xf]
        %v4591 = vld [vmem:[%s7 + $0x88] sm:$0xf]
        %v4592 = vld [vmem:[%s7 + $0x8c] sm:$0xf]
        %v4593 = vld [vmem:[%s7 + $0x90] sm:$0xf]
        %v4594 = vld [vmem:[%s7 + $0x94] sm:$0xf]
        %v4595 = vld [vmem:[%s7 + $0x98] sm:$0xf]
        %v4596 = vld [vmem:[%s7 + $0x9c] sm:$0xf]
        %v4597 = vld [vmem:[%s7 + $0xa0] sm:$0xf]
        %v4598 = vld [vmem:[%s7 + $0xa4] sm:$0xf]
        %v4599 = vld [vmem:[%s7 + $0xa8] sm:$0xf]
        %v4600 = vld [vmem:[%s7 + $0xac] sm:$0xf]
        %v4601 = vld [vmem:[%s7 + $0xb0] sm:$0xf]
        %v4602 = vld [vmem:[%s7 + $0xb4] sm:$0xf]
        %v4603 = vld [vmem:[%s7 + $0xb8] sm:$0xf]
        %v4604 = vld [vmem:[%s7 + $0xbc] sm:$0xf]
        %v4605 = vld [vmem:[%s7 + $0xc0] sm:$0xf]
        %v4606 = vld [vmem:[%s7 + $0xc4] sm:$0xf]
        %v4607 = vld [vmem:[%s7 + $0xc8] sm:$0xf]
        %v4608 = vld [vmem:[%s7 + $0xcc] sm:$0xf]
        %v4609 = vld [vmem:[%s7 + $0xd0] sm:$0xf]
        %v4610 = vld [vmem:[%s7 + $0xd4] sm:$0xf]
        %v4611 = vld [vmem:[%s7 + $0xd8] sm:$0xf]
        %v4612 = vld [vmem:[%s7 + $0xdc] sm:$0xf]
        %v4613 = vld [vmem:[%s7 + $0xe0] sm:$0xf]
        %v4614 = vld [vmem:[%s7 + $0xe4] sm:$0xf]
        %v4615 = vld [vmem:[%s7 + $0xe8] sm:$0xf]
        %v4616 = vld [vmem:[%s7 + $0xec] sm:$0xf]
        %v4617 = vld [vmem:[%s7 + $0xf0] sm:$0xf]
        %v4618 = vld [vmem:[%s7 + $0xf4] sm:$0xf]
        %v4619 = vld [vmem:[%s7 + $0xf8] sm:$0xf]
        %v4620 = vld [vmem:[%s7 + $0xfc] sm:$0xf]
        %v4621 = vld [vmem:[%s7 + $0x100] sm:$0xf]
        %v4622 = vld [vmem:[%s7 + $0x104] sm:$0xf]
        %v4623 = vld [vmem:[%s7 + $0x108] sm:$0xf]
        %v4624 = vld [vmem:[%s7 + $0x10c] sm:$0xf]
        %v4625 = vld [vmem:[%s7 + $0x110] sm:$0xf]
        %v4626 = vld [vmem:[%s7 + $0x114] sm:$0xf]
        %v4627 = vld [vmem:[%s7 + $0x118] sm:$0xf]
        %v4628 = vld [vmem:[%s7 + $0x11c] sm:$0xf]
        %v4629 = vld [vmem:[%s8] sm:$0x1]
        %v4631 = vperm.slane %v4629, 0
        %v4705 = vunpack.c.l.b16 %v4557
        %v4706 = vunpack.c.l.b16 %v4558
        %v4707 = vunpack.c.l.b16 %v4559
        %v4708 = vunpack.c.l.b16 %v4560
        %v4709 = vunpack.c.l.b16 %v4561
        %v4710 = vunpack.c.l.b16 %v4562
        %v4711 = vunpack.c.l.b16 %v4563
        %v4712 = vunpack.c.l.b16 %v4564
        %v4713 = vunpack.c.l.b16 %v4565
        %v4714 = vunpack.c.l.b16 %v4566
        %v4715 = vunpack.c.l.b16 %v4567
        %v4716 = vunpack.c.l.b16 %v4568
        %v4717 = vunpack.c.l.b16 %v4569
        %v4718 = vunpack.c.l.b16 %v4570
        %v4719 = vunpack.c.l.b16 %v4571
        %v4720 = vunpack.c.l.b16 %v4572
        %v4721 = vunpack.c.l.b16 %v4573
        %v4722 = vunpack.c.l.b16 %v4574
        %v4723 = vunpack.c.l.b16 %v4575
        %v4724 = vunpack.c.l.b16 %v4576
        %v4725 = vunpack.c.l.b16 %v4577
        %v4726 = vunpack.c.l.b16 %v4578
        %v4727 = vunpack.c.l.b16 %v4579
        %v4728 = vunpack.c.l.b16 %v4580
        %v4729 = vunpack.c.l.b16 %v4581
        %v4730 = vunpack.c.l.b16 %v4582
        %v4731 = vunpack.c.l.b16 %v4583
        %v4732 = vunpack.c.l.b16 %v4584
        %v4733 = vunpack.c.l.b16 %v4585
        %v4734 = vunpack.c.l.b16 %v4586
        %v4735 = vunpack.c.l.b16 %v4587
        %v4736 = vunpack.c.l.b16 %v4588
        %v4737 = vunpack.c.l.b16 %v4589
        %v4738 = vunpack.c.l.b16 %v4590
        %v4739 = vunpack.c.l.b16 %v4591
        %v4740 = vunpack.c.l.b16 %v4592
        %v4741 = vunpack.c.l.b16 %v4593
        %v4742 = vunpack.c.l.b16 %v4594
        %v4743 = vunpack.c.l.b16 %v4595
        %v4744 = vunpack.c.l.b16 %v4596
        %v4745 = vunpack.c.l.b16 %v4597
        %v4746 = vunpack.c.l.b16 %v4598
        %v4747 = vunpack.c.l.b16 %v4599
        %v4748 = vunpack.c.l.b16 %v4600
        %v4749 = vunpack.c.l.b16 %v4601
        %v4750 = vunpack.c.l.b16 %v4602
        %v4751 = vunpack.c.l.b16 %v4603
        %v4752 = vunpack.c.l.b16 %v4604
        %v4753 = vunpack.c.l.b16 %v4605
        %v4754 = vunpack.c.l.b16 %v4606
        %v4755 = vunpack.c.l.b16 %v4607
        %v4756 = vunpack.c.l.b16 %v4608
        %v4757 = vunpack.c.l.b16 %v4609
        %v4758 = vunpack.c.l.b16 %v4610
        %v4759 = vunpack.c.l.b16 %v4611
        %v4760 = vunpack.c.l.b16 %v4612
        %v4761 = vunpack.c.l.b16 %v4613
        %v4762 = vunpack.c.l.b16 %v4614
        %v4763 = vunpack.c.l.b16 %v4615
        %v4764 = vunpack.c.l.b16 %v4616
        %v4765 = vunpack.c.l.b16 %v4617
        %v4766 = vunpack.c.l.b16 %v4618
        %v4767 = vunpack.c.l.b16 %v4619
        %v4768 = vunpack.c.l.b16 %v4620
        %v4769 = vunpack.c.l.b16 %v4621
        %v4770 = vunpack.c.l.b16 %v4622
        %v4771 = vunpack.c.l.b16 %v4623
        %v4772 = vunpack.c.l.b16 %v4624
        %v4773 = vunpack.c.l.b16 %v4625
        %v4774 = vunpack.c.l.b16 %v4626
        %v4775 = vunpack.c.l.b16 %v4627
        %v4776 = vunpack.c.l.b16 %v4628
        %v4777 = vpack.c.b16 %v4706, %v4705
        %v4778 = vpack.c.b16 %v4708, %v4707
        %v4779 = vpack.c.b16 %v4710, %v4709
        %v4780 = vpack.c.b16 %v4712, %v4711
        %v4781 = vpack.c.b16 %v4714, %v4713
        %v4782 = vpack.c.b16 %v4716, %v4715
        %v4783 = vpack.c.b16 %v4718, %v4717
        %v4784 = vpack.c.b16 %v4720, %v4719
        %v4785 = vpack.c.b16 %v4722, %v4721
        %v4786 = vpack.c.b16 %v4724, %v4723
        %v4787 = vpack.c.b16 %v4726, %v4725
        %v4788 = vpack.c.b16 %v4728, %v4727
        %v4789 = vpack.c.b16 %v4730, %v4729
        %v4790 = vpack.c.b16 %v4732, %v4731
        %v4791 = vpack.c.b16 %v4734, %v4733
        %v4792 = vpack.c.b16 %v4736, %v4735
        %v4793 = vpack.c.b16 %v4738, %v4737
        %v4794 = vpack.c.b16 %v4740, %v4739
        %v4795 = vpack.c.b16 %v4742, %v4741
        %v4796 = vpack.c.b16 %v4744, %v4743
        %v4797 = vpack.c.b16 %v4746, %v4745
        %v4798 = vpack.c.b16 %v4748, %v4747
        %v4799 = vpack.c.b16 %v4750, %v4749
        %v4800 = vpack.c.b16 %v4752, %v4751
        %v4801 = vpack.c.b16 %v4754, %v4753
        %v4802 = vpack.c.b16 %v4756, %v4755
        %v4803 = vpack.c.b16 %v4758, %v4757
        %v4804 = vpack.c.b16 %v4760, %v4759
        %v4805 = vpack.c.b16 %v4762, %v4761
        %v4806 = vpack.c.b16 %v4764, %v4763
        %v4807 = vpack.c.b16 %v4766, %v4765
        %v4808 = vpack.c.b16 %v4768, %v4767
        %v4809 = vpack.c.b16 %v4770, %v4769
        %v4810 = vpack.c.b16 %v4772, %v4771
        %v4811 = vpack.c.b16 %v4774, %v4773
        %v4812 = vpack.c.b16 %v4776, %v4775
        %v4850 = vsel %vm4050, %v4556, 0
        %4852 = vmatpush.bf16.msra.mxu0 %v4784
        %4853 = vmatpush.bf16.msra.mxu0 %v4783
        %4854 = vmatpush.bf16.msra.mxu0 %v4782
        %4855 = vmatpush.bf16.msra.mxu0 %v4781
        %4856 = vmatpush.bf16.msra.mxu0 %v4780
        %4857 = vmatpush.bf16.msra.mxu0 %v4779
        %4858 = vmatpush.bf16.msra.mxu0 %v4778
        %4859 = vmatpush.bf16.msra.mxu0 %v4777
        %4860 = vmatmul.bf16.gmra.mxu0 %v4552
        %v4861 = vpop.f32.mrf.mxu0
        %v4862 = vadd.f32 %v4631, %v4861
        %v4863 = vpop.f32.mrf.mxu0
        %v4864 = vadd.f32 %v4631, %v4863
        %4865 = vdwg.mxu0
        %4866 = vmatpush.bf16.msra.mxu0 %v4792
        %4867 = vmatpush.bf16.msra.mxu0 %v4791
        %4868 = vmatpush.bf16.msra.mxu0 %v4790
        %4869 = vmatpush.bf16.msra.mxu0 %v4789
        %4870 = vmatpush.bf16.msra.mxu0 %v4788
        %4871 = vmatpush.bf16.msra.mxu0 %v4787
        %4872 = vmatpush.bf16.msra.mxu0 %v4786
        %4873 = vmatpush.bf16.msra.mxu0 %v4785
        %4874 = vmatmul.bf16.gmra.mxu0 %v4553
        %v4875 = vpop.f32.mrf.mxu0
        %v4876 = vadd.f32 %v4862, %v4875
        %v4877 = vpop.f32.mrf.mxu0
        %v4878 = vadd.f32 %v4864, %v4877
        %4879 = vdwg.mxu0
        %4880 = vmatpush.bf16.msra.mxu0 %v4800
        %4881 = vmatpush.bf16.msra.mxu0 %v4799
        %4882 = vmatpush.bf16.msra.mxu0 %v4798
        %4883 = vmatpush.bf16.msra.mxu0 %v4797
        %4884 = vmatpush.bf16.msra.mxu0 %v4796
        %4885 = vmatpush.bf16.msra.mxu0 %v4795
        %4886 = vmatpush.bf16.msra.mxu0 %v4794
        %4887 = vmatpush.bf16.msra.mxu0 %v4793
        %4888 = vmatmul.bf16.gmra.mxu0 %v4554
        %v4889 = vpop.f32.mrf.mxu0
        %v4890 = vadd.f32 %v4876, %v4889
        %v4891 = vpop.f32.mrf.mxu0
        %v4892 = vadd.f32 %v4878, %v4891
        %4893 = vdwg.mxu0
        %4894 = vmatpush.bf16.msra.mxu0 %v4808
        %4895 = vmatpush.bf16.msra.mxu0 %v4807
        %4896 = vmatpush.bf16.msra.mxu0 %v4806
        %4897 = vmatpush.bf16.msra.mxu0 %v4805
        %4898 = vmatpush.bf16.msra.mxu0 %v4804
        %4899 = vmatpush.bf16.msra.mxu0 %v4803
        %4900 = vmatpush.bf16.msra.mxu0 %v4802
        %4901 = vmatpush.bf16.msra.mxu0 %v4801
        %4902 = vmatmul.bf16.gmra.mxu0 %v4555
        %v4903 = vpop.f32.mrf.mxu0
        %v4904 = vadd.f32 %v4890, %v4903
        %v4905 = vpop.f32.mrf.mxu0
        %v4906 = vadd.f32 %v4892, %v4905
        %4907 = vdwg.mxu0
        %4908 = vmatpush.bf16.msra.mxu0 0
        %4909 = vmatpush.bf16.msra.mxu0 0
        %4910 = vmatpush.bf16.msra.mxu0 0
        %4911 = vmatpush.bf16.msra.mxu0 0
        %4912 = vmatpush.bf16.msra.mxu0 %v4812
        %4913 = vmatpush.bf16.msra.mxu0 %v4811
        %4914 = vmatpush.bf16.msra.mxu0 %v4810
        %4915 = vmatpush.bf16.msra.mxu0 %v4809
        %4916 = vmatmul.bf16.gmra.mxu0 %v4850
        %v4917 = vpop.f32.mrf.mxu0
        %v4918 = vadd.f32 %v4904, %v4917
        %v4919 = vpop.f32.mrf.mxu0
        %v4920 = vadd.f32 %v4906, %v4919
        %4921 = vdwg.mxu0
        %v4922 = vmax.f32 %v4918, 0.0
        %v4923 = vmax.f32 %v4920, 0.0
        %v4924 = vmax.f32 %v4922, %v4923
        %v4925 = vrot.slane %v4924, 4
        %v4926 = vmax.f32 %v4924, %v4925
        %v4927 = vrot.slane %v4926, 2
        %v4928 = vmax.f32 %v4926, %v4927
        %v4929 = vrot.slane %v4928, 1
        %v4930 = vmax.f32 %v4928, %v4929
        %v4931 = vpack.c.bf16 %v4930, %v4930
        %v4932 = vld [vmem:[%s9] sm:$0xf]
        %v4933 = vld [vmem:[%s9 + $0x4] sm:$0xf]
        %v4934 = vld [vmem:[%s9 + $0x8] sm:$0xf]
        %v4935 = vld [vmem:[%s9 + $0xc] sm:$0xf]
        %v4936 = vld [vmem:[%s9 + $0x10] sm:$0xf]
        %v4937 = vld [vmem:[%s9 + $0x14] sm:$0xf]
        %v4938 = vld [vmem:[%s9 + $0x18] sm:$0xf]
        %v4939 = vld [vmem:[%s9 + $0x1c] sm:$0xf]
        %v4940 = vld [vmem:[%s9 + $0x20] sm:$0xf]
        %v4941 = vld [vmem:[%s9 + $0x24] sm:$0xf]
        %v4942 = vld [vmem:[%s9 + $0x28] sm:$0xf]
        %v4943 = vld [vmem:[%s9 + $0x2c] sm:$0xf]
        %v4944 = vld [vmem:[%s9 + $0x30] sm:$0xf]
        %v4945 = vld [vmem:[%s9 + $0x34] sm:$0xf]
        %v4946 = vld [vmem:[%s9 + $0x38] sm:$0xf]
        %v4947 = vld [vmem:[%s9 + $0x3c] sm:$0xf]
        %v4948 = vld [vmem:[%s10] sm:$0x1]
        %v4965 = vunpack.c.l.b16 %v4932
        %v4966 = vunpack.c.l.b16 %v4933
        %v4967 = vunpack.c.l.b16 %v4934
        %v4968 = vunpack.c.l.b16 %v4935
        %v4969 = vunpack.c.l.b16 %v4936
        %v4970 = vunpack.c.l.b16 %v4937
        %v4971 = vunpack.c.l.b16 %v4938
        %v4972 = vunpack.c.l.b16 %v4939
        %v4973 = vunpack.c.l.b16 %v4940
        %v4974 = vunpack.c.l.b16 %v4941
        %v4975 = vunpack.c.l.b16 %v4942
        %v4976 = vunpack.c.l.b16 %v4943
        %v4977 = vunpack.c.l.b16 %v4944
        %v4978 = vunpack.c.l.b16 %v4945
        %v4979 = vunpack.c.l.b16 %v4946
        %v4980 = vunpack.c.l.b16 %v4947
        %v4981 = vpack.c.b16 %v4966, %v4965
        %v4982 = vpack.c.b16 %v4968, %v4967
        %v4983 = vpack.c.b16 %v4970, %v4969
        %v4984 = vpack.c.b16 %v4972, %v4971
        %v4985 = vpack.c.b16 %v4974, %v4973
        %v4986 = vpack.c.b16 %v4976, %v4975
        %v4987 = vpack.c.b16 %v4978, %v4977
        %v4988 = vpack.c.b16 %v4980, %v4979
        %4997 = vmatpush.bf16.msra.mxu0 %v4988
        %4998 = vmatpush.bf16.msra.mxu0 %v4987
        %4999 = vmatpush.bf16.msra.mxu0 %v4986
        %5000 = vmatpush.bf16.msra.mxu0 %v4985
        %5001 = vmatpush.bf16.msra.mxu0 %v4984
        %5002 = vmatpush.bf16.msra.mxu0 %v4983
        %5003 = vmatpush.bf16.msra.mxu0 %v4982
        %5004 = vmatpush.bf16.msra.mxu0 %v4981
        %5005 = vmatmul.bf16.gmra.mxu0 %v4931
        %v5006 = vpop.f32.mrf.mxu0
        %v5007 = vadd.f32 %v4948, %v5006
        %v5008 = vpop.f32.mrf.mxu0
        %5009 = vdwg.mxu0
        %v5010 = vmax.f32 %v5007, 0.0
        %v5011 = vpack.c.bf16 %v5010, %v5010
        %v5012 = vld [vmem:[%s11] sm:$0xf]
        %v5013 = vld [vmem:[%s11 + $0x4] sm:$0xf]
        %v5014 = vld [vmem:[%s11 + $0x8] sm:$0xf]
        %v5015 = vld [vmem:[%s11 + $0xc] sm:$0xf]
        %v5016 = vld [vmem:[%s11 + $0x10] sm:$0xf]
        %v5017 = vld [vmem:[%s11 + $0x14] sm:$0xf]
        %v5018 = vld [vmem:[%s11 + $0x18] sm:$0xf]
        %v5019 = vld [vmem:[%s11 + $0x1c] sm:$0xf]
        %v5020 = vld [vmem:[%s12] sm:$0x1]
        %v5029 = vunpack.c.l.b16 %v5012
        %v5030 = vunpack.c.l.b16 %v5013
        %v5031 = vunpack.c.l.b16 %v5014
        %v5032 = vunpack.c.l.b16 %v5015
        %v5033 = vunpack.c.l.b16 %v5016
        %v5034 = vunpack.c.l.b16 %v5017
        %v5035 = vunpack.c.l.b16 %v5018
        %v5036 = vunpack.c.l.b16 %v5019
        %v5037 = vpack.c.b16 %v5030, %v5029
        %v5038 = vpack.c.b16 %v5032, %v5031
        %v5039 = vpack.c.b16 %v5034, %v5033
        %v5040 = vpack.c.b16 %v5036, %v5035
        %v5046 = vsel %vm4050, %v5011, 0
        %5048 = vmatpush.bf16.msra.mxu0 0
        %5049 = vmatpush.bf16.msra.mxu0 0
        %5050 = vmatpush.bf16.msra.mxu0 0
        %5051 = vmatpush.bf16.msra.mxu0 0
        %5052 = vmatpush.bf16.msra.mxu0 %v5040
        %5053 = vmatpush.bf16.msra.mxu0 %v5039
        %5054 = vmatpush.bf16.msra.mxu0 %v5038
        %5055 = vmatpush.bf16.msra.mxu0 %v5037
        %5056 = vmatmul.bf16.gmra.mxu0 %v5046
        %v5057 = vpop.f32.mrf.mxu0
        %v5058 = vadd.f32 %v5020, %v5057
        %v5059 = vpop.f32.mrf.mxu0
        %5060 = vdwg.mxu0
        %5061 = vst [vmem:[%s432] sm:$0x1] %v5058
        %s5062 = sand.u32 %s313, 1
        %s5063 = scalar_lea.sflag [#allocation3], %s5062
        %s5064 = sand.u32 %s313, 1
        %s5065 = scalar_lea.vmem [#allocation2], %s5064
        // Predicated region
        $region73: #{simplecnn_forward.1} parent=71 // pred_check
          %p5066 = pneg %p323
        $region74: #{simplecnn_forward.1} parent=71 // pred_check_branch
          %5068 = sbr.rel (%p5066) target = $region76
        $region75: #{simplecnn_forward.1} parent=71 // pred_region
          %5070 = vsyncadd %s5063, 0
          %s5071 = scalar_lea.hbm %s13, %s27
          %s5073 = sshll.u32 %s5065, 4
          %s5074 = int_to_ptr.vmem [resolvable:$true] %s5073
          %s5075 = sshll.u32 %s5071, 4
          %s5076 = int_to_ptr.hbm [resolvable:$true] %s5075
          %5078 = dma.vmem_to_hbm [thread:$0]  %s5074, 16, %s5076, %s5063
        $region76: #{simplecnn_forward.1} parent=71 // pred_fallthru
          _
      $region72: #{simplecnn_forward.1} parent=5 // pred_fallthru
        _
      %p5079 = scmp.le.s32.totalorder 2, %s22
      // Predicated region
      $region77: #{simplecnn_forward.1} parent=5 // pred_check
        %p5080 = pneg %p5079
      $region78: #{simplecnn_forward.1} parent=5 // pred_check_branch
        %5082 = sbr.rel (%p5080) target = $region80
      $region79: #{simplecnn_forward.1} parent=5 // pred_region
        %s5083 = ssub.s32 %s22, 2
        // Predicated region
        $region81: #{simplecnn_forward.1} parent=79 // pred_check
          %p5084 = pneg %p329
        $region82: #{simplecnn_forward.1} parent=79 // pred_check_branch
          %5086 = sbr.rel (%p5084) target = $region84
        $region83: #{simplecnn_forward.1} parent=79 // pred_region
          %s5087 = sand.u32 %s314, 1
          %s5088 = scalar_lea.sflag [#allocation3], %s5087
          %s5089 = sand.u32 %s314, 1
          %s5090 = scalar_lea.vmem [#allocation2], %s5089
          %5092 = dma.done %s5088, 16
        $region84: #{simplecnn_forward.1} parent=79 // pred_fallthru
          _
      $region80: #{simplecnn_forward.1} parent=5 // pred_fallthru
        _
    $region6: #{simplecnn_forward.1} parent=1 // loop_footer
      %s26 = sadd.s32 1, %s22
    $region7: #{simplecnn_forward.1} parent=1 // loop_footer_branch
      %21 = sbr.rel target = $region3
    $region8: #{simplecnn_forward.1} parent=1 // loop_exit
      _
    %5093 = vsyncpa [#allocation3], 1
    %s5094 = scalar_lea.sflag [#allocation3], 1
    %5095 = vsyncpa %s5094, 1

</llo_original>
